<compile_context>
chip_gen: v6e
topology: v6e:2x2x1
jax: 0.10.0
libtpu: 0.0.40
codegen_flags: <defaults>
</compile_context>

<pallas_src>
from functools import partial

import jax
import jax.numpy as jnp
from jax.experimental import pallas as pl
from jax.experimental.pallas import tpu as pltpu


def attention_kernel(x_ref, wqkv_ref, wout_ref, bout_ref, o_ref, *,
                     heads, dim_head):
    # x_ref:    (1, C, N)        one batch element, channels on sublanes
    # wqkv_ref: (3*hidden, C)    1x1-conv weight (no bias), q rows pre-scaled
    # wout_ref: (dim, hidden)    output 1x1-conv weight
    # bout_ref: (dim, 1)         output 1x1-conv bias
    # o_ref:    (1, dim, N)      lane-dense output (N on lanes)
    hidden = heads * dim_head

    x = x_ref[0]                                            # (C, N)

    # to_qkv 1x1 conv: (3*hidden, C) @ (C, N) -> (3*hidden, N)
    qkv = jnp.dot(wqkv_ref[...], x, preferred_element_type=jnp.float32)

    # Sublane slices at multiples of 32 (8-aligned) -> layout preserving.
    # bf16 operands for the MXU, f32 accumulation.
    q = qkv[0 * hidden:1 * hidden].astype(jnp.bfloat16)     # (hidden, N), scaled
    k = qkv[1 * hidden:2 * hidden].astype(jnp.bfloat16)
    v = qkv[2 * hidden:3 * hidden].astype(jnp.bfloat16)

    head_outs = []
    for h in range(heads):
        sl = slice(h * dim_head, (h + 1) * dim_head)
        qh, kh, vh = q[sl], k[sl], v[sl]                    # (d, N) each

        # sim[i, j] = sum_d qh[d, i] * kh[d, j]             -> (N, N)
        sim = jax.lax.dot_general(qh, kh, (((0,), (0,)), ((), ())),
                                  preferred_element_type=jnp.float32)

        # softmax over j (lane axis), f32 throughout
        sim = sim - jnp.max(sim, axis=-1, keepdims=True)
        p = jnp.exp(sim)
        inv = pl.reciprocal(jnp.sum(p, axis=-1, keepdims=True), approx=True)
        attn = (p * inv).astype(jnp.bfloat16)

        # out_h[e, i] = sum_j vh[e, j] * attn[i, j]         -> (d, N)
        oh = jax.lax.dot_general(vh, attn, (((1,), (1,)), ((), ())),
                                 preferred_element_type=jnp.float32)
        head_outs.append(oh)

    # Concatenate along sublanes at 32-aligned offsets: channel = h*dim_head+e
    out_all = jnp.concatenate(head_outs, axis=0)            # (hidden, N)

    # to_out 1x1 conv + bias: (dim, hidden) @ (hidden, N) -> (dim, N)
    y = jnp.dot(wout_ref[...], out_all, preferred_element_type=jnp.float32)
    y = y + bout_ref[...]                                   # (dim,1) lane bcast

    o_ref[0] = y.astype(o_ref.dtype)                        # lane-dense store


def attention(x, wqkv, wout, bout, *, heads=4, dim_head=32):
    """x: (B, C, H, W) float32 NCHW.  Weights in PyTorch conv layout:
       wqkv (3*hidden, C), wout (dim, hidden), bout (dim,).  Returns NCHW."""
    B, C, H, W = x.shape
    N = H * W
    hidden = heads * dim_head
    dim_out = wout.shape[0]
    scale = dim_head ** (-0.5)

    # NCHW -> (B, C, N) is a free reshape (no transpose / extra HBM pass).
    x_seq = x.reshape(B, C, N)
    # Fold the q scale into the q rows of the bias-free qkv conv weight.
    wqkv_s = wqkv.at[:hidden].multiply(scale)
    bout2 = bout.reshape(dim_out, 1)

    kernel = partial(attention_kernel, heads=heads, dim_head=dim_head)

    y_seq = pl.pallas_call(
        kernel,
        out_shape=jax.ShapeDtypeStruct((B, dim_out, N), jnp.float32),
        grid_spec=pltpu.PrefetchScalarGridSpec(
            num_scalar_prefetch=0,
            grid=(B,),
            in_specs=[
                pl.BlockSpec((1, C, N), lambda b: (b, 0, 0)),
                pl.BlockSpec((3 * hidden, C), lambda b: (0, 0)),
                pl.BlockSpec((dim_out, hidden), lambda b: (0, 0)),
                pl.BlockSpec((dim_out, 1), lambda b: (0, 0)),
            ],
            out_specs=pl.BlockSpec((1, dim_out, N), lambda b: (b, 0, 0)),
        ),
        # Batch axis is independent -> on v7x both TensorCores get a sample.
        compiler_params=pltpu.CompilerParams(
            dimension_semantics=("parallel",)),
        # Note: at N=256 the whole sample (qkv + per-head (N,N) attn) is ~1 MB
        # and fits VMEM comfortably; larger UNet resolutions would need an
        # N-tiled (flash-style) grid axis and an explicit vmem_limit_bytes.
    )(x_seq, wqkv_s, wout, bout2)

    return y_seq.reshape(B, dim_out, H, W)


if __name__ == "__main__":
    # Module config: dim=4 channels, heads=4, dim_head=32 -> hidden_dim=128
    B, dim, H, W = 2, 4, 16, 16
    heads, dim_head = 4, 32
    hidden = heads * dim_head

    key = jax.random.PRNGKey(0)
    kx, k1, k2, k3 = jax.random.split(key, 4)

    x = jax.random.normal(kx, (B, dim, H, W), dtype=jnp.float32)
    # to_qkv: Conv2d(dim, hidden*3, 1, bias=False) -> weight (3*hidden, dim)
    wqkv = 0.1 * jax.random.normal(k1, (3 * hidden, dim), dtype=jnp.float32)
    # to_out: Conv2d(hidden, dim, 1) -> weight (dim, hidden), bias (dim,)
    wout = 0.1 * jax.random.normal(k2, (dim, hidden), dtype=jnp.float32)
    bout = 0.1 * jax.random.normal(k3, (dim,), dtype=jnp.float32)

    out = attention(x, wqkv, wout, bout, heads=heads, dim_head=dim_head)
    jax.block_until_ready(out)
    assert out.shape == (B, dim, H, W)
    print("KERNEL_OK")
</pallas_src>

<mosaic_0001>
module attributes {stable_mosaic.version = 11 : i64} {
  func.func @attention_kernel(%arg0: i32, %arg1: memref<1x4x256xf32, #tpu.memory_space<vmem>>, %arg2: memref<384x4xf32, #tpu.memory_space<vmem>>, %arg3: memref<4x128xf32, #tpu.memory_space<vmem>>, %arg4: memref<4x1xf32, #tpu.memory_space<vmem>>, %arg5: memref<1x4x256xf32, #tpu.memory_space<vmem>>) attributes {dimension_semantics = [#tpu.dimension_semantics<parallel>], iteration_bounds = array<i64: 2>, scalar_prefetch = 0 : i64, scratch_operands = 0 : i64, tpu.core_type = #tpu.core_type<tc>, window_params = [{transform_indices = @transform_0, window_bounds = array<i64: 1, 4, 256>}, {pipeline_mode = #tpu.pipeline_mode<synchronous>, transform_indices = @transform_1, window_bounds = array<i64: 384, 4>}, {pipeline_mode = #tpu.pipeline_mode<synchronous>, transform_indices = @transform_2, window_bounds = array<i64: 4, 128>}, {pipeline_mode = #tpu.pipeline_mode<synchronous>, transform_indices = @transform_3, window_bounds = array<i64: 4, 1>}, {transform_indices = @transform_4, window_bounds = array<i64: 1, 4, 256>}]} {
    %c0 = arith.constant 0 : index
    %c0_0 = arith.constant 0 : index
    %c0_1 = arith.constant 0 : index
    %0 = vector.load %arg1[%c0, %c0_0, %c0_1] : memref<1x4x256xf32, #tpu.memory_space<vmem>>, vector<1x4x256xf32>
    %1 = vector.shape_cast %0 : vector<1x4x256xf32> to vector<4x256xf32>
    %c0_2 = arith.constant 0 : index
    %c0_3 = arith.constant 0 : index
    %2 = vector.load %arg2[%c0_2, %c0_3] : memref<384x4xf32, #tpu.memory_space<vmem>>, vector<384x4xf32>
    %cst = arith.constant dense<0.000000e+00> : vector<384x256xf32>
    %3 = tpu.matmul %2, %1, %cst {dimension_numbers = #tpu.dot_dimension_numbers<[1], [0], [0], [1], [0, 0, 1, 1], [], []>} : vector<384x4xf32>, vector<4x256xf32>, vector<384x256xf32> -> vector<384x256xf32>
    %4 = vector.extract_strided_slice %3 {offsets = [0, 0], sizes = [128, 256], strides = [1, 1]} : vector<384x256xf32> to vector<128x256xf32>
    %5 = arith.truncf %4 : vector<128x256xf32> to vector<128x256xbf16>
    %6 = vector.extract_strided_slice %3 {offsets = [128, 0], sizes = [128, 256], strides = [1, 1]} : vector<384x256xf32> to vector<128x256xf32>
    %7 = arith.truncf %6 : vector<128x256xf32> to vector<128x256xbf16>
    %8 = vector.extract_strided_slice %3 {offsets = [256, 0], sizes = [128, 256], strides = [1, 1]} : vector<384x256xf32> to vector<128x256xf32>
    %9 = arith.truncf %8 : vector<128x256xf32> to vector<128x256xbf16>
    %10 = vector.extract_strided_slice %5 {offsets = [0, 0], sizes = [32, 256], strides = [1, 1]} : vector<128x256xbf16> to vector<32x256xbf16>
    %11 = vector.extract_strided_slice %7 {offsets = [0, 0], sizes = [32, 256], strides = [1, 1]} : vector<128x256xbf16> to vector<32x256xbf16>
    %12 = vector.extract_strided_slice %9 {offsets = [0, 0], sizes = [32, 256], strides = [1, 1]} : vector<128x256xbf16> to vector<32x256xbf16>
    %cst_4 = arith.constant dense<0.000000e+00> : vector<256x256xf32>
    %13 = tpu.matmul %10, %11, %cst_4 {dimension_numbers = #tpu.dot_dimension_numbers<[0], [0], [1], [1], [0, 1, 1, 1], [], []>} : vector<32x256xbf16>, vector<32x256xbf16>, vector<256x256xf32> -> vector<256x256xf32>
    %cst_5 = arith.constant dense<0xFF800000> : vector<256xf32>
    %14 = vector.multi_reduction <maximumf>, %13, %cst_5 [1] : vector<256x256xf32> to vector<256xf32>
    %15 = vector.shape_cast %14 : vector<256xf32> to vector<256x1xf32>
    %16 = vector.broadcast %15 : vector<256x1xf32> to vector<256x256xf32>
    %17 = arith.subf %13, %16 : vector<256x256xf32>
    %18 = math.exp %17 : vector<256x256xf32>
    %cst_6 = arith.constant dense<0.000000e+00> : vector<256xf32>
    %19 = vector.multi_reduction <add>, %18, %cst_6 [1] : vector<256x256xf32> to vector<256xf32>
    %20 = vector.shape_cast %19 : vector<256xf32> to vector<256x1xf32>
    %21 = tpu.reciprocal %20 {approx = true} : vector<256x1xf32> -> vector<256x1xf32>
    %22 = vector.broadcast %21 : vector<256x1xf32> to vector<256x256xf32>
    %23 = arith.mulf %18, %22 : vector<256x256xf32>
    %24 = arith.truncf %23 : vector<256x256xf32> to vector<256x256xbf16>
    %cst_7 = arith.constant dense<0.000000e+00> : vector<32x256xf32>
    %25 = tpu.matmul %12, %24, %cst_7 {dimension_numbers = #tpu.dot_dimension_numbers<[1], [1], [0], [0], [0, 0, 1, 0], [], []>} : vector<32x256xbf16>, vector<256x256xbf16>, vector<32x256xf32> -> vector<32x256xf32>
    %26 = vector.extract_strided_slice %5 {offsets = [32, 0], sizes = [32, 256], strides = [1, 1]} : vector<128x256xbf16> to vector<32x256xbf16>
    %27 = vector.extract_strided_slice %7 {offsets = [32, 0], sizes = [32, 256], strides = [1, 1]} : vector<128x256xbf16> to vector<32x256xbf16>
    %28 = vector.extract_strided_slice %9 {offsets = [32, 0], sizes = [32, 256], strides = [1, 1]} : vector<128x256xbf16> to vector<32x256xbf16>
    %cst_8 = arith.constant dense<0.000000e+00> : vector<256x256xf32>
    %29 = tpu.matmul %26, %27, %cst_8 {dimension_numbers = #tpu.dot_dimension_numbers<[0], [0], [1], [1], [0, 1, 1, 1], [], []>} : vector<32x256xbf16>, vector<32x256xbf16>, vector<256x256xf32> -> vector<256x256xf32>
    %cst_9 = arith.constant dense<0xFF800000> : vector<256xf32>
    %30 = vector.multi_reduction <maximumf>, %29, %cst_9 [1] : vector<256x256xf32> to vector<256xf32>
    %31 = vector.shape_cast %30 : vector<256xf32> to vector<256x1xf32>
    %32 = vector.broadcast %31 : vector<256x1xf32> to vector<256x256xf32>
    %33 = arith.subf %29, %32 : vector<256x256xf32>
    %34 = math.exp %33 : vector<256x256xf32>
    %cst_10 = arith.constant dense<0.000000e+00> : vector<256xf32>
    %35 = vector.multi_reduction <add>, %34, %cst_10 [1] : vector<256x256xf32> to vector<256xf32>
    %36 = vector.shape_cast %35 : vector<256xf32> to vector<256x1xf32>
    %37 = tpu.reciprocal %36 {approx = true} : vector<256x1xf32> -> vector<256x1xf32>
    %38 = vector.broadcast %37 : vector<256x1xf32> to vector<256x256xf32>
    %39 = arith.mulf %34, %38 : vector<256x256xf32>
    %40 = arith.truncf %39 : vector<256x256xf32> to vector<256x256xbf16>
    %cst_11 = arith.constant dense<0.000000e+00> : vector<32x256xf32>
    %41 = tpu.matmul %28, %40, %cst_11 {dimension_numbers = #tpu.dot_dimension_numbers<[1], [1], [0], [0], [0, 0, 1, 0], [], []>} : vector<32x256xbf16>, vector<256x256xbf16>, vector<32x256xf32> -> vector<32x256xf32>
    %42 = vector.extract_strided_slice %5 {offsets = [64, 0], sizes = [32, 256], strides = [1, 1]} : vector<128x256xbf16> to vector<32x256xbf16>
    %43 = vector.extract_strided_slice %7 {offsets = [64, 0], sizes = [32, 256], strides = [1, 1]} : vector<128x256xbf16> to vector<32x256xbf16>
    %44 = vector.extract_strided_slice %9 {offsets = [64, 0], sizes = [32, 256], strides = [1, 1]} : vector<128x256xbf16> to vector<32x256xbf16>
    %cst_12 = arith.constant dense<0.000000e+00> : vector<256x256xf32>
    %45 = tpu.matmul %42, %43, %cst_12 {dimension_numbers = #tpu.dot_dimension_numbers<[0], [0], [1], [1], [0, 1, 1, 1], [], []>} : vector<32x256xbf16>, vector<32x256xbf16>, vector<256x256xf32> -> vector<256x256xf32>
    %cst_13 = arith.constant dense<0xFF800000> : vector<256xf32>
    %46 = vector.multi_reduction <maximumf>, %45, %cst_13 [1] : vector<256x256xf32> to vector<256xf32>
    %47 = vector.shape_cast %46 : vector<256xf32> to vector<256x1xf32>
    %48 = vector.broadcast %47 : vector<256x1xf32> to vector<256x256xf32>
    %49 = arith.subf %45, %48 : vector<256x256xf32>
    %50 = math.exp %49 : vector<256x256xf32>
    %cst_14 = arith.constant dense<0.000000e+00> : vector<256xf32>
    %51 = vector.multi_reduction <add>, %50, %cst_14 [1] : vector<256x256xf32> to vector<256xf32>
    %52 = vector.shape_cast %51 : vector<256xf32> to vector<256x1xf32>
    %53 = tpu.reciprocal %52 {approx = true} : vector<256x1xf32> -> vector<256x1xf32>
    %54 = vector.broadcast %53 : vector<256x1xf32> to vector<256x256xf32>
    %55 = arith.mulf %50, %54 : vector<256x256xf32>
    %56 = arith.truncf %55 : vector<256x256xf32> to vector<256x256xbf16>
    %cst_15 = arith.constant dense<0.000000e+00> : vector<32x256xf32>
    %57 = tpu.matmul %44, %56, %cst_15 {dimension_numbers = #tpu.dot_dimension_numbers<[1], [1], [0], [0], [0, 0, 1, 0], [], []>} : vector<32x256xbf16>, vector<256x256xbf16>, vector<32x256xf32> -> vector<32x256xf32>
    %58 = vector.extract_strided_slice %5 {offsets = [96, 0], sizes = [32, 256], strides = [1, 1]} : vector<128x256xbf16> to vector<32x256xbf16>
    %59 = vector.extract_strided_slice %7 {offsets = [96, 0], sizes = [32, 256], strides = [1, 1]} : vector<128x256xbf16> to vector<32x256xbf16>
    %60 = vector.extract_strided_slice %9 {offsets = [96, 0], sizes = [32, 256], strides = [1, 1]} : vector<128x256xbf16> to vector<32x256xbf16>
    %cst_16 = arith.constant dense<0.000000e+00> : vector<256x256xf32>
    %61 = tpu.matmul %58, %59, %cst_16 {dimension_numbers = #tpu.dot_dimension_numbers<[0], [0], [1], [1], [0, 1, 1, 1], [], []>} : vector<32x256xbf16>, vector<32x256xbf16>, vector<256x256xf32> -> vector<256x256xf32>
    %cst_17 = arith.constant dense<0xFF800000> : vector<256xf32>
    %62 = vector.multi_reduction <maximumf>, %61, %cst_17 [1] : vector<256x256xf32> to vector<256xf32>
    %63 = vector.shape_cast %62 : vector<256xf32> to vector<256x1xf32>
    %64 = vector.broadcast %63 : vector<256x1xf32> to vector<256x256xf32>
    %65 = arith.subf %61, %64 : vector<256x256xf32>
    %66 = math.exp %65 : vector<256x256xf32>
    %cst_18 = arith.constant dense<0.000000e+00> : vector<256xf32>
    %67 = vector.multi_reduction <add>, %66, %cst_18 [1] : vector<256x256xf32> to vector<256xf32>
    %68 = vector.shape_cast %67 : vector<256xf32> to vector<256x1xf32>
    %69 = tpu.reciprocal %68 {approx = true} : vector<256x1xf32> -> vector<256x1xf32>
    %70 = vector.broadcast %69 : vector<256x1xf32> to vector<256x256xf32>
    %71 = arith.mulf %66, %70 : vector<256x256xf32>
    %72 = arith.truncf %71 : vector<256x256xf32> to vector<256x256xbf16>
    %cst_19 = arith.constant dense<0.000000e+00> : vector<32x256xf32>
    %73 = tpu.matmul %60, %72, %cst_19 {dimension_numbers = #tpu.dot_dimension_numbers<[1], [1], [0], [0], [0, 0, 1, 0], [], []>} : vector<32x256xbf16>, vector<256x256xbf16>, vector<32x256xf32> -> vector<32x256xf32>
    %74 = tpu.concatenate %25, %41, %57, %73 in 0 : vector<32x256xf32>, vector<32x256xf32>, vector<32x256xf32>, vector<32x256xf32> -> vector<128x256xf32>
    %c0_20 = arith.constant 0 : index
    %c0_21 = arith.constant 0 : index
    %75 = vector.load %arg3[%c0_20, %c0_21] : memref<4x128xf32, #tpu.memory_space<vmem>>, vector<4x128xf32>
    %cst_22 = arith.constant dense<0.000000e+00> : vector<4x256xf32>
    %76 = tpu.matmul %75, %74, %cst_22 {dimension_numbers = #tpu.dot_dimension_numbers<[1], [0], [0], [1], [0, 0, 1, 1], [], []>} : vector<4x128xf32>, vector<128x256xf32>, vector<4x256xf32> -> vector<4x256xf32>
    %c0_23 = arith.constant 0 : index
    %c0_24 = arith.constant 0 : index
    %77 = vector.load %arg4[%c0_23, %c0_24] : memref<4x1xf32, #tpu.memory_space<vmem>>, vector<4x1xf32>
    %78 = vector.broadcast %77 : vector<4x1xf32> to vector<4x256xf32>
    %79 = arith.addf %76, %78 : vector<4x256xf32>
    %c0_25 = arith.constant 0 : index
    %c0_26 = arith.constant 0 : index
    %c0_27 = arith.constant 0 : index
    %80 = vector.load %arg5[%c0_25, %c0_26, %c0_27] : memref<1x4x256xf32, #tpu.memory_space<vmem>>, vector<1x4x256xf32>
    %81 = vector.shape_cast %80 : vector<1x4x256xf32> to vector<4x256xf32>
    %82 = vector.shape_cast %79 : vector<4x256xf32> to vector<1x4x256xf32>
    tpu.vector_store %arg5[%c0_25, %c0_26, %c0_27], %82 {strides = array<i32>} : memref<1x4x256xf32, #tpu.memory_space<vmem>>, vector<1x4x256xf32>,
    return
  }
  func.func @transform_0(%arg0: i32) -> (i32, i32, i32) {
    %c0_i32 = arith.constant 0 : i32
    %c0_i32_0 = arith.constant 0 : i32
    %c0_i32_1 = arith.constant 0 : i32
    return %arg0, %c0_i32, %c0_i32_0 : i32, i32, i32
  }
  func.func @transform_1(%arg0: i32) -> (i32, i32) {
    %c0_i32 = arith.constant 0 : i32
    %c0_i32_0 = arith.constant 0 : i32
    %c0_i32_1 = arith.constant 0 : i32
    return %c0_i32, %c0_i32_0 : i32, i32
  }
  func.func @transform_2(%arg0: i32) -> (i32, i32) {
    %c0_i32 = arith.constant 0 : i32
    %c0_i32_0 = arith.constant 0 : i32
    %c0_i32_1 = arith.constant 0 : i32
    return %c0_i32, %c0_i32_0 : i32, i32
  }
  func.func @transform_3(%arg0: i32) -> (i32, i32) {
    %c0_i32 = arith.constant 0 : i32
    %c0_i32_0 = arith.constant 0 : i32
    %c0_i32_1 = arith.constant 0 : i32
    return %c0_i32, %c0_i32_0 : i32, i32
  }
  func.func @transform_4(%arg0: i32) -> (i32, i32, i32) {
    %c0_i32 = arith.constant 0 : i32
    %c0_i32_0 = arith.constant 0 : i32
    %c0_i32_1 = arith.constant 0 : i32
    return %arg0, %c0_i32, %c0_i32_0 : i32, i32, i32
  }
}

</mosaic_0001>

<llo_original>
// kernel: tpu_custom_call.1
$region0: #{tpu_custom_call.1}
  #allocation0 [shape = 'u32[]', space=smem, size = 0x4, offset = 0x4, fixed_abs, tag = 'smem constant byte address 0x4 - core index']
  #allocation1 [shape = 'u32[144,128]{1,0:T(1,128)}', space=vmem, size = 0x12000, scoped, tag = 'internal scratch']
  %s0 = inlined_call_operand.vmem [shape: f32[2,4,256], index: 0, kind: input, shape index: {}]
  %s1 = inlined_call_operand.vmem [shape: f32[384,4], index: 1, kind: input, shape index: {}]
  %s2 = inlined_call_operand.vmem [shape: f32[4,128], index: 2, kind: input, shape index: {}]
  %s3 = inlined_call_operand.vmem [shape: f32[4,1], index: 3, kind: input, shape index: {}]
  %s4 = inlined_call_operand.hbm [shape: f32[2,4,256], index: 4, kind: output, shape index: {}]
  %s5 = sld [smem:[#allocation0]]
  $region49: #{tpu_custom_call.1} parent=0
    _
  %s7 = ssub.s32 1, %s5
  %s8 = scalar_select 0, %s7, %s5
  $region1: #{tpu_custom_call.1} parent=0
    #allocation2 [shape = 'u8[8192]{0}', space=vmem, size = 0x2000, scoped, tag = 'output window, operand 0']
    #allocation3 [shape = 's32[2]{0}', space=sflag, size = 0x8, scoped, tag = 'scoped memory for tpu_custom_call.1']
    %9 = vsyncpa [#allocation3], 0
    %s10 = scalar_lea.sflag [#allocation3], 1
    %11 = vsyncpa %s10, 0
    loop: start=0, step=1, limit=4
    $region2: #{tpu_custom_call.1} parent=1 // loop_pre_header
      _
    $region3: #{tpu_custom_call.1} parent=1 // loop_header
      %s13 = sphi 0, %s17
      %p14 = scmp.ge.s32.totalorder %s13, 4
      %s23 = sphi 0, %s25
      %s26 = sphi 0, %s23
      %s27 = sphi 0, %s26
      %s43 = sphi 0, %s27
      %s47 = sphi 0, %s47
      %s49 = sphi 0, %s47
      %s50 = sphi 0, %s49
      %s64 = sphi 0, %s50
      %s68 = sphi 0, %s68
      %s70 = sphi 0, %s68
      %s71 = sphi 0, %s70
      %s85 = sphi 0, %s71
      %s89 = sphi 0, %s89
      %s91 = sphi 0, %s89
      %s92 = sphi 0, %s91
      %s106 = sphi 0, %s92
      %s112 = sphi 0, %s114
      %s115 = sphi 0, %s112
      %s116 = sphi 0, %s115
      %s132 = sphi 0, %s116
    $region4: #{tpu_custom_call.1} parent=1 // loop_header_branch
      %16 = sbr.rel (%p14) target = $region8
    $region5: #{tpu_custom_call.1} parent=1 // loop_body
      %s18 = ssub.s32 %s13, 1
      %s19 = ssub.s32 %s13, 2
      %s20 = sadd.s32 %s13, 1
      %s21 = ssub.s32 %s13, %s20
      %p22 = scmp.eq.s32.totalorder %s21, 0
      %s24 = sadd.s32 %s23, 1
      %s25 = scalar_select %p22, %s23, %s24
      %p28 = pneg %p22
      %p29 = scmp.eq.s32.totalorder %s13, 1
      %p30 = por %p28, %p29
      %p31 = scmp.ne.s32.totalorder %s23, %s26
      %p32 = scmp.eq.s32.totalorder %s13, 0
      %p33 = por %p31, %p32
      %p34 = scmp.ne.s32.totalorder %s23, %s26
      %p35 = scmp.eq.s32.totalorder %s18, 1
      %p36 = por %p34, %p35
      %p37 = scmp.ne.s32.totalorder %s26, %s27
      %p38 = scmp.eq.s32.totalorder %s18, 0
      %p39 = por %p37, %p38
      %p40 = scmp.ne.s32.totalorder %s26, %s27
      %p41 = scmp.eq.s32.totalorder %s19, 1
      %p42 = por %p40, %p41
      %p44 = scmp.ne.s32.totalorder %s27, %s43
      %p45 = scmp.eq.s32.totalorder %s19, 0
      %p46 = por %p44, %p45
      %s48 = sadd.s32 %s47, 1
      %p51 = scmp.eq.s32.totalorder %s13, 1
      %p52 = scmp.ne.s32.totalorder %s47, %s49
      %p53 = scmp.eq.s32.totalorder %s13, 0
      %p54 = por %p52, %p53
      %p55 = scmp.ne.s32.totalorder %s47, %s49
      %p56 = scmp.eq.s32.totalorder %s18, 1
      %p57 = por %p55, %p56
      %p58 = scmp.ne.s32.totalorder %s49, %s50
      %p59 = scmp.eq.s32.totalorder %s18, 0
      %p60 = por %p58, %p59
      %p61 = scmp.ne.s32.totalorder %s49, %s50
      %p62 = scmp.eq.s32.totalorder %s19, 1
      %p63 = por %p61, %p62
      %p65 = scmp.ne.s32.totalorder %s50, %s64
      %p66 = scmp.eq.s32.totalorder %s19, 0
      %p67 = por %p65, %p66
      %s69 = sadd.s32 %s68, 1
      %p72 = scmp.eq.s32.totalorder %s13, 1
      %p73 = scmp.ne.s32.totalorder %s68, %s70
      %p74 = scmp.eq.s32.totalorder %s13, 0
      %p75 = por %p73, %p74
      %p76 = scmp.ne.s32.totalorder %s68, %s70
      %p77 = scmp.eq.s32.totalorder %s18, 1
      %p78 = por %p76, %p77
      %p79 = scmp.ne.s32.totalorder %s70, %s71
      %p80 = scmp.eq.s32.totalorder %s18, 0
      %p81 = por %p79, %p80
      %p82 = scmp.ne.s32.totalorder %s70, %s71
      %p83 = scmp.eq.s32.totalorder %s19, 1
      %p84 = por %p82, %p83
      %p86 = scmp.ne.s32.totalorder %s71, %s85
      %p87 = scmp.eq.s32.totalorder %s19, 0
      %p88 = por %p86, %p87
      %s90 = sadd.s32 %s89, 1
      %p93 = scmp.eq.s32.totalorder %s13, 1
      %p94 = scmp.ne.s32.totalorder %s89, %s91
      %p95 = scmp.eq.s32.totalorder %s13, 0
      %p96 = por %p94, %p95
      %p97 = scmp.ne.s32.totalorder %s89, %s91
      %p98 = scmp.eq.s32.totalorder %s18, 1
      %p99 = por %p97, %p98
      %p100 = scmp.ne.s32.totalorder %s91, %s92
      %p101 = scmp.eq.s32.totalorder %s18, 0
      %p102 = por %p100, %p101
      %p103 = scmp.ne.s32.totalorder %s91, %s92
      %p104 = scmp.eq.s32.totalorder %s19, 1
      %p105 = por %p103, %p104
      %p107 = scmp.ne.s32.totalorder %s92, %s106
      %p108 = scmp.eq.s32.totalorder %s19, 0
      %p109 = por %p107, %p108
      %s110 = ssub.s32 %s13, %s20
      %p111 = scmp.eq.s32.totalorder %s110, 0
      %s113 = sadd.s32 %s112, 1
      %s114 = scalar_select %p111, %s112, %s113
      %p117 = pneg %p111
      %p118 = scmp.eq.s32.totalorder %s13, 1
      %p119 = por %p117, %p118
      %p120 = scmp.ne.s32.totalorder %s112, %s115
      %p121 = scmp.eq.s32.totalorder %s13, 0
      %p122 = por %p120, %p121
      %p123 = scmp.ne.s32.totalorder %s112, %s115
      %p124 = scmp.eq.s32.totalorder %s18, 1
      %p125 = por %p123, %p124
      %p126 = scmp.ne.s32.totalorder %s115, %s116
      %p127 = scmp.eq.s32.totalorder %s18, 0
      %p128 = por %p126, %p127
      %p129 = scmp.ne.s32.totalorder %s115, %s116
      %p130 = scmp.eq.s32.totalorder %s19, 1
      %p131 = por %p129, %p130
      %p133 = scmp.ne.s32.totalorder %s116, %s132
      %p134 = scmp.eq.s32.totalorder %s19, 0
      %p135 = por %p133, %p134
      %p136 = scmp.le.s32.totalorder 1, %s13
      %p137 = scmp.lt.s32.totalorder %s13, 3
      %p138 = pnand %p136, %p137
      %p139 = pneg %p138
      // Predicated region
      $region9: #{tpu_custom_call.1} parent=5 // pred_check
        _
      $region10: #{tpu_custom_call.1} parent=5 // pred_check_branch
        %141 = sbr.rel (%p138) target = $region12
      $region11: #{tpu_custom_call.1} parent=5 // pred_region
        %s142 = ssub.s32 %s13, 1
        // Predicated region
        $region13: #{tpu_custom_call.1} parent=11 // pred_check
          %p143 = pneg %p60
        $region14: #{tpu_custom_call.1} parent=11 // pred_check_branch
          %145 = sbr.rel (%p143) target = $region16
        $region15: #{tpu_custom_call.1} parent=11 // pred_region
          _
        $region16: #{tpu_custom_call.1} parent=11 // pred_fallthru
          _
        // Predicated region
        $region17: #{tpu_custom_call.1} parent=11 // pred_check
          %p146 = pneg %p81
        $region18: #{tpu_custom_call.1} parent=11 // pred_check_branch
          %148 = sbr.rel (%p146) target = $region20
        $region19: #{tpu_custom_call.1} parent=11 // pred_region
          _
        $region20: #{tpu_custom_call.1} parent=11 // pred_fallthru
          _
        // Predicated region
        $region21: #{tpu_custom_call.1} parent=11 // pred_check
          %p149 = pneg %p102
        $region22: #{tpu_custom_call.1} parent=11 // pred_check_branch
          %151 = sbr.rel (%p149) target = $region24
        $region23: #{tpu_custom_call.1} parent=11 // pred_region
          _
        $region24: #{tpu_custom_call.1} parent=11 // pred_fallthru
          _
      $region12: #{tpu_custom_call.1} parent=5 // pred_fallthru
        _
      %p152 = scmp.lt.s32.totalorder %s13, 2
      // Predicated region
      $region25: #{tpu_custom_call.1} parent=5 // pred_check
        %p153 = pneg %p152
      $region26: #{tpu_custom_call.1} parent=5 // pred_check_branch
        %155 = sbr.rel (%p153) target = $region28
      $region27: #{tpu_custom_call.1} parent=5 // pred_region
        // Predicated region
        $region29: #{tpu_custom_call.1} parent=27 // pred_check
          %p156 = pneg %p33
        $region30: #{tpu_custom_call.1} parent=27 // pred_check_branch
          %158 = sbr.rel (%p156) target = $region32
        $region31: #{tpu_custom_call.1} parent=27 // pred_region
          %p159 = scmp.lt.s32.totalorder %s13, 1
          %s160 = scalar_select %p159, %s13, 1
          %s161 = smul.addr %s160, 2
          %s162 = smul.addr %s161, 4
          %s163 = scalar_lea.vmem %s0, %s162
        $region32: #{tpu_custom_call.1} parent=27 // pred_fallthru
          _
      $region28: #{tpu_custom_call.1} parent=5 // pred_fallthru
        _
      %p164 = scmp.le.s32.totalorder 1, %s13
      %p165 = scmp.lt.s32.totalorder %s13, 3
      %p166 = pnand %p164, %p165
      %p167 = pneg %p166
      // Predicated region
      $region33: #{tpu_custom_call.1} parent=5 // pred_check
        _
      $region34: #{tpu_custom_call.1} parent=5 // pred_check_branch
        %169 = sbr.rel (%p166) target = $region36
      $region35: #{tpu_custom_call.1} parent=5 // pred_region
        %s170 = ssub.s32 %s13, 1
        %p171 = scmp.lt.s32.totalorder %s18, 1
        %s172 = scalar_select %p171, %s18, 1
        %s173 = smul.addr %s172, 2
        %s174 = smul.addr %s173, 4
        %s175 = scalar_lea.vmem %s0, %s174
        %p176 = pneg %p39
        %p177 = pneg %p36
        %p178 = pneg %p60
        %p179 = pneg %p57
        %p180 = pneg %p81
        %p181 = pneg %p78
        %p182 = pneg %p102
        %p183 = pneg %p99
        %p184 = pneg %p128
        %p185 = pneg %p125
        %s186 = sand.u32 %s115, 1
        %s187 = scalar_lea.sflag [#allocation3], %s186
        %s188 = sand.u32 %s115, 1
        %s189 = smul.addr %s188, 8
        %s190 = scalar_lea.vmem [#allocation2], %s189
        %p191 = scmp.lt.s32.totalorder %s18, 1
        %s192 = scalar_select %p191, %s18, 1
        %s193 = smul.addr %s192, 2
        %s194 = smul.addr %s193, 4
        %s195 = scalar_lea.vmem %s0, %s194
        %v197 = vld [vmem:[%s195] sm:$0xff]
        %v198 = vld [vmem:[%s1] sm:$0xff]
        %v199 = vld [vmem:[%s1 + $0x8] sm:$0xff]
        %v200 = vld [vmem:[%s1 + $0x10] sm:$0xff]
        %v201 = vld [vmem:[%s1 + $0x18] sm:$0xff]
        %v202 = vld [vmem:[%s1 + $0x20] sm:$0xff]
        %v203 = vld [vmem:[%s1 + $0x28] sm:$0xff]
        %v204 = vld [vmem:[%s1 + $0x30] sm:$0xff]
        %v205 = vld [vmem:[%s1 + $0x38] sm:$0xff]
        %v206 = vld [vmem:[%s1 + $0x40] sm:$0xff]
        %v207 = vld [vmem:[%s1 + $0x48] sm:$0xff]
        %v208 = vld [vmem:[%s1 + $0x50] sm:$0xff]
        %v209 = vld [vmem:[%s1 + $0x58] sm:$0xff]
        %v210 = vld [vmem:[%s1 + $0x60] sm:$0xff]
        %v211 = vld [vmem:[%s1 + $0x68] sm:$0xff]
        %v212 = vld [vmem:[%s1 + $0x70] sm:$0xff]
        %v213 = vld [vmem:[%s1 + $0x78] sm:$0xff]
        %v214 = vld [vmem:[%s1 + $0x80] sm:$0xff]
        %v215 = vld [vmem:[%s1 + $0x88] sm:$0xff]
        %v216 = vld [vmem:[%s1 + $0x90] sm:$0xff]
        %v217 = vld [vmem:[%s1 + $0x98] sm:$0xff]
        %v218 = vld [vmem:[%s1 + $0xa0] sm:$0xff]
        %v219 = vld [vmem:[%s1 + $0xa8] sm:$0xff]
        %v220 = vld [vmem:[%s1 + $0xb0] sm:$0xff]
        %v221 = vld [vmem:[%s1 + $0xb8] sm:$0xff]
        %v222 = vld [vmem:[%s1 + $0xc0] sm:$0xff]
        %v223 = vld [vmem:[%s1 + $0xc8] sm:$0xff]
        %v224 = vld [vmem:[%s1 + $0xd0] sm:$0xff]
        %v225 = vld [vmem:[%s1 + $0xd8] sm:$0xff]
        %v226 = vld [vmem:[%s1 + $0xe0] sm:$0xff]
        %v227 = vld [vmem:[%s1 + $0xe8] sm:$0xff]
        %v228 = vld [vmem:[%s1 + $0xf0] sm:$0xff]
        %v229 = vld [vmem:[%s1 + $0xf8] sm:$0xff]
        %v230 = vld [vmem:[%s1 + $0x100] sm:$0xff]
        %v231 = vld [vmem:[%s1 + $0x108] sm:$0xff]
        %v232 = vld [vmem:[%s1 + $0x110] sm:$0xff]
        %v233 = vld [vmem:[%s1 + $0x118] sm:$0xff]
        %v234 = vld [vmem:[%s1 + $0x120] sm:$0xff]
        %v235 = vld [vmem:[%s1 + $0x128] sm:$0xff]
        %v236 = vld [vmem:[%s1 + $0x130] sm:$0xff]
        %v237 = vld [vmem:[%s1 + $0x138] sm:$0xff]
        %v238 = vld [vmem:[%s1 + $0x140] sm:$0xff]
        %v239 = vld [vmem:[%s1 + $0x148] sm:$0xff]
        %v240 = vld [vmem:[%s1 + $0x150] sm:$0xff]
        %v241 = vld [vmem:[%s1 + $0x158] sm:$0xff]
        %v242 = vld [vmem:[%s1 + $0x160] sm:$0xff]
        %v243 = vld [vmem:[%s1 + $0x168] sm:$0xff]
        %v244 = vld [vmem:[%s1 + $0x170] sm:$0xff]
        %v245 = vld [vmem:[%s1 + $0x178] sm:$0xff]
        %v247 = vcombine.high %v197, %v197
        %vm248 = vcmask 31744
        %v250 = vsel %vm248, %v198, 0
        %v253 = vsel %vm248, %v199, 0
        %v256 = vsel %vm248, %v200, 0
        %v259 = vsel %vm248, %v201, 0
        %v262 = vsel %vm248, %v202, 0
        %v265 = vsel %vm248, %v203, 0
        %v268 = vsel %vm248, %v204, 0
        %v271 = vsel %vm248, %v205, 0
        %v274 = vsel %vm248, %v206, 0
        %v277 = vsel %vm248, %v207, 0
        %v280 = vsel %vm248, %v208, 0
        %v283 = vsel %vm248, %v209, 0
        %v286 = vsel %vm248, %v210, 0
        %v289 = vsel %vm248, %v211, 0
        %v292 = vsel %vm248, %v212, 0
        %v295 = vsel %vm248, %v213, 0
        %v298 = vsel %vm248, %v214, 0
        %v301 = vsel %vm248, %v215, 0
        %v304 = vsel %vm248, %v216, 0
        %v307 = vsel %vm248, %v217, 0
        %v310 = vsel %vm248, %v218, 0
        %v313 = vsel %vm248, %v219, 0
        %v316 = vsel %vm248, %v220, 0
        %v319 = vsel %vm248, %v221, 0
        %v322 = vsel %vm248, %v222, 0
        %v325 = vsel %vm248, %v223, 0
        %v328 = vsel %vm248, %v224, 0
        %v331 = vsel %vm248, %v225, 0
        %v334 = vsel %vm248, %v226, 0
        %v337 = vsel %vm248, %v227, 0
        %v340 = vsel %vm248, %v228, 0
        %v343 = vsel %vm248, %v229, 0
        %v346 = vsel %vm248, %v230, 0
        %v349 = vsel %vm248, %v231, 0
        %v352 = vsel %vm248, %v232, 0
        %v355 = vsel %vm248, %v233, 0
        %v358 = vsel %vm248, %v234, 0
        %v361 = vsel %vm248, %v235, 0
        %v364 = vsel %vm248, %v236, 0
        %v367 = vsel %vm248, %v237, 0
        %v370 = vsel %vm248, %v238, 0
        %v373 = vsel %vm248, %v239, 0
        %v376 = vsel %vm248, %v240, 0
        %v379 = vsel %vm248, %v241, 0
        %v382 = vsel %vm248, %v242, 0
        %v385 = vsel %vm248, %v243, 0
        %v388 = vsel %vm248, %v244, 0
        %v391 = vsel %vm248, %v245, 0
        %vm393 = vcmask 1043456
        %v394 = vsel %vm393, %v197, 0
        %v396 = vsel %vm393, %v247, 0
        %398 = vmatprep.subr.mxu0 0.0
        %399 = vmatpush1.msra.mxu0 0.0
        %400 = vmatprep.subr.mxu0 0.0
        %401 = vmatpush1.msra.mxu0 0.0
        %402 = vmatprep.subr.mxu0 0.0
        %403 = vmatpush1.msra.mxu0 0.0
        %404 = vmatprep.subr.mxu0 0.0
        %405 = vmatpush1.msra.mxu0 0.0
        %406 = vmatprep.subr.mxu0 0.0
        %407 = vmatpush1.msra.mxu0 0.0
        %408 = vmatprep.subr.mxu0 0.0
        %409 = vmatpush1.msra.mxu0 0.0
        %410 = vmatprep.subr.mxu0 0.0
        %411 = vmatpush1.msra.mxu0 0.0
        %412 = vmatprep.subr.mxu0 0.0
        %413 = vmatpush1.msra.mxu0 0.0
        %414 = vmatprep.subr.mxu0 0.0
        %415 = vmatpush1.msra.mxu0 0.0
        %416 = vmatprep.subr.mxu0 0.0
        %417 = vmatpush1.msra.mxu0 0.0
        %418 = vmatprep.subr.mxu0 0.0
        %419 = vmatpush1.msra.mxu0 0.0
        %420 = vmatprep.subr.mxu0 0.0
        %421 = vmatpush1.msra.mxu0 0.0
        %422 = vmatprep.subr.mxu0 0.0
        %423 = vmatpush1.msra.mxu0 0.0
        %424 = vmatprep.subr.mxu0 0.0
        %425 = vmatpush1.msra.mxu0 0.0
        %426 = vmatprep.subr.mxu0 0.0
        %427 = vmatpush1.msra.mxu0 0.0
        %428 = vmatprep.subr.mxu0 %v396
        %429 = vmatpush1.msra.mxu0 %v394
        %430 = vmatprep.subr.mxu0 0.0
        %431 = vmatpush2.msra.mxu0 0.0
        %432 = vmatprep.subr.mxu0 0.0
        %433 = vmatpush2.msra.mxu0 0.0
        %434 = vmatprep.subr.mxu0 0.0
        %435 = vmatpush2.msra.mxu0 0.0
        %436 = vmatprep.subr.mxu0 0.0
        %437 = vmatpush2.msra.mxu0 0.0
        %438 = vmatprep.subr.mxu0 0.0
        %439 = vmatpush2.msra.mxu0 0.0
        %440 = vmatprep.subr.mxu0 0.0
        %441 = vmatpush2.msra.mxu0 0.0
        %442 = vmatprep.subr.mxu0 0.0
        %443 = vmatpush2.msra.mxu0 0.0
        %444 = vmatprep.subr.mxu0 0.0
        %445 = vmatpush2.msra.mxu0 0.0
        %446 = vmatprep.subr.mxu0 0.0
        %447 = vmatpush2.msra.mxu0 0.0
        %448 = vmatprep.subr.mxu0 0.0
        %449 = vmatpush2.msra.mxu0 0.0
        %450 = vmatprep.subr.mxu0 0.0
        %451 = vmatpush2.msra.mxu0 0.0
        %452 = vmatprep.subr.mxu0 0.0
        %453 = vmatpush2.msra.mxu0 0.0
        %454 = vmatprep.subr.mxu0 0.0
        %455 = vmatpush2.msra.mxu0 0.0
        %456 = vmatprep.subr.mxu0 0.0
        %457 = vmatpush2.msra.mxu0 0.0
        %458 = vmatprep.subr.mxu0 0.0
        %459 = vmatpush2.msra.mxu0 0.0
        %460 = vmatprep.subr.mxu0 0.0
        %461 = vmatpush2.msra.mxu0 0.0
        %462 = vmatprep.mubr.f32.mxu0 0.0
        %463 = vmatmul.mubr.f32.gmra.mxu0 %v250
        %v464 = vpop.f32.mrf.mxu0
        %v465 = vadd.f32 0.0, %v464
        %v466 = vpop.f32.mrf.mxu0
        %v467 = vadd.f32 0.0, %v466
        %468 = vmatprep.mubr.f32.mxu0 0.0
        %469 = vmatmul.mubr.f32.gmra.mxu0 %v253
        %v470 = vpop.f32.mrf.mxu0
        %v471 = vadd.f32 0.0, %v470
        %v472 = vpop.f32.mrf.mxu0
        %v473 = vadd.f32 0.0, %v472
        %474 = vmatprep.mubr.f32.mxu0 0.0
        %475 = vmatmul.mubr.f32.gmra.mxu0 %v256
        %v476 = vpop.f32.mrf.mxu0
        %v477 = vadd.f32 0.0, %v476
        %v478 = vpop.f32.mrf.mxu0
        %v479 = vadd.f32 0.0, %v478
        %480 = vmatprep.mubr.f32.mxu0 0.0
        %481 = vmatmul.mubr.f32.gmra.mxu0 %v259
        %v482 = vpop.f32.mrf.mxu0
        %v483 = vadd.f32 0.0, %v482
        %v484 = vpop.f32.mrf.mxu0
        %v485 = vadd.f32 0.0, %v484
        %486 = vmatprep.mubr.f32.mxu0 0.0
        %487 = vmatmul.mubr.f32.gmra.mxu0 %v262
        %v488 = vpop.f32.mrf.mxu0
        %v489 = vadd.f32 0.0, %v488
        %v490 = vpop.f32.mrf.mxu0
        %v491 = vadd.f32 0.0, %v490
        %492 = vmatprep.mubr.f32.mxu0 0.0
        %493 = vmatmul.mubr.f32.gmra.mxu0 %v265
        %v494 = vpop.f32.mrf.mxu0
        %v495 = vadd.f32 0.0, %v494
        %v496 = vpop.f32.mrf.mxu0
        %v497 = vadd.f32 0.0, %v496
        %498 = vmatprep.mubr.f32.mxu0 0.0
        %499 = vmatmul.mubr.f32.gmra.mxu0 %v268
        %v500 = vpop.f32.mrf.mxu0
        %v501 = vadd.f32 0.0, %v500
        %v502 = vpop.f32.mrf.mxu0
        %v503 = vadd.f32 0.0, %v502
        %504 = vmatprep.mubr.f32.mxu0 0.0
        %505 = vmatmul.mubr.f32.gmra.mxu0 %v271
        %v506 = vpop.f32.mrf.mxu0
        %v507 = vadd.f32 0.0, %v506
        %v508 = vpop.f32.mrf.mxu0
        %v509 = vadd.f32 0.0, %v508
        %510 = vmatprep.mubr.f32.mxu0 0.0
        %511 = vmatmul.mubr.f32.gmra.mxu0 %v274
        %v512 = vpop.f32.mrf.mxu0
        %v513 = vadd.f32 0.0, %v512
        %v514 = vpop.f32.mrf.mxu0
        %v515 = vadd.f32 0.0, %v514
        %516 = vmatprep.mubr.f32.mxu0 0.0
        %517 = vmatmul.mubr.f32.gmra.mxu0 %v277
        %v518 = vpop.f32.mrf.mxu0
        %v519 = vadd.f32 0.0, %v518
        %v520 = vpop.f32.mrf.mxu0
        %v521 = vadd.f32 0.0, %v520
        %522 = vmatprep.mubr.f32.mxu0 0.0
        %523 = vmatmul.mubr.f32.gmra.mxu0 %v280
        %v524 = vpop.f32.mrf.mxu0
        %v525 = vadd.f32 0.0, %v524
        %v526 = vpop.f32.mrf.mxu0
        %v527 = vadd.f32 0.0, %v526
        %528 = vmatprep.mubr.f32.mxu0 0.0
        %529 = vmatmul.mubr.f32.gmra.mxu0 %v283
        %v530 = vpop.f32.mrf.mxu0
        %v531 = vadd.f32 0.0, %v530
        %v532 = vpop.f32.mrf.mxu0
        %v533 = vadd.f32 0.0, %v532
        %534 = vmatprep.mubr.f32.mxu0 0.0
        %535 = vmatmul.mubr.f32.gmra.mxu0 %v286
        %v536 = vpop.f32.mrf.mxu0
        %v537 = vadd.f32 0.0, %v536
        %v538 = vpop.f32.mrf.mxu0
        %v539 = vadd.f32 0.0, %v538
        %540 = vmatprep.mubr.f32.mxu0 0.0
        %541 = vmatmul.mubr.f32.gmra.mxu0 %v289
        %v542 = vpop.f32.mrf.mxu0
        %v543 = vadd.f32 0.0, %v542
        %v544 = vpop.f32.mrf.mxu0
        %v545 = vadd.f32 0.0, %v544
        %546 = vmatprep.mubr.f32.mxu0 0.0
        %547 = vmatmul.mubr.f32.gmra.mxu0 %v292
        %v548 = vpop.f32.mrf.mxu0
        %v549 = vadd.f32 0.0, %v548
        %v550 = vpop.f32.mrf.mxu0
        %v551 = vadd.f32 0.0, %v550
        %552 = vmatprep.mubr.f32.mxu0 0.0
        %553 = vmatmul.mubr.f32.gmra.mxu0 %v295
        %v554 = vpop.f32.mrf.mxu0
        %v555 = vadd.f32 0.0, %v554
        %v556 = vpop.f32.mrf.mxu0
        %v557 = vadd.f32 0.0, %v556
        %558 = vmatprep.mubr.f32.mxu0 0.0
        %559 = vmatmul.mubr.f32.gmra.mxu0 %v298
        %v560 = vpop.f32.mrf.mxu0
        %v561 = vadd.f32 0.0, %v560
        %v562 = vpop.f32.mrf.mxu0
        %v563 = vadd.f32 0.0, %v562
        %564 = vmatprep.mubr.f32.mxu0 0.0
        %565 = vmatmul.mubr.f32.gmra.mxu0 %v301
        %v566 = vpop.f32.mrf.mxu0
        %v567 = vadd.f32 0.0, %v566
        %v568 = vpop.f32.mrf.mxu0
        %v569 = vadd.f32 0.0, %v568
        %570 = vmatprep.mubr.f32.mxu0 0.0
        %571 = vmatmul.mubr.f32.gmra.mxu0 %v304
        %v572 = vpop.f32.mrf.mxu0
        %v573 = vadd.f32 0.0, %v572
        %v574 = vpop.f32.mrf.mxu0
        %v575 = vadd.f32 0.0, %v574
        %576 = vmatprep.mubr.f32.mxu0 0.0
        %577 = vmatmul.mubr.f32.gmra.mxu0 %v307
        %v578 = vpop.f32.mrf.mxu0
        %v579 = vadd.f32 0.0, %v578
        %v580 = vpop.f32.mrf.mxu0
        %v581 = vadd.f32 0.0, %v580
        %582 = vmatprep.mubr.f32.mxu0 0.0
        %583 = vmatmul.mubr.f32.gmra.mxu0 %v310
        %v584 = vpop.f32.mrf.mxu0
        %v585 = vadd.f32 0.0, %v584
        %v586 = vpop.f32.mrf.mxu0
        %v587 = vadd.f32 0.0, %v586
        %588 = vmatprep.mubr.f32.mxu0 0.0
        %589 = vmatmul.mubr.f32.gmra.mxu0 %v313
        %v590 = vpop.f32.mrf.mxu0
        %v591 = vadd.f32 0.0, %v590
        %v592 = vpop.f32.mrf.mxu0
        %v593 = vadd.f32 0.0, %v592
        %594 = vmatprep.mubr.f32.mxu0 0.0
        %595 = vmatmul.mubr.f32.gmra.mxu0 %v316
        %v596 = vpop.f32.mrf.mxu0
        %v597 = vadd.f32 0.0, %v596
        %v598 = vpop.f32.mrf.mxu0
        %v599 = vadd.f32 0.0, %v598
        %600 = vmatprep.mubr.f32.mxu0 0.0
        %601 = vmatmul.mubr.f32.gmra.mxu0 %v319
        %v602 = vpop.f32.mrf.mxu0
        %v603 = vadd.f32 0.0, %v602
        %v604 = vpop.f32.mrf.mxu0
        %v605 = vadd.f32 0.0, %v604
        %606 = vmatprep.mubr.f32.mxu0 0.0
        %607 = vmatmul.mubr.f32.gmra.mxu0 %v322
        %v608 = vpop.f32.mrf.mxu0
        %v609 = vadd.f32 0.0, %v608
        %v610 = vpop.f32.mrf.mxu0
        %v611 = vadd.f32 0.0, %v610
        %612 = vmatprep.mubr.f32.mxu0 0.0
        %613 = vmatmul.mubr.f32.gmra.mxu0 %v325
        %v614 = vpop.f32.mrf.mxu0
        %v615 = vadd.f32 0.0, %v614
        %v616 = vpop.f32.mrf.mxu0
        %v617 = vadd.f32 0.0, %v616
        %618 = vmatprep.mubr.f32.mxu0 0.0
        %619 = vmatmul.mubr.f32.gmra.mxu0 %v328
        %v620 = vpop.f32.mrf.mxu0
        %v621 = vadd.f32 0.0, %v620
        %v622 = vpop.f32.mrf.mxu0
        %v623 = vadd.f32 0.0, %v622
        %624 = vmatprep.mubr.f32.mxu0 0.0
        %625 = vmatmul.mubr.f32.gmra.mxu0 %v331
        %v626 = vpop.f32.mrf.mxu0
        %v627 = vadd.f32 0.0, %v626
        %v628 = vpop.f32.mrf.mxu0
        %v629 = vadd.f32 0.0, %v628
        %630 = vmatprep.mubr.f32.mxu0 0.0
        %631 = vmatmul.mubr.f32.gmra.mxu0 %v334
        %v632 = vpop.f32.mrf.mxu0
        %v633 = vadd.f32 0.0, %v632
        %v634 = vpop.f32.mrf.mxu0
        %v635 = vadd.f32 0.0, %v634
        %636 = vmatprep.mubr.f32.mxu0 0.0
        %637 = vmatmul.mubr.f32.gmra.mxu0 %v337
        %v638 = vpop.f32.mrf.mxu0
        %v639 = vadd.f32 0.0, %v638
        %v640 = vpop.f32.mrf.mxu0
        %v641 = vadd.f32 0.0, %v640
        %642 = vmatprep.mubr.f32.mxu0 0.0
        %643 = vmatmul.mubr.f32.gmra.mxu0 %v340
        %v644 = vpop.f32.mrf.mxu0
        %v645 = vadd.f32 0.0, %v644
        %v646 = vpop.f32.mrf.mxu0
        %v647 = vadd.f32 0.0, %v646
        %648 = vmatprep.mubr.f32.mxu0 0.0
        %649 = vmatmul.mubr.f32.gmra.mxu0 %v343
        %v650 = vpop.f32.mrf.mxu0
        %v651 = vadd.f32 0.0, %v650
        %v652 = vpop.f32.mrf.mxu0
        %v653 = vadd.f32 0.0, %v652
        %654 = vmatprep.mubr.f32.mxu0 0.0
        %655 = vmatmul.mubr.f32.gmra.mxu0 %v346
        %v656 = vpop.f32.mrf.mxu0
        %v657 = vadd.f32 0.0, %v656
        %v658 = vpop.f32.mrf.mxu0
        %v659 = vadd.f32 0.0, %v658
        %660 = vmatprep.mubr.f32.mxu0 0.0
        %661 = vmatmul.mubr.f32.gmra.mxu0 %v349
        %v662 = vpop.f32.mrf.mxu0
        %v663 = vadd.f32 0.0, %v662
        %v664 = vpop.f32.mrf.mxu0
        %v665 = vadd.f32 0.0, %v664
        %666 = vmatprep.mubr.f32.mxu0 0.0
        %667 = vmatmul.mubr.f32.gmra.mxu0 %v352
        %v668 = vpop.f32.mrf.mxu0
        %v669 = vadd.f32 0.0, %v668
        %v670 = vpop.f32.mrf.mxu0
        %v671 = vadd.f32 0.0, %v670
        %672 = vmatprep.mubr.f32.mxu0 0.0
        %673 = vmatmul.mubr.f32.gmra.mxu0 %v355
        %v674 = vpop.f32.mrf.mxu0
        %v675 = vadd.f32 0.0, %v674
        %v676 = vpop.f32.mrf.mxu0
        %v677 = vadd.f32 0.0, %v676
        %678 = vmatprep.mubr.f32.mxu0 0.0
        %679 = vmatmul.mubr.f32.gmra.mxu0 %v358
        %v680 = vpop.f32.mrf.mxu0
        %v681 = vadd.f32 0.0, %v680
        %v682 = vpop.f32.mrf.mxu0
        %v683 = vadd.f32 0.0, %v682
        %684 = vmatprep.mubr.f32.mxu0 0.0
        %685 = vmatmul.mubr.f32.gmra.mxu0 %v361
        %v686 = vpop.f32.mrf.mxu0
        %v687 = vadd.f32 0.0, %v686
        %v688 = vpop.f32.mrf.mxu0
        %v689 = vadd.f32 0.0, %v688
        %690 = vmatprep.mubr.f32.mxu0 0.0
        %691 = vmatmul.mubr.f32.gmra.mxu0 %v364
        %v692 = vpop.f32.mrf.mxu0
        %v693 = vadd.f32 0.0, %v692
        %v694 = vpop.f32.mrf.mxu0
        %v695 = vadd.f32 0.0, %v694
        %696 = vmatprep.mubr.f32.mxu0 0.0
        %697 = vmatmul.mubr.f32.gmra.mxu0 %v367
        %v698 = vpop.f32.mrf.mxu0
        %v699 = vadd.f32 0.0, %v698
        %v700 = vpop.f32.mrf.mxu0
        %v701 = vadd.f32 0.0, %v700
        %702 = vmatprep.mubr.f32.mxu0 0.0
        %703 = vmatmul.mubr.f32.gmra.mxu0 %v370
        %v704 = vpop.f32.mrf.mxu0
        %v705 = vadd.f32 0.0, %v704
        %v706 = vpop.f32.mrf.mxu0
        %v707 = vadd.f32 0.0, %v706
        %708 = vmatprep.mubr.f32.mxu0 0.0
        %709 = vmatmul.mubr.f32.gmra.mxu0 %v373
        %v710 = vpop.f32.mrf.mxu0
        %v711 = vadd.f32 0.0, %v710
        %v712 = vpop.f32.mrf.mxu0
        %v713 = vadd.f32 0.0, %v712
        %714 = vmatprep.mubr.f32.mxu0 0.0
        %715 = vmatmul.mubr.f32.gmra.mxu0 %v376
        %v716 = vpop.f32.mrf.mxu0
        %v717 = vadd.f32 0.0, %v716
        %v718 = vpop.f32.mrf.mxu0
        %v719 = vadd.f32 0.0, %v718
        %720 = vmatprep.mubr.f32.mxu0 0.0
        %721 = vmatmul.mubr.f32.gmra.mxu0 %v379
        %v722 = vpop.f32.mrf.mxu0
        %v723 = vadd.f32 0.0, %v722
        %v724 = vpop.f32.mrf.mxu0
        %v725 = vadd.f32 0.0, %v724
        %726 = vmatprep.mubr.f32.mxu0 0.0
        %727 = vmatmul.mubr.f32.gmra.mxu0 %v382
        %v728 = vpop.f32.mrf.mxu0
        %v729 = vadd.f32 0.0, %v728
        %v730 = vpop.f32.mrf.mxu0
        %v731 = vadd.f32 0.0, %v730
        %732 = vmatprep.mubr.f32.mxu0 0.0
        %733 = vmatmul.mubr.f32.gmra.mxu0 %v385
        %v734 = vpop.f32.mrf.mxu0
        %v735 = vadd.f32 0.0, %v734
        %v736 = vpop.f32.mrf.mxu0
        %v737 = vadd.f32 0.0, %v736
        %738 = vmatprep.mubr.f32.mxu0 0.0
        %739 = vmatmul.mubr.f32.gmra.mxu0 %v388
        %v740 = vpop.f32.mrf.mxu0
        %v741 = vadd.f32 0.0, %v740
        %v742 = vpop.f32.mrf.mxu0
        %v743 = vadd.f32 0.0, %v742
        %744 = vmatprep.mubr.f32.mxu0 0.0
        %745 = vmatmul.mubr.f32.gmra.mxu0 %v391
        %v746 = vpop.f32.mrf.mxu0
        %v747 = vadd.f32 0.0, %v746
        %v748 = vpop.f32.mrf.mxu0
        %v749 = vadd.f32 0.0, %v748
        %750 = vdwg.mxu0
        %v751 = vpack.c.bf16 %v471, %v465
        %v752 = vpack.c.bf16 %v473, %v467
        %v753 = vpack.c.bf16 %v483, %v477
        %v754 = vpack.c.bf16 %v485, %v479
        %v755 = vpack.c.bf16 %v495, %v489
        %v756 = vpack.c.bf16 %v497, %v491
        %v757 = vpack.c.bf16 %v507, %v501
        %v758 = vpack.c.bf16 %v509, %v503
        %v759 = vpack.c.bf16 %v519, %v513
        %v760 = vpack.c.bf16 %v521, %v515
        %v761 = vpack.c.bf16 %v531, %v525
        %v762 = vpack.c.bf16 %v533, %v527
        %v763 = vpack.c.bf16 %v543, %v537
        %v764 = vpack.c.bf16 %v545, %v539
        %v765 = vpack.c.bf16 %v555, %v549
        %v766 = vpack.c.bf16 %v557, %v551
        %v767 = vpack.c.bf16 %v567, %v561
        %v768 = vpack.c.bf16 %v569, %v563
        %v769 = vpack.c.bf16 %v579, %v573
        %v770 = vpack.c.bf16 %v581, %v575
        %v771 = vpack.c.bf16 %v591, %v585
        %v772 = vpack.c.bf16 %v593, %v587
        %v773 = vpack.c.bf16 %v603, %v597
        %v774 = vpack.c.bf16 %v605, %v599
        %v775 = vpack.c.bf16 %v615, %v609
        %v776 = vpack.c.bf16 %v617, %v611
        %v777 = vpack.c.bf16 %v627, %v621
        %v778 = vpack.c.bf16 %v629, %v623
        %v779 = vpack.c.bf16 %v639, %v633
        %v780 = vpack.c.bf16 %v641, %v635
        %v781 = vpack.c.bf16 %v651, %v645
        %v782 = vpack.c.bf16 %v653, %v647
        %v783 = vpack.c.bf16 %v663, %v657
        %v784 = vpack.c.bf16 %v665, %v659
        %v785 = vpack.c.bf16 %v675, %v669
        %v786 = vpack.c.bf16 %v677, %v671
        %v787 = vpack.c.bf16 %v687, %v681
        %v788 = vpack.c.bf16 %v689, %v683
        %v789 = vpack.c.bf16 %v699, %v693
        %v790 = vpack.c.bf16 %v701, %v695
        %v791 = vpack.c.bf16 %v711, %v705
        %v792 = vpack.c.bf16 %v713, %v707
        %v793 = vpack.c.bf16 %v723, %v717
        %v794 = vpack.c.bf16 %v725, %v719
        %v795 = vpack.c.bf16 %v735, %v729
        %v796 = vpack.c.bf16 %v737, %v731
        %v797 = vpack.c.bf16 %v747, %v741
        %v798 = vpack.c.bf16 %v749, %v743
        %799 = vxpose.xlu0.c.b16.start [1/8] %v751, 128
        %800 = vxpose.xlu0.c.b16.cont [2/8] %v753, 128
        %801 = vxpose.xlu0.c.b16.cont [3/8] 0, 128
        %802 = vxpose.xlu0.c.b16.cont [4/8] 0, 128
        %803 = vxpose.xlu0.c.b16.cont [5/8] 0, 128
        %804 = vxpose.xlu0.c.b16.cont [6/8] 0, 128
        %805 = vxpose.xlu0.c.b16.cont [7/8] 0, 128
        %806 = vxpose.xlu0.c.b16.end [8/8] 0, 128
        %v807 = vpop.trf.xlu0
        %v808 = vpop.trf.xlu0
        %v809 = vpop.trf.xlu0
        %v810 = vpop.trf.xlu0
        %v811 = vpop.trf.xlu0
        %v812 = vpop.trf.xlu0
        %v813 = vpop.trf.xlu0
        %v814 = vpop.trf.xlu0
        %815 = vxpose.xlu0.c.b16.start [1/8] %v752, 128
        %816 = vxpose.xlu0.c.b16.cont [2/8] %v754, 128
        %817 = vxpose.xlu0.c.b16.cont [3/8] 0, 128
        %818 = vxpose.xlu0.c.b16.cont [4/8] 0, 128
        %819 = vxpose.xlu0.c.b16.cont [5/8] 0, 128
        %820 = vxpose.xlu0.c.b16.cont [6/8] 0, 128
        %821 = vxpose.xlu0.c.b16.cont [7/8] 0, 128
        %822 = vxpose.xlu0.c.b16.end [8/8] 0, 128
        %v823 = vpop.trf.xlu0
        %v824 = vpop.trf.xlu0
        %v825 = vpop.trf.xlu0
        %v826 = vpop.trf.xlu0
        %v827 = vpop.trf.xlu0
        %v828 = vpop.trf.xlu0
        %v829 = vpop.trf.xlu0
        %v830 = vpop.trf.xlu0
        %vm831 = vcmask 261120
        %v833 = vsel %vm831, %v807, 0
        %v836 = vsel %vm831, %v808, 0
        %v839 = vsel %vm831, %v809, 0
        %v842 = vsel %vm831, %v810, 0
        %v845 = vsel %vm831, %v811, 0
        %v848 = vsel %vm831, %v812, 0
        %v851 = vsel %vm831, %v813, 0
        %v854 = vsel %vm831, %v814, 0
        %v857 = vsel %vm831, %v823, 0
        %v860 = vsel %vm831, %v824, 0
        %v863 = vsel %vm831, %v825, 0
        %v866 = vsel %vm831, %v826, 0
        %v869 = vsel %vm831, %v827, 0
        %v872 = vsel %vm831, %v828, 0
        %v875 = vsel %vm831, %v829, 0
        %v878 = vsel %vm831, %v830, 0
        %880 = vmatprep.subr.bf16.mxu0 0
        %881 = vmatpush1.bf16.msra.mxu0 0
        %882 = vmatprep.subr.bf16.mxu0 0
        %883 = vmatpush1.bf16.msra.mxu0 0
        %884 = vmatprep.subr.bf16.mxu0 0
        %885 = vmatpush1.bf16.msra.mxu0 0
        %886 = vmatprep.subr.bf16.mxu0 0
        %887 = vmatpush1.bf16.msra.mxu0 0
        %888 = vmatprep.subr.bf16.mxu0 0
        %889 = vmatpush1.bf16.msra.mxu0 0
        %890 = vmatprep.subr.bf16.mxu0 0
        %891 = vmatpush1.bf16.msra.mxu0 0
        %892 = vmatprep.subr.bf16.mxu0 %v770
        %893 = vmatpush1.bf16.msra.mxu0 %v769
        %894 = vmatprep.subr.bf16.mxu0 %v768
        %895 = vmatpush1.bf16.msra.mxu0 %v767
        %896 = vmatprep.subr.bf16.mxu0 0
        %897 = vmatpush2.bf16.msra.mxu0 0
        %898 = vmatprep.subr.bf16.mxu0 0
        %899 = vmatpush2.bf16.msra.mxu0 0
        %900 = vmatprep.subr.bf16.mxu0 0
        %901 = vmatpush2.bf16.msra.mxu0 0
        %902 = vmatprep.subr.bf16.mxu0 0
        %903 = vmatpush2.bf16.msra.mxu0 0
        %904 = vmatprep.subr.bf16.mxu0 0
        %905 = vmatpush2.bf16.msra.mxu0 0
        %906 = vmatprep.subr.bf16.mxu0 0
        %907 = vmatpush2.bf16.msra.mxu0 0
        %908 = vmatprep.subr.bf16.mxu0 0
        %909 = vmatpush2.bf16.msra.mxu0 0
        %910 = vmatprep.subr.bf16.mxu0 0
        %911 = vmatpush2.bf16.msra.mxu0 0
        %912 = vmatprep.mubr.bf16.mxu0 0
        %913 = vmatmul.mubr.bf16.gmra.mxu0 %v833
        %v914 = vpop.f32.mrf.mxu0
        %v915 = vadd.f32 0.0, %v914
        %v916 = vpop.f32.mrf.mxu0
        %v917 = vadd.f32 0.0, %v916
        %v918 = vpop.f32.mrf.mxu0
        %v919 = vadd.f32 0.0, %v918
        %v920 = vpop.f32.mrf.mxu0
        %v921 = vadd.f32 0.0, %v920
        %922 = vmatprep.mubr.bf16.mxu0 0
        %923 = vmatmul.mubr.bf16.gmra.mxu0 %v836
        %v924 = vpop.f32.mrf.mxu0
        %v925 = vadd.f32 0.0, %v924
        %v926 = vpop.f32.mrf.mxu0
        %v927 = vadd.f32 0.0, %v926
        %v928 = vpop.f32.mrf.mxu0
        %v929 = vadd.f32 0.0, %v928
        %v930 = vpop.f32.mrf.mxu0
        %v931 = vadd.f32 0.0, %v930
        %932 = vmatprep.mubr.bf16.mxu0 0
        %933 = vmatmul.mubr.bf16.gmra.mxu0 %v839
        %v934 = vpop.f32.mrf.mxu0
        %v935 = vadd.f32 0.0, %v934
        %v936 = vpop.f32.mrf.mxu0
        %v937 = vadd.f32 0.0, %v936
        %v938 = vpop.f32.mrf.mxu0
        %v939 = vadd.f32 0.0, %v938
        %v940 = vpop.f32.mrf.mxu0
        %v941 = vadd.f32 0.0, %v940
        %942 = vmatprep.mubr.bf16.mxu0 0
        %943 = vmatmul.mubr.bf16.gmra.mxu0 %v842
        %v944 = vpop.f32.mrf.mxu0
        %v945 = vadd.f32 0.0, %v944
        %v946 = vpop.f32.mrf.mxu0
        %v947 = vadd.f32 0.0, %v946
        %v948 = vpop.f32.mrf.mxu0
        %v949 = vadd.f32 0.0, %v948
        %v950 = vpop.f32.mrf.mxu0
        %v951 = vadd.f32 0.0, %v950
        %952 = vmatprep.mubr.bf16.mxu0 0
        %953 = vmatmul.mubr.bf16.gmra.mxu0 %v845
        %v954 = vpop.f32.mrf.mxu0
        %v955 = vadd.f32 0.0, %v954
        %v956 = vpop.f32.mrf.mxu0
        %v957 = vadd.f32 0.0, %v956
        %v958 = vpop.f32.mrf.mxu0
        %v959 = vadd.f32 0.0, %v958
        %v960 = vpop.f32.mrf.mxu0
        %v961 = vadd.f32 0.0, %v960
        %962 = vmatprep.mubr.bf16.mxu0 0
        %963 = vmatmul.mubr.bf16.gmra.mxu0 %v848
        %v964 = vpop.f32.mrf.mxu0
        %v965 = vadd.f32 0.0, %v964
        %v966 = vpop.f32.mrf.mxu0
        %v967 = vadd.f32 0.0, %v966
        %v968 = vpop.f32.mrf.mxu0
        %v969 = vadd.f32 0.0, %v968
        %v970 = vpop.f32.mrf.mxu0
        %v971 = vadd.f32 0.0, %v970
        %972 = vmatprep.mubr.bf16.mxu0 0
        %973 = vmatmul.mubr.bf16.gmra.mxu0 %v851
        %v974 = vpop.f32.mrf.mxu0
        %v975 = vadd.f32 0.0, %v974
        %v976 = vpop.f32.mrf.mxu0
        %v977 = vadd.f32 0.0, %v976
        %v978 = vpop.f32.mrf.mxu0
        %v979 = vadd.f32 0.0, %v978
        %v980 = vpop.f32.mrf.mxu0
        %v981 = vadd.f32 0.0, %v980
        %982 = vmatprep.mubr.bf16.mxu0 0
        %983 = vmatmul.mubr.bf16.gmra.mxu0 %v854
        %v984 = vpop.f32.mrf.mxu0
        %v985 = vadd.f32 0.0, %v984
        %v986 = vpop.f32.mrf.mxu0
        %v987 = vadd.f32 0.0, %v986
        %v988 = vpop.f32.mrf.mxu0
        %v989 = vadd.f32 0.0, %v988
        %v990 = vpop.f32.mrf.mxu0
        %v991 = vadd.f32 0.0, %v990
        %992 = vmatprep.mubr.bf16.mxu0 0
        %993 = vmatmul.mubr.bf16.gmra.mxu0 %v857
        %v994 = vpop.f32.mrf.mxu0
        %v995 = vadd.f32 0.0, %v994
        %v996 = vpop.f32.mrf.mxu0
        %v997 = vadd.f32 0.0, %v996
        %v998 = vpop.f32.mrf.mxu0
        %v999 = vadd.f32 0.0, %v998
        %v1000 = vpop.f32.mrf.mxu0
        %v1001 = vadd.f32 0.0, %v1000
        %1002 = vmatprep.mubr.bf16.mxu0 0
        %1003 = vmatmul.mubr.bf16.gmra.mxu0 %v860
        %v1004 = vpop.f32.mrf.mxu0
        %v1005 = vadd.f32 0.0, %v1004
        %v1006 = vpop.f32.mrf.mxu0
        %v1007 = vadd.f32 0.0, %v1006
        %v1008 = vpop.f32.mrf.mxu0
        %v1009 = vadd.f32 0.0, %v1008
        %v1010 = vpop.f32.mrf.mxu0
        %v1011 = vadd.f32 0.0, %v1010
        %1012 = vmatprep.mubr.bf16.mxu0 0
        %1013 = vmatmul.mubr.bf16.gmra.mxu0 %v863
        %v1014 = vpop.f32.mrf.mxu0
        %v1015 = vadd.f32 0.0, %v1014
        %v1016 = vpop.f32.mrf.mxu0
        %v1017 = vadd.f32 0.0, %v1016
        %v1018 = vpop.f32.mrf.mxu0
        %v1019 = vadd.f32 0.0, %v1018
        %v1020 = vpop.f32.mrf.mxu0
        %v1021 = vadd.f32 0.0, %v1020
        %1022 = vmatprep.mubr.bf16.mxu0 0
        %1023 = vmatmul.mubr.bf16.gmra.mxu0 %v866
        %v1024 = vpop.f32.mrf.mxu0
        %v1025 = vadd.f32 0.0, %v1024
        %v1026 = vpop.f32.mrf.mxu0
        %v1027 = vadd.f32 0.0, %v1026
        %v1028 = vpop.f32.mrf.mxu0
        %v1029 = vadd.f32 0.0, %v1028
        %v1030 = vpop.f32.mrf.mxu0
        %v1031 = vadd.f32 0.0, %v1030
        %1032 = vmatprep.mubr.bf16.mxu0 0
        %1033 = vmatmul.mubr.bf16.gmra.mxu0 %v869
        %v1034 = vpop.f32.mrf.mxu0
        %v1035 = vadd.f32 0.0, %v1034
        %v1036 = vpop.f32.mrf.mxu0
        %v1037 = vadd.f32 0.0, %v1036
        %v1038 = vpop.f32.mrf.mxu0
        %v1039 = vadd.f32 0.0, %v1038
        %v1040 = vpop.f32.mrf.mxu0
        %v1041 = vadd.f32 0.0, %v1040
        %1042 = vmatprep.mubr.bf16.mxu0 0
        %1043 = vmatmul.mubr.bf16.gmra.mxu0 %v872
        %v1044 = vpop.f32.mrf.mxu0
        %v1045 = vadd.f32 0.0, %v1044
        %v1046 = vpop.f32.mrf.mxu0
        %v1047 = vadd.f32 0.0, %v1046
        %v1048 = vpop.f32.mrf.mxu0
        %v1049 = vadd.f32 0.0, %v1048
        %v1050 = vpop.f32.mrf.mxu0
        %v1051 = vadd.f32 0.0, %v1050
        %1052 = vmatprep.mubr.bf16.mxu0 0
        %1053 = vmatmul.mubr.bf16.gmra.mxu0 %v875
        %v1054 = vpop.f32.mrf.mxu0
        %v1055 = vadd.f32 0.0, %v1054
        %v1056 = vpop.f32.mrf.mxu0
        %v1057 = vadd.f32 0.0, %v1056
        %v1058 = vpop.f32.mrf.mxu0
        %v1059 = vadd.f32 0.0, %v1058
        %v1060 = vpop.f32.mrf.mxu0
        %v1061 = vadd.f32 0.0, %v1060
        %1062 = vmatprep.mubr.bf16.mxu0 0
        %1063 = vmatmul.mubr.bf16.gmra.mxu0 %v878
        %v1064 = vpop.f32.mrf.mxu0
        %v1065 = vadd.f32 0.0, %v1064
        %v1066 = vpop.f32.mrf.mxu0
        %v1067 = vadd.f32 0.0, %v1066
        %v1068 = vpop.f32.mrf.mxu0
        %v1069 = vadd.f32 0.0, %v1068
        %v1070 = vpop.f32.mrf.mxu0
        %v1071 = vadd.f32 0.0, %v1070
        %1072 = vdwg.mxu0
        %v1073 = vmax.f32 %v915, %v917
        %1074 = vmax.xlane.f32.xlu0 %v1073
        %v1075 = vpop.xlane.xlu0 %1074
        %v1076 = vmax.f32 %v919, %v921
        %1077 = vmax.xlane.f32.xlu0 %v1076
        %v1078 = vpop.xlane.xlu0 %1077
        %v1079 = vmax.f32 %v925, %v927
        %1080 = vmax.xlane.f32.xlu0 %v1079
        %v1081 = vpop.xlane.xlu0 %1080
        %v1082 = vmax.f32 %v929, %v931
        %1083 = vmax.xlane.f32.xlu0 %v1082
        %v1084 = vpop.xlane.xlu0 %1083
        %v1085 = vmax.f32 %v935, %v937
        %1086 = vmax.xlane.f32.xlu0 %v1085
        %v1087 = vpop.xlane.xlu0 %1086
        %v1088 = vmax.f32 %v939, %v941
        %1089 = vmax.xlane.f32.xlu0 %v1088
        %v1090 = vpop.xlane.xlu0 %1089
        %v1091 = vmax.f32 %v945, %v947
        %1092 = vmax.xlane.f32.xlu0 %v1091
        %v1093 = vpop.xlane.xlu0 %1092
        %v1094 = vmax.f32 %v949, %v951
        %1095 = vmax.xlane.f32.xlu0 %v1094
        %v1096 = vpop.xlane.xlu0 %1095
        %v1097 = vmax.f32 %v955, %v957
        %1098 = vmax.xlane.f32.xlu0 %v1097
        %v1099 = vpop.xlane.xlu0 %1098
        %v1100 = vmax.f32 %v959, %v961
        %1101 = vmax.xlane.f32.xlu0 %v1100
        %v1102 = vpop.xlane.xlu0 %1101
        %v1103 = vmax.f32 %v965, %v967
        %1104 = vmax.xlane.f32.xlu0 %v1103
        %v1105 = vpop.xlane.xlu0 %1104
        %v1106 = vmax.f32 %v969, %v971
        %1107 = vmax.xlane.f32.xlu0 %v1106
        %v1108 = vpop.xlane.xlu0 %1107
        %v1109 = vmax.f32 %v975, %v977
        %1110 = vmax.xlane.f32.xlu0 %v1109
        %v1111 = vpop.xlane.xlu0 %1110
        %v1112 = vmax.f32 %v979, %v981
        %1113 = vmax.xlane.f32.xlu0 %v1112
        %v1114 = vpop.xlane.xlu0 %1113
        %v1115 = vmax.f32 %v985, %v987
        %1116 = vmax.xlane.f32.xlu0 %v1115
        %v1117 = vpop.xlane.xlu0 %1116
        %v1118 = vmax.f32 %v989, %v991
        %1119 = vmax.xlane.f32.xlu0 %v1118
        %v1120 = vpop.xlane.xlu0 %1119
        %v1121 = vmax.f32 %v995, %v997
        %1122 = vmax.xlane.f32.xlu0 %v1121
        %v1123 = vpop.xlane.xlu0 %1122
        %v1124 = vmax.f32 %v999, %v1001
        %1125 = vmax.xlane.f32.xlu0 %v1124
        %v1126 = vpop.xlane.xlu0 %1125
        %v1127 = vmax.f32 %v1005, %v1007
        %1128 = vmax.xlane.f32.xlu0 %v1127
        %v1129 = vpop.xlane.xlu0 %1128
        %v1130 = vmax.f32 %v1009, %v1011
        %1131 = vmax.xlane.f32.xlu0 %v1130
        %v1132 = vpop.xlane.xlu0 %1131
        %v1133 = vmax.f32 %v1015, %v1017
        %1134 = vmax.xlane.f32.xlu0 %v1133
        %v1135 = vpop.xlane.xlu0 %1134
        %v1136 = vmax.f32 %v1019, %v1021
        %1137 = vmax.xlane.f32.xlu0 %v1136
        %v1138 = vpop.xlane.xlu0 %1137
        %v1139 = vmax.f32 %v1025, %v1027
        %1140 = vmax.xlane.f32.xlu0 %v1139
        %v1141 = vpop.xlane.xlu0 %1140
        %v1142 = vmax.f32 %v1029, %v1031
        %1143 = vmax.xlane.f32.xlu0 %v1142
        %v1144 = vpop.xlane.xlu0 %1143
        %v1145 = vmax.f32 %v1035, %v1037
        %1146 = vmax.xlane.f32.xlu0 %v1145
        %v1147 = vpop.xlane.xlu0 %1146
        %v1148 = vmax.f32 %v1039, %v1041
        %1149 = vmax.xlane.f32.xlu0 %v1148
        %v1150 = vpop.xlane.xlu0 %1149
        %v1151 = vmax.f32 %v1045, %v1047
        %1152 = vmax.xlane.f32.xlu0 %v1151
        %v1153 = vpop.xlane.xlu0 %1152
        %v1154 = vmax.f32 %v1049, %v1051
        %1155 = vmax.xlane.f32.xlu0 %v1154
        %v1156 = vpop.xlane.xlu0 %1155
        %v1157 = vmax.f32 %v1055, %v1057
        %1158 = vmax.xlane.f32.xlu0 %v1157
        %v1159 = vpop.xlane.xlu0 %1158
        %v1160 = vmax.f32 %v1059, %v1061
        %1161 = vmax.xlane.f32.xlu0 %v1160
        %v1162 = vpop.xlane.xlu0 %1161
        %v1163 = vmax.f32 %v1065, %v1067
        %1164 = vmax.xlane.f32.xlu0 %v1163
        %v1165 = vpop.xlane.xlu0 %1164
        %v1166 = vmax.f32 %v1069, %v1071
        %1167 = vmax.xlane.f32.xlu0 %v1166
        %v1168 = vpop.xlane.xlu0 %1167
        %v1169 = vsub.f32 %v915, %v1075
        %v1170 = vsub.f32 %v917, %v1075
        %v1171 = vsub.f32 %v919, %v1078
        %v1172 = vsub.f32 %v921, %v1078
        %v1173 = vsub.f32 %v925, %v1081
        %v1174 = vsub.f32 %v927, %v1081
        %v1175 = vsub.f32 %v929, %v1084
        %v1176 = vsub.f32 %v931, %v1084
        %v1177 = vsub.f32 %v935, %v1087
        %v1178 = vsub.f32 %v937, %v1087
        %v1179 = vsub.f32 %v939, %v1090
        %v1180 = vsub.f32 %v941, %v1090
        %v1181 = vsub.f32 %v945, %v1093
        %v1182 = vsub.f32 %v947, %v1093
        %v1183 = vsub.f32 %v949, %v1096
        %v1184 = vsub.f32 %v951, %v1096
        %v1185 = vsub.f32 %v955, %v1099
        %v1186 = vsub.f32 %v957, %v1099
        %v1187 = vsub.f32 %v959, %v1102
        %v1188 = vsub.f32 %v961, %v1102
        %v1189 = vsub.f32 %v965, %v1105
        %v1190 = vsub.f32 %v967, %v1105
        %v1191 = vsub.f32 %v969, %v1108
        %v1192 = vsub.f32 %v971, %v1108
        %v1193 = vsub.f32 %v975, %v1111
        %v1194 = vsub.f32 %v977, %v1111
        %v1195 = vsub.f32 %v979, %v1114
        %v1196 = vsub.f32 %v981, %v1114
        %v1197 = vsub.f32 %v985, %v1117
        %v1198 = vsub.f32 %v987, %v1117
        %v1199 = vsub.f32 %v989, %v1120
        %v1200 = vsub.f32 %v991, %v1120
        %v1201 = vsub.f32 %v995, %v1123
        %v1202 = vsub.f32 %v997, %v1123
        %v1203 = vsub.f32 %v999, %v1126
        %v1204 = vsub.f32 %v1001, %v1126
        %v1205 = vsub.f32 %v1005, %v1129
        %v1206 = vsub.f32 %v1007, %v1129
        %v1207 = vsub.f32 %v1009, %v1132
        %v1208 = vsub.f32 %v1011, %v1132
        %v1209 = vsub.f32 %v1015, %v1135
        %v1210 = vsub.f32 %v1017, %v1135
        %v1211 = vsub.f32 %v1019, %v1138
        %v1212 = vsub.f32 %v1021, %v1138
        %v1213 = vsub.f32 %v1025, %v1141
        %v1214 = vsub.f32 %v1027, %v1141
        %v1215 = vsub.f32 %v1029, %v1144
        %v1216 = vsub.f32 %v1031, %v1144
        %v1217 = vsub.f32 %v1035, %v1147
        %v1218 = vsub.f32 %v1037, %v1147
        %v1219 = vsub.f32 %v1039, %v1150
        %v1220 = vsub.f32 %v1041, %v1150
        %v1221 = vsub.f32 %v1045, %v1153
        %v1222 = vsub.f32 %v1047, %v1153
        %v1223 = vsub.f32 %v1049, %v1156
        %v1224 = vsub.f32 %v1051, %v1156
        %v1225 = vsub.f32 %v1055, %v1159
        %v1226 = vsub.f32 %v1057, %v1159
        %v1227 = vsub.f32 %v1059, %v1162
        %v1228 = vsub.f32 %v1061, %v1162
        %v1229 = vsub.f32 %v1065, %v1165
        %v1230 = vsub.f32 %v1067, %v1165
        %v1231 = vsub.f32 %v1069, %v1168
        %v1232 = vsub.f32 %v1071, %v1168
        %v1233 = vmul.f32 %v1169, 1.442695
        %v1234 = vpow.pop %v1233
        %v1235 = vmul.f32 %v1170, 1.442695
        %v1236 = vpow.pop %v1235
        %v1237 = vmul.f32 %v1171, 1.442695
        %v1238 = vpow.pop %v1237
        %v1239 = vmul.f32 %v1172, 1.442695
        %v1240 = vpow.pop %v1239
        %v1241 = vmul.f32 %v1173, 1.442695
        %v1242 = vpow.pop %v1241
        %v1243 = vmul.f32 %v1174, 1.442695
        %v1244 = vpow.pop %v1243
        %v1245 = vmul.f32 %v1175, 1.442695
        %v1246 = vpow.pop %v1245
        %v1247 = vmul.f32 %v1176, 1.442695
        %v1248 = vpow.pop %v1247
        %v1249 = vmul.f32 %v1177, 1.442695
        %v1250 = vpow.pop %v1249
        %v1251 = vmul.f32 %v1178, 1.442695
        %v1252 = vpow.pop %v1251
        %v1253 = vmul.f32 %v1179, 1.442695
        %v1254 = vpow.pop %v1253
        %v1255 = vmul.f32 %v1180, 1.442695
        %v1256 = vpow.pop %v1255
        %v1257 = vmul.f32 %v1181, 1.442695
        %v1258 = vpow.pop %v1257
        %v1259 = vmul.f32 %v1182, 1.442695
        %v1260 = vpow.pop %v1259
        %v1261 = vmul.f32 %v1183, 1.442695
        %v1262 = vpow.pop %v1261
        %v1263 = vmul.f32 %v1184, 1.442695
        %v1264 = vpow.pop %v1263
        %v1265 = vmul.f32 %v1185, 1.442695
        %v1266 = vpow.pop %v1265
        %v1267 = vmul.f32 %v1186, 1.442695
        %v1268 = vpow.pop %v1267
        %v1269 = vmul.f32 %v1187, 1.442695
        %v1270 = vpow.pop %v1269
        %v1271 = vmul.f32 %v1188, 1.442695
        %v1272 = vpow.pop %v1271
        %v1273 = vmul.f32 %v1189, 1.442695
        %v1274 = vpow.pop %v1273
        %v1275 = vmul.f32 %v1190, 1.442695
        %v1276 = vpow.pop %v1275
        %v1277 = vmul.f32 %v1191, 1.442695
        %v1278 = vpow.pop %v1277
        %v1279 = vmul.f32 %v1192, 1.442695
        %v1280 = vpow.pop %v1279
        %v1281 = vmul.f32 %v1193, 1.442695
        %v1282 = vpow.pop %v1281
        %v1283 = vmul.f32 %v1194, 1.442695
        %v1284 = vpow.pop %v1283
        %v1285 = vmul.f32 %v1195, 1.442695
        %v1286 = vpow.pop %v1285
        %v1287 = vmul.f32 %v1196, 1.442695
        %v1288 = vpow.pop %v1287
        %v1289 = vmul.f32 %v1197, 1.442695
        %v1290 = vpow.pop %v1289
        %v1291 = vmul.f32 %v1198, 1.442695
        %v1292 = vpow.pop %v1291
        %v1293 = vmul.f32 %v1199, 1.442695
        %v1294 = vpow.pop %v1293
        %v1295 = vmul.f32 %v1200, 1.442695
        %v1296 = vpow.pop %v1295
        %v1297 = vmul.f32 %v1201, 1.442695
        %v1298 = vpow.pop %v1297
        %v1299 = vmul.f32 %v1202, 1.442695
        %v1300 = vpow.pop %v1299
        %v1301 = vmul.f32 %v1203, 1.442695
        %v1302 = vpow.pop %v1301
        %v1303 = vmul.f32 %v1204, 1.442695
        %v1304 = vpow.pop %v1303
        %v1305 = vmul.f32 %v1205, 1.442695
        %v1306 = vpow.pop %v1305
        %v1307 = vmul.f32 %v1206, 1.442695
        %v1308 = vpow.pop %v1307
        %v1309 = vmul.f32 %v1207, 1.442695
        %v1310 = vpow.pop %v1309
        %v1311 = vmul.f32 %v1208, 1.442695
        %v1312 = vpow.pop %v1311
        %v1313 = vmul.f32 %v1209, 1.442695
        %v1314 = vpow.pop %v1313
        %v1315 = vmul.f32 %v1210, 1.442695
        %v1316 = vpow.pop %v1315
        %v1317 = vmul.f32 %v1211, 1.442695
        %v1318 = vpow.pop %v1317
        %v1319 = vmul.f32 %v1212, 1.442695
        %v1320 = vpow.pop %v1319
        %v1321 = vmul.f32 %v1213, 1.442695
        %v1322 = vpow.pop %v1321
        %v1323 = vmul.f32 %v1214, 1.442695
        %v1324 = vpow.pop %v1323
        %v1325 = vmul.f32 %v1215, 1.442695
        %v1326 = vpow.pop %v1325
        %v1327 = vmul.f32 %v1216, 1.442695
        %v1328 = vpow.pop %v1327
        %v1329 = vmul.f32 %v1217, 1.442695
        %v1330 = vpow.pop %v1329
        %v1331 = vmul.f32 %v1218, 1.442695
        %v1332 = vpow.pop %v1331
        %v1333 = vmul.f32 %v1219, 1.442695
        %v1334 = vpow.pop %v1333
        %v1335 = vmul.f32 %v1220, 1.442695
        %v1336 = vpow.pop %v1335
        %v1337 = vmul.f32 %v1221, 1.442695
        %v1338 = vpow.pop %v1337
        %v1339 = vmul.f32 %v1222, 1.442695
        %v1340 = vpow.pop %v1339
        %v1341 = vmul.f32 %v1223, 1.442695
        %v1342 = vpow.pop %v1341
        %v1343 = vmul.f32 %v1224, 1.442695
        %v1344 = vpow.pop %v1343
        %v1345 = vmul.f32 %v1225, 1.442695
        %v1346 = vpow.pop %v1345
        %v1347 = vmul.f32 %v1226, 1.442695
        %v1348 = vpow.pop %v1347
        %v1349 = vmul.f32 %v1227, 1.442695
        %v1350 = vpow.pop %v1349
        %v1351 = vmul.f32 %v1228, 1.442695
        %v1352 = vpow.pop %v1351
        %v1353 = vmul.f32 %v1229, 1.442695
        %v1354 = vpow.pop %v1353
        %v1355 = vmul.f32 %v1230, 1.442695
        %v1356 = vpow.pop %v1355
        %v1357 = vmul.f32 %v1231, 1.442695
        %v1358 = vpow.pop %v1357
        %v1359 = vmul.f32 %v1232, 1.442695
        %v1360 = vpow.pop %v1359
        %v1361 = vadd.f32 %v1234, %v1236
        %1362 = vadd.xlane.f32.xlu0 %v1361
        %v1363 = vpop.xlane.xlu0 %1362
        %v1364 = vadd.f32 %v1238, %v1240
        %1365 = vadd.xlane.f32.xlu0 %v1364
        %v1366 = vpop.xlane.xlu0 %1365
        %v1367 = vadd.f32 %v1242, %v1244
        %1368 = vadd.xlane.f32.xlu0 %v1367
        %v1369 = vpop.xlane.xlu0 %1368
        %v1370 = vadd.f32 %v1246, %v1248
        %1371 = vadd.xlane.f32.xlu0 %v1370
        %v1372 = vpop.xlane.xlu0 %1371
        %v1373 = vadd.f32 %v1250, %v1252
        %1374 = vadd.xlane.f32.xlu0 %v1373
        %v1375 = vpop.xlane.xlu0 %1374
        %v1376 = vadd.f32 %v1254, %v1256
        %1377 = vadd.xlane.f32.xlu0 %v1376
        %v1378 = vpop.xlane.xlu0 %1377
        %v1379 = vadd.f32 %v1258, %v1260
        %1380 = vadd.xlane.f32.xlu0 %v1379
        %v1381 = vpop.xlane.xlu0 %1380
        %v1382 = vadd.f32 %v1262, %v1264
        %1383 = vadd.xlane.f32.xlu0 %v1382
        %v1384 = vpop.xlane.xlu0 %1383
        %v1385 = vadd.f32 %v1266, %v1268
        %1386 = vadd.xlane.f32.xlu0 %v1385
        %v1387 = vpop.xlane.xlu0 %1386
        %v1388 = vadd.f32 %v1270, %v1272
        %1389 = vadd.xlane.f32.xlu0 %v1388
        %v1390 = vpop.xlane.xlu0 %1389
        %v1391 = vadd.f32 %v1274, %v1276
        %1392 = vadd.xlane.f32.xlu0 %v1391
        %v1393 = vpop.xlane.xlu0 %1392
        %v1394 = vadd.f32 %v1278, %v1280
        %1395 = vadd.xlane.f32.xlu0 %v1394
        %v1396 = vpop.xlane.xlu0 %1395
        %v1397 = vadd.f32 %v1282, %v1284
        %1398 = vadd.xlane.f32.xlu0 %v1397
        %v1399 = vpop.xlane.xlu0 %1398
        %v1400 = vadd.f32 %v1286, %v1288
        %1401 = vadd.xlane.f32.xlu0 %v1400
        %v1402 = vpop.xlane.xlu0 %1401
        %v1403 = vadd.f32 %v1290, %v1292
        %1404 = vadd.xlane.f32.xlu0 %v1403
        %v1405 = vpop.xlane.xlu0 %1404
        %v1406 = vadd.f32 %v1294, %v1296
        %1407 = vadd.xlane.f32.xlu0 %v1406
        %v1408 = vpop.xlane.xlu0 %1407
        %v1409 = vadd.f32 %v1298, %v1300
        %1410 = vadd.xlane.f32.xlu0 %v1409
        %v1411 = vpop.xlane.xlu0 %1410
        %v1412 = vadd.f32 %v1302, %v1304
        %1413 = vadd.xlane.f32.xlu0 %v1412
        %v1414 = vpop.xlane.xlu0 %1413
        %v1415 = vadd.f32 %v1306, %v1308
        %1416 = vadd.xlane.f32.xlu0 %v1415
        %v1417 = vpop.xlane.xlu0 %1416
        %v1418 = vadd.f32 %v1310, %v1312
        %1419 = vadd.xlane.f32.xlu0 %v1418
        %v1420 = vpop.xlane.xlu0 %1419
        %v1421 = vadd.f32 %v1314, %v1316
        %1422 = vadd.xlane.f32.xlu0 %v1421
        %v1423 = vpop.xlane.xlu0 %1422
        %v1424 = vadd.f32 %v1318, %v1320
        %1425 = vadd.xlane.f32.xlu0 %v1424
        %v1426 = vpop.xlane.xlu0 %1425
        %v1427 = vadd.f32 %v1322, %v1324
        %1428 = vadd.xlane.f32.xlu0 %v1427
        %v1429 = vpop.xlane.xlu0 %1428
        %v1430 = vadd.f32 %v1326, %v1328
        %1431 = vadd.xlane.f32.xlu0 %v1430
        %v1432 = vpop.xlane.xlu0 %1431
        %v1433 = vadd.f32 %v1330, %v1332
        %1434 = vadd.xlane.f32.xlu0 %v1433
        %v1435 = vpop.xlane.xlu0 %1434
        %v1436 = vadd.f32 %v1334, %v1336
        %1437 = vadd.xlane.f32.xlu0 %v1436
        %v1438 = vpop.xlane.xlu0 %1437
        %v1439 = vadd.f32 %v1338, %v1340
        %1440 = vadd.xlane.f32.xlu0 %v1439
        %v1441 = vpop.xlane.xlu0 %1440
        %v1442 = vadd.f32 %v1342, %v1344
        %1443 = vadd.xlane.f32.xlu0 %v1442
        %v1444 = vpop.xlane.xlu0 %1443
        %v1445 = vadd.f32 %v1346, %v1348
        %1446 = vadd.xlane.f32.xlu0 %v1445
        %v1447 = vpop.xlane.xlu0 %1446
        %v1448 = vadd.f32 %v1350, %v1352
        %1449 = vadd.xlane.f32.xlu0 %v1448
        %v1450 = vpop.xlane.xlu0 %1449
        %v1451 = vadd.f32 %v1354, %v1356
        %1452 = vadd.xlane.f32.xlu0 %v1451
        %v1453 = vpop.xlane.xlu0 %1452
        %v1454 = vadd.f32 %v1358, %v1360
        %1455 = vadd.xlane.f32.xlu0 %v1454
        %v1456 = vpop.xlane.xlu0 %1455
        %v1457 = vrcp.pop %v1363
        %v1458 = vrcp.pop %v1366
        %v1459 = vrcp.pop %v1369
        %v1460 = vrcp.pop %v1372
        %v1461 = vrcp.pop %v1375
        %v1462 = vrcp.pop %v1378
        %v1463 = vrcp.pop %v1381
        %v1464 = vrcp.pop %v1384
        %v1465 = vrcp.pop %v1387
        %v1466 = vrcp.pop %v1390
        %v1467 = vrcp.pop %v1393
        %v1468 = vrcp.pop %v1396
        %v1469 = vrcp.pop %v1399
        %v1470 = vrcp.pop %v1402
        %v1471 = vrcp.pop %v1405
        %v1472 = vrcp.pop %v1408
        %v1473 = vrcp.pop %v1411
        %v1474 = vrcp.pop %v1414
        %v1475 = vrcp.pop %v1417
        %v1476 = vrcp.pop %v1420
        %v1477 = vrcp.pop %v1423
        %v1478 = vrcp.pop %v1426
        %v1479 = vrcp.pop %v1429
        %v1480 = vrcp.pop %v1432
        %v1481 = vrcp.pop %v1435
        %v1482 = vrcp.pop %v1438
        %v1483 = vrcp.pop %v1441
        %v1484 = vrcp.pop %v1444
        %v1485 = vrcp.pop %v1447
        %v1486 = vrcp.pop %v1450
        %v1487 = vrcp.pop %v1453
        %v1488 = vrcp.pop %v1456
        %v1489 = vmul.f32 %v1234, %v1457
        %v1490 = vmul.f32 %v1236, %v1457
        %v1491 = vmul.f32 %v1238, %v1458
        %v1492 = vmul.f32 %v1240, %v1458
        %v1493 = vmul.f32 %v1242, %v1459
        %v1494 = vmul.f32 %v1244, %v1459
        %v1495 = vmul.f32 %v1246, %v1460
        %v1496 = vmul.f32 %v1248, %v1460
        %v1497 = vmul.f32 %v1250, %v1461
        %v1498 = vmul.f32 %v1252, %v1461
        %v1499 = vmul.f32 %v1254, %v1462
        %v1500 = vmul.f32 %v1256, %v1462
        %v1501 = vmul.f32 %v1258, %v1463
        %v1502 = vmul.f32 %v1260, %v1463
        %v1503 = vmul.f32 %v1262, %v1464
        %v1504 = vmul.f32 %v1264, %v1464
        %v1505 = vmul.f32 %v1266, %v1465
        %v1506 = vmul.f32 %v1268, %v1465
        %v1507 = vmul.f32 %v1270, %v1466
        %v1508 = vmul.f32 %v1272, %v1466
        %v1509 = vmul.f32 %v1274, %v1467
        %v1510 = vmul.f32 %v1276, %v1467
        %v1511 = vmul.f32 %v1278, %v1468
        %v1512 = vmul.f32 %v1280, %v1468
        %v1513 = vmul.f32 %v1282, %v1469
        %v1514 = vmul.f32 %v1284, %v1469
        %v1515 = vmul.f32 %v1286, %v1470
        %v1516 = vmul.f32 %v1288, %v1470
        %v1517 = vmul.f32 %v1290, %v1471
        %v1518 = vmul.f32 %v1292, %v1471
        %v1519 = vmul.f32 %v1294, %v1472
        %v1520 = vmul.f32 %v1296, %v1472
        %v1521 = vmul.f32 %v1298, %v1473
        %v1522 = vmul.f32 %v1300, %v1473
        %v1523 = vmul.f32 %v1302, %v1474
        %v1524 = vmul.f32 %v1304, %v1474
        %v1525 = vmul.f32 %v1306, %v1475
        %v1526 = vmul.f32 %v1308, %v1475
        %v1527 = vmul.f32 %v1310, %v1476
        %v1528 = vmul.f32 %v1312, %v1476
        %v1529 = vmul.f32 %v1314, %v1477
        %v1530 = vmul.f32 %v1316, %v1477
        %v1531 = vmul.f32 %v1318, %v1478
        %v1532 = vmul.f32 %v1320, %v1478
        %v1533 = vmul.f32 %v1322, %v1479
        %v1534 = vmul.f32 %v1324, %v1479
        %v1535 = vmul.f32 %v1326, %v1480
        %v1536 = vmul.f32 %v1328, %v1480
        %v1537 = vmul.f32 %v1330, %v1481
        %v1538 = vmul.f32 %v1332, %v1481
        %v1539 = vmul.f32 %v1334, %v1482
        %v1540 = vmul.f32 %v1336, %v1482
        %v1541 = vmul.f32 %v1338, %v1483
        %v1542 = vmul.f32 %v1340, %v1483
        %v1543 = vmul.f32 %v1342, %v1484
        %v1544 = vmul.f32 %v1344, %v1484
        %v1545 = vmul.f32 %v1346, %v1485
        %v1546 = vmul.f32 %v1348, %v1485
        %v1547 = vmul.f32 %v1350, %v1486
        %v1548 = vmul.f32 %v1352, %v1486
        %v1549 = vmul.f32 %v1354, %v1487
        %v1550 = vmul.f32 %v1356, %v1487
        %v1551 = vmul.f32 %v1358, %v1488
        %v1552 = vmul.f32 %v1360, %v1488
        %v1553 = vpack.c.bf16 %v1491, %v1489
        %v1554 = vpack.c.bf16 %v1492, %v1490
        %v1555 = vpack.c.bf16 %v1495, %v1493
        %v1556 = vpack.c.bf16 %v1496, %v1494
        %v1557 = vpack.c.bf16 %v1499, %v1497
        %v1558 = vpack.c.bf16 %v1500, %v1498
        %v1559 = vpack.c.bf16 %v1503, %v1501
        %v1560 = vpack.c.bf16 %v1504, %v1502
        %v1561 = vpack.c.bf16 %v1507, %v1505
        %v1562 = vpack.c.bf16 %v1508, %v1506
        %v1563 = vpack.c.bf16 %v1511, %v1509
        %v1564 = vpack.c.bf16 %v1512, %v1510
        %v1565 = vpack.c.bf16 %v1515, %v1513
        %v1566 = vpack.c.bf16 %v1516, %v1514
        %v1567 = vpack.c.bf16 %v1519, %v1517
        %v1568 = vpack.c.bf16 %v1520, %v1518
        %v1569 = vpack.c.bf16 %v1523, %v1521
        %v1570 = vpack.c.bf16 %v1524, %v1522
        %v1571 = vpack.c.bf16 %v1527, %v1525
        %v1572 = vpack.c.bf16 %v1528, %v1526
        %v1573 = vpack.c.bf16 %v1531, %v1529
        %v1574 = vpack.c.bf16 %v1532, %v1530
        %v1575 = vpack.c.bf16 %v1535, %v1533
        %v1576 = vpack.c.bf16 %v1536, %v1534
        %v1577 = vpack.c.bf16 %v1539, %v1537
        %v1578 = vpack.c.bf16 %v1540, %v1538
        %v1579 = vpack.c.bf16 %v1543, %v1541
        %v1580 = vpack.c.bf16 %v1544, %v1542
        %v1581 = vpack.c.bf16 %v1547, %v1545
        %v1582 = vpack.c.bf16 %v1548, %v1546
        %v1583 = vpack.c.bf16 %v1551, %v1549
        %v1584 = vpack.c.bf16 %v1552, %v1550
        %1585 = vmatprep.subr.bf16.mxu0 %v1568
        %1586 = vmatpush1.bf16.xpose.msra.mxu0 %v1567
        %1587 = vmatprep.subr.bf16.mxu0 %v1566
        %1588 = vmatpush1.bf16.xpose.msra.mxu0 %v1565
        %1589 = vmatprep.subr.bf16.mxu0 %v1564
        %1590 = vmatpush1.bf16.xpose.msra.mxu0 %v1563
        %1591 = vmatprep.subr.bf16.mxu0 %v1562
        %1592 = vmatpush1.bf16.xpose.msra.mxu0 %v1561
        %1593 = vmatprep.subr.bf16.mxu0 %v1560
        %1594 = vmatpush1.bf16.xpose.msra.mxu0 %v1559
        %1595 = vmatprep.subr.bf16.mxu0 %v1558
        %1596 = vmatpush1.bf16.xpose.msra.mxu0 %v1557
        %1597 = vmatprep.subr.bf16.mxu0 %v1556
        %1598 = vmatpush1.bf16.xpose.msra.mxu0 %v1555
        %1599 = vmatprep.subr.bf16.mxu0 %v1554
        %1600 = vmatpush1.bf16.xpose.msra.mxu0 %v1553
        %1601 = vmatprep.subr.bf16.mxu0 %v1584
        %1602 = vmatpush2.bf16.xpose.msra.mxu0 %v1583
        %1603 = vmatprep.subr.bf16.mxu0 %v1582
        %1604 = vmatpush2.bf16.xpose.msra.mxu0 %v1581
        %1605 = vmatprep.subr.bf16.mxu0 %v1580
        %1606 = vmatpush2.bf16.xpose.msra.mxu0 %v1579
        %1607 = vmatprep.subr.bf16.mxu0 %v1578
        %1608 = vmatpush2.bf16.xpose.msra.mxu0 %v1577
        %1609 = vmatprep.subr.bf16.mxu0 %v1576
        %1610 = vmatpush2.bf16.xpose.msra.mxu0 %v1575
        %1611 = vmatprep.subr.bf16.mxu0 %v1574
        %1612 = vmatpush2.bf16.xpose.msra.mxu0 %v1573
        %1613 = vmatprep.subr.bf16.mxu0 %v1572
        %1614 = vmatpush2.bf16.xpose.msra.mxu0 %v1571
        %1615 = vmatprep.subr.bf16.mxu0 %v1570
        %1616 = vmatpush2.bf16.xpose.msra.mxu0 %v1569
        %1617 = vmatprep.mubr.bf16.mxu0 %v784
        %1618 = vmatmul.mubr.bf16.gmra.mxu0 %v783
        %v1619 = vpop.f32.mrf.mxu0
        %v1620 = vadd.f32 0.0, %v1619
        %v1621 = vpop.f32.mrf.mxu0
        %v1622 = vadd.f32 0.0, %v1621
        %v1623 = vpop.f32.mrf.mxu0
        %v1624 = vadd.f32 0.0, %v1623
        %v1625 = vpop.f32.mrf.mxu0
        %v1626 = vadd.f32 0.0, %v1625
        %1627 = vmatprep.mubr.bf16.mxu0 %v786
        %1628 = vmatmul.mubr.bf16.gmra.mxu0 %v785
        %v1629 = vpop.f32.mrf.mxu0
        %v1630 = vadd.f32 0.0, %v1629
        %v1631 = vpop.f32.mrf.mxu0
        %v1632 = vadd.f32 0.0, %v1631
        %v1633 = vpop.f32.mrf.mxu0
        %v1634 = vadd.f32 0.0, %v1633
        %v1635 = vpop.f32.mrf.mxu0
        %v1636 = vadd.f32 0.0, %v1635
        %1637 = vdwg.mxu0
        %1638 = vxpose.xlu0.c.b16.start [1/8] %v755, 128
        %1639 = vxpose.xlu0.c.b16.cont [2/8] %v757, 128
        %1640 = vxpose.xlu0.c.b16.cont [3/8] 0, 128
        %1641 = vxpose.xlu0.c.b16.cont [4/8] 0, 128
        %1642 = vxpose.xlu0.c.b16.cont [5/8] 0, 128
        %1643 = vxpose.xlu0.c.b16.cont [6/8] 0, 128
        %1644 = vxpose.xlu0.c.b16.cont [7/8] 0, 128
        %1645 = vxpose.xlu0.c.b16.end [8/8] 0, 128
        %v1646 = vpop.trf.xlu0
        %v1647 = vpop.trf.xlu0
        %v1648 = vpop.trf.xlu0
        %v1649 = vpop.trf.xlu0
        %v1650 = vpop.trf.xlu0
        %v1651 = vpop.trf.xlu0
        %v1652 = vpop.trf.xlu0
        %v1653 = vpop.trf.xlu0
        %1654 = vxpose.xlu0.c.b16.start [1/8] %v756, 128
        %1655 = vxpose.xlu0.c.b16.cont [2/8] %v758, 128
        %1656 = vxpose.xlu0.c.b16.cont [3/8] 0, 128
        %1657 = vxpose.xlu0.c.b16.cont [4/8] 0, 128
        %1658 = vxpose.xlu0.c.b16.cont [5/8] 0, 128
        %1659 = vxpose.xlu0.c.b16.cont [6/8] 0, 128
        %1660 = vxpose.xlu0.c.b16.cont [7/8] 0, 128
        %1661 = vxpose.xlu0.c.b16.end [8/8] 0, 128
        %v1662 = vpop.trf.xlu0
        %v1663 = vpop.trf.xlu0
        %v1664 = vpop.trf.xlu0
        %v1665 = vpop.trf.xlu0
        %v1666 = vpop.trf.xlu0
        %v1667 = vpop.trf.xlu0
        %v1668 = vpop.trf.xlu0
        %v1669 = vpop.trf.xlu0
        %v1671 = vsel %vm831, %v1646, 0
        %v1674 = vsel %vm831, %v1647, 0
        %v1677 = vsel %vm831, %v1648, 0
        %v1680 = vsel %vm831, %v1649, 0
        %v1683 = vsel %vm831, %v1650, 0
        %v1686 = vsel %vm831, %v1651, 0
        %v1689 = vsel %vm831, %v1652, 0
        %v1692 = vsel %vm831, %v1653, 0
        %v1695 = vsel %vm831, %v1662, 0
        %v1698 = vsel %vm831, %v1663, 0
        %v1701 = vsel %vm831, %v1664, 0
        %v1704 = vsel %vm831, %v1665, 0
        %v1707 = vsel %vm831, %v1666, 0
        %v1710 = vsel %vm831, %v1667, 0
        %v1713 = vsel %vm831, %v1668, 0
        %v1716 = vsel %vm831, %v1669, 0
        %1718 = vmatprep.subr.bf16.mxu0 0
        %1719 = vmatpush1.bf16.msra.mxu0 0
        %1720 = vmatprep.subr.bf16.mxu0 0
        %1721 = vmatpush1.bf16.msra.mxu0 0
        %1722 = vmatprep.subr.bf16.mxu0 0
        %1723 = vmatpush1.bf16.msra.mxu0 0
        %1724 = vmatprep.subr.bf16.mxu0 0
        %1725 = vmatpush1.bf16.msra.mxu0 0
        %1726 = vmatprep.subr.bf16.mxu0 0
        %1727 = vmatpush1.bf16.msra.mxu0 0
        %1728 = vmatprep.subr.bf16.mxu0 0
        %1729 = vmatpush1.bf16.msra.mxu0 0
        %1730 = vmatprep.subr.bf16.mxu0 %v774
        %1731 = vmatpush1.bf16.msra.mxu0 %v773
        %1732 = vmatprep.subr.bf16.mxu0 %v772
        %1733 = vmatpush1.bf16.msra.mxu0 %v771
        %1734 = vmatprep.subr.bf16.mxu0 0
        %1735 = vmatpush2.bf16.msra.mxu0 0
        %1736 = vmatprep.subr.bf16.mxu0 0
        %1737 = vmatpush2.bf16.msra.mxu0 0
        %1738 = vmatprep.subr.bf16.mxu0 0
        %1739 = vmatpush2.bf16.msra.mxu0 0
        %1740 = vmatprep.subr.bf16.mxu0 0
        %1741 = vmatpush2.bf16.msra.mxu0 0
        %1742 = vmatprep.subr.bf16.mxu0 0
        %1743 = vmatpush2.bf16.msra.mxu0 0
        %1744 = vmatprep.subr.bf16.mxu0 0
        %1745 = vmatpush2.bf16.msra.mxu0 0
        %1746 = vmatprep.subr.bf16.mxu0 0
        %1747 = vmatpush2.bf16.msra.mxu0 0
        %1748 = vmatprep.subr.bf16.mxu0 0
        %1749 = vmatpush2.bf16.msra.mxu0 0
        %1750 = vmatprep.mubr.bf16.mxu0 0
        %1751 = vmatmul.mubr.bf16.gmra.mxu0 %v1671
        %v1752 = vpop.f32.mrf.mxu0
        %v1753 = vadd.f32 0.0, %v1752
        %v1754 = vpop.f32.mrf.mxu0
        %v1755 = vadd.f32 0.0, %v1754
        %v1756 = vpop.f32.mrf.mxu0
        %v1757 = vadd.f32 0.0, %v1756
        %v1758 = vpop.f32.mrf.mxu0
        %v1759 = vadd.f32 0.0, %v1758
        %1760 = vmatprep.mubr.bf16.mxu0 0
        %1761 = vmatmul.mubr.bf16.gmra.mxu0 %v1674
        %v1762 = vpop.f32.mrf.mxu0
        %v1763 = vadd.f32 0.0, %v1762
        %v1764 = vpop.f32.mrf.mxu0
        %v1765 = vadd.f32 0.0, %v1764
        %v1766 = vpop.f32.mrf.mxu0
        %v1767 = vadd.f32 0.0, %v1766
        %v1768 = vpop.f32.mrf.mxu0
        %v1769 = vadd.f32 0.0, %v1768
        %1770 = vmatprep.mubr.bf16.mxu0 0
        %1771 = vmatmul.mubr.bf16.gmra.mxu0 %v1677
        %v1772 = vpop.f32.mrf.mxu0
        %v1773 = vadd.f32 0.0, %v1772
        %v1774 = vpop.f32.mrf.mxu0
        %v1775 = vadd.f32 0.0, %v1774
        %v1776 = vpop.f32.mrf.mxu0
        %v1777 = vadd.f32 0.0, %v1776
        %v1778 = vpop.f32.mrf.mxu0
        %v1779 = vadd.f32 0.0, %v1778
        %1780 = vmatprep.mubr.bf16.mxu0 0
        %1781 = vmatmul.mubr.bf16.gmra.mxu0 %v1680
        %v1782 = vpop.f32.mrf.mxu0
        %v1783 = vadd.f32 0.0, %v1782
        %v1784 = vpop.f32.mrf.mxu0
        %v1785 = vadd.f32 0.0, %v1784
        %v1786 = vpop.f32.mrf.mxu0
        %v1787 = vadd.f32 0.0, %v1786
        %v1788 = vpop.f32.mrf.mxu0
        %v1789 = vadd.f32 0.0, %v1788
        %1790 = vmatprep.mubr.bf16.mxu0 0
        %1791 = vmatmul.mubr.bf16.gmra.mxu0 %v1683
        %v1792 = vpop.f32.mrf.mxu0
        %v1793 = vadd.f32 0.0, %v1792
        %v1794 = vpop.f32.mrf.mxu0
        %v1795 = vadd.f32 0.0, %v1794
        %v1796 = vpop.f32.mrf.mxu0
        %v1797 = vadd.f32 0.0, %v1796
        %v1798 = vpop.f32.mrf.mxu0
        %v1799 = vadd.f32 0.0, %v1798
        %1800 = vmatprep.mubr.bf16.mxu0 0
        %1801 = vmatmul.mubr.bf16.gmra.mxu0 %v1686
        %v1802 = vpop.f32.mrf.mxu0
        %v1803 = vadd.f32 0.0, %v1802
        %v1804 = vpop.f32.mrf.mxu0
        %v1805 = vadd.f32 0.0, %v1804
        %v1806 = vpop.f32.mrf.mxu0
        %v1807 = vadd.f32 0.0, %v1806
        %v1808 = vpop.f32.mrf.mxu0
        %v1809 = vadd.f32 0.0, %v1808
        %1810 = vmatprep.mubr.bf16.mxu0 0
        %1811 = vmatmul.mubr.bf16.gmra.mxu0 %v1689
        %v1812 = vpop.f32.mrf.mxu0
        %v1813 = vadd.f32 0.0, %v1812
        %v1814 = vpop.f32.mrf.mxu0
        %v1815 = vadd.f32 0.0, %v1814
        %v1816 = vpop.f32.mrf.mxu0
        %v1817 = vadd.f32 0.0, %v1816
        %v1818 = vpop.f32.mrf.mxu0
        %v1819 = vadd.f32 0.0, %v1818
        %1820 = vmatprep.mubr.bf16.mxu0 0
        %1821 = vmatmul.mubr.bf16.gmra.mxu0 %v1692
        %v1822 = vpop.f32.mrf.mxu0
        %v1823 = vadd.f32 0.0, %v1822
        %v1824 = vpop.f32.mrf.mxu0
        %v1825 = vadd.f32 0.0, %v1824
        %v1826 = vpop.f32.mrf.mxu0
        %v1827 = vadd.f32 0.0, %v1826
        %v1828 = vpop.f32.mrf.mxu0
        %v1829 = vadd.f32 0.0, %v1828
        %1830 = vmatprep.mubr.bf16.mxu0 0
        %1831 = vmatmul.mubr.bf16.gmra.mxu0 %v1695
        %v1832 = vpop.f32.mrf.mxu0
        %v1833 = vadd.f32 0.0, %v1832
        %v1834 = vpop.f32.mrf.mxu0
        %v1835 = vadd.f32 0.0, %v1834
        %v1836 = vpop.f32.mrf.mxu0
        %v1837 = vadd.f32 0.0, %v1836
        %v1838 = vpop.f32.mrf.mxu0
        %v1839 = vadd.f32 0.0, %v1838
        %1840 = vmatprep.mubr.bf16.mxu0 0
        %1841 = vmatmul.mubr.bf16.gmra.mxu0 %v1698
        %v1842 = vpop.f32.mrf.mxu0
        %v1843 = vadd.f32 0.0, %v1842
        %v1844 = vpop.f32.mrf.mxu0
        %v1845 = vadd.f32 0.0, %v1844
        %v1846 = vpop.f32.mrf.mxu0
        %v1847 = vadd.f32 0.0, %v1846
        %v1848 = vpop.f32.mrf.mxu0
        %v1849 = vadd.f32 0.0, %v1848
        %1850 = vmatprep.mubr.bf16.mxu0 0
        %1851 = vmatmul.mubr.bf16.gmra.mxu0 %v1701
        %v1852 = vpop.f32.mrf.mxu0
        %v1853 = vadd.f32 0.0, %v1852
        %v1854 = vpop.f32.mrf.mxu0
        %v1855 = vadd.f32 0.0, %v1854
        %v1856 = vpop.f32.mrf.mxu0
        %v1857 = vadd.f32 0.0, %v1856
        %v1858 = vpop.f32.mrf.mxu0
        %v1859 = vadd.f32 0.0, %v1858
        %1860 = vmatprep.mubr.bf16.mxu0 0
        %1861 = vmatmul.mubr.bf16.gmra.mxu0 %v1704
        %v1862 = vpop.f32.mrf.mxu0
        %v1863 = vadd.f32 0.0, %v1862
        %v1864 = vpop.f32.mrf.mxu0
        %v1865 = vadd.f32 0.0, %v1864
        %v1866 = vpop.f32.mrf.mxu0
        %v1867 = vadd.f32 0.0, %v1866
        %v1868 = vpop.f32.mrf.mxu0
        %v1869 = vadd.f32 0.0, %v1868
        %1870 = vmatprep.mubr.bf16.mxu0 0
        %1871 = vmatmul.mubr.bf16.gmra.mxu0 %v1707
        %v1872 = vpop.f32.mrf.mxu0
        %v1873 = vadd.f32 0.0, %v1872
        %v1874 = vpop.f32.mrf.mxu0
        %v1875 = vadd.f32 0.0, %v1874
        %v1876 = vpop.f32.mrf.mxu0
        %v1877 = vadd.f32 0.0, %v1876
        %v1878 = vpop.f32.mrf.mxu0
        %v1879 = vadd.f32 0.0, %v1878
        %1880 = vmatprep.mubr.bf16.mxu0 0
        %1881 = vmatmul.mubr.bf16.gmra.mxu0 %v1710
        %v1882 = vpop.f32.mrf.mxu0
        %v1883 = vadd.f32 0.0, %v1882
        %v1884 = vpop.f32.mrf.mxu0
        %v1885 = vadd.f32 0.0, %v1884
        %v1886 = vpop.f32.mrf.mxu0
        %v1887 = vadd.f32 0.0, %v1886
        %v1888 = vpop.f32.mrf.mxu0
        %v1889 = vadd.f32 0.0, %v1888
        %1890 = vmatprep.mubr.bf16.mxu0 0
        %1891 = vmatmul.mubr.bf16.gmra.mxu0 %v1713
        %v1892 = vpop.f32.mrf.mxu0
        %v1893 = vadd.f32 0.0, %v1892
        %v1894 = vpop.f32.mrf.mxu0
        %v1895 = vadd.f32 0.0, %v1894
        %v1896 = vpop.f32.mrf.mxu0
        %v1897 = vadd.f32 0.0, %v1896
        %v1898 = vpop.f32.mrf.mxu0
        %v1899 = vadd.f32 0.0, %v1898
        %1900 = vmatprep.mubr.bf16.mxu0 0
        %1901 = vmatmul.mubr.bf16.gmra.mxu0 %v1716
        %v1902 = vpop.f32.mrf.mxu0
        %v1903 = vadd.f32 0.0, %v1902
        %v1904 = vpop.f32.mrf.mxu0
        %v1905 = vadd.f32 0.0, %v1904
        %v1906 = vpop.f32.mrf.mxu0
        %v1907 = vadd.f32 0.0, %v1906
        %v1908 = vpop.f32.mrf.mxu0
        %v1909 = vadd.f32 0.0, %v1908
        %1910 = vdwg.mxu0
        %v1911 = vmax.f32 %v1753, %v1755
        %1912 = vmax.xlane.f32.xlu0 %v1911
        %v1913 = vpop.xlane.xlu0 %1912
        %v1914 = vmax.f32 %v1757, %v1759
        %1915 = vmax.xlane.f32.xlu0 %v1914
        %v1916 = vpop.xlane.xlu0 %1915
        %v1917 = vmax.f32 %v1763, %v1765
        %1918 = vmax.xlane.f32.xlu0 %v1917
        %v1919 = vpop.xlane.xlu0 %1918
        %v1920 = vmax.f32 %v1767, %v1769
        %1921 = vmax.xlane.f32.xlu0 %v1920
        %v1922 = vpop.xlane.xlu0 %1921
        %v1923 = vmax.f32 %v1773, %v1775
        %1924 = vmax.xlane.f32.xlu0 %v1923
        %v1925 = vpop.xlane.xlu0 %1924
        %v1926 = vmax.f32 %v1777, %v1779
        %1927 = vmax.xlane.f32.xlu0 %v1926
        %v1928 = vpop.xlane.xlu0 %1927
        %v1929 = vmax.f32 %v1783, %v1785
        %1930 = vmax.xlane.f32.xlu0 %v1929
        %v1931 = vpop.xlane.xlu0 %1930
        %v1932 = vmax.f32 %v1787, %v1789
        %1933 = vmax.xlane.f32.xlu0 %v1932
        %v1934 = vpop.xlane.xlu0 %1933
        %v1935 = vmax.f32 %v1793, %v1795
        %1936 = vmax.xlane.f32.xlu0 %v1935
        %v1937 = vpop.xlane.xlu0 %1936
        %v1938 = vmax.f32 %v1797, %v1799
        %1939 = vmax.xlane.f32.xlu0 %v1938
        %v1940 = vpop.xlane.xlu0 %1939
        %v1941 = vmax.f32 %v1803, %v1805
        %1942 = vmax.xlane.f32.xlu0 %v1941
        %v1943 = vpop.xlane.xlu0 %1942
        %v1944 = vmax.f32 %v1807, %v1809
        %1945 = vmax.xlane.f32.xlu0 %v1944
        %v1946 = vpop.xlane.xlu0 %1945
        %v1947 = vmax.f32 %v1813, %v1815
        %1948 = vmax.xlane.f32.xlu0 %v1947
        %v1949 = vpop.xlane.xlu0 %1948
        %v1950 = vmax.f32 %v1817, %v1819
        %1951 = vmax.xlane.f32.xlu0 %v1950
        %v1952 = vpop.xlane.xlu0 %1951
        %v1953 = vmax.f32 %v1823, %v1825
        %1954 = vmax.xlane.f32.xlu0 %v1953
        %v1955 = vpop.xlane.xlu0 %1954
        %v1956 = vmax.f32 %v1827, %v1829
        %1957 = vmax.xlane.f32.xlu0 %v1956
        %v1958 = vpop.xlane.xlu0 %1957
        %v1959 = vmax.f32 %v1833, %v1835
        %1960 = vmax.xlane.f32.xlu0 %v1959
        %v1961 = vpop.xlane.xlu0 %1960
        %v1962 = vmax.f32 %v1837, %v1839
        %1963 = vmax.xlane.f32.xlu0 %v1962
        %v1964 = vpop.xlane.xlu0 %1963
        %v1965 = vmax.f32 %v1843, %v1845
        %1966 = vmax.xlane.f32.xlu0 %v1965
        %v1967 = vpop.xlane.xlu0 %1966
        %v1968 = vmax.f32 %v1847, %v1849
        %1969 = vmax.xlane.f32.xlu0 %v1968
        %v1970 = vpop.xlane.xlu0 %1969
        %v1971 = vmax.f32 %v1853, %v1855
        %1972 = vmax.xlane.f32.xlu0 %v1971
        %v1973 = vpop.xlane.xlu0 %1972
        %v1974 = vmax.f32 %v1857, %v1859
        %1975 = vmax.xlane.f32.xlu0 %v1974
        %v1976 = vpop.xlane.xlu0 %1975
        %v1977 = vmax.f32 %v1863, %v1865
        %1978 = vmax.xlane.f32.xlu0 %v1977
        %v1979 = vpop.xlane.xlu0 %1978
        %v1980 = vmax.f32 %v1867, %v1869
        %1981 = vmax.xlane.f32.xlu0 %v1980
        %v1982 = vpop.xlane.xlu0 %1981
        %v1983 = vmax.f32 %v1873, %v1875
        %1984 = vmax.xlane.f32.xlu0 %v1983
        %v1985 = vpop.xlane.xlu0 %1984
        %v1986 = vmax.f32 %v1877, %v1879
        %1987 = vmax.xlane.f32.xlu0 %v1986
        %v1988 = vpop.xlane.xlu0 %1987
        %v1989 = vmax.f32 %v1883, %v1885
        %1990 = vmax.xlane.f32.xlu0 %v1989
        %v1991 = vpop.xlane.xlu0 %1990
        %v1992 = vmax.f32 %v1887, %v1889
        %1993 = vmax.xlane.f32.xlu0 %v1992
        %v1994 = vpop.xlane.xlu0 %1993
        %v1995 = vmax.f32 %v1893, %v1895
        %1996 = vmax.xlane.f32.xlu0 %v1995
        %v1997 = vpop.xlane.xlu0 %1996
        %v1998 = vmax.f32 %v1897, %v1899
        %1999 = vmax.xlane.f32.xlu0 %v1998
        %v2000 = vpop.xlane.xlu0 %1999
        %v2001 = vmax.f32 %v1903, %v1905
        %2002 = vmax.xlane.f32.xlu0 %v2001
        %v2003 = vpop.xlane.xlu0 %2002
        %v2004 = vmax.f32 %v1907, %v1909
        %2005 = vmax.xlane.f32.xlu0 %v2004
        %v2006 = vpop.xlane.xlu0 %2005
        %v2007 = vsub.f32 %v1753, %v1913
        %v2008 = vsub.f32 %v1755, %v1913
        %v2009 = vsub.f32 %v1757, %v1916
        %v2010 = vsub.f32 %v1759, %v1916
        %v2011 = vsub.f32 %v1763, %v1919
        %v2012 = vsub.f32 %v1765, %v1919
        %v2013 = vsub.f32 %v1767, %v1922
        %v2014 = vsub.f32 %v1769, %v1922
        %v2015 = vsub.f32 %v1773, %v1925
        %v2016 = vsub.f32 %v1775, %v1925
        %v2017 = vsub.f32 %v1777, %v1928
        %v2018 = vsub.f32 %v1779, %v1928
        %v2019 = vsub.f32 %v1783, %v1931
        %v2020 = vsub.f32 %v1785, %v1931
        %v2021 = vsub.f32 %v1787, %v1934
        %v2022 = vsub.f32 %v1789, %v1934
        %v2023 = vsub.f32 %v1793, %v1937
        %v2024 = vsub.f32 %v1795, %v1937
        %v2025 = vsub.f32 %v1797, %v1940
        %v2026 = vsub.f32 %v1799, %v1940
        %v2027 = vsub.f32 %v1803, %v1943
        %v2028 = vsub.f32 %v1805, %v1943
        %v2029 = vsub.f32 %v1807, %v1946
        %v2030 = vsub.f32 %v1809, %v1946
        %v2031 = vsub.f32 %v1813, %v1949
        %v2032 = vsub.f32 %v1815, %v1949
        %v2033 = vsub.f32 %v1817, %v1952
        %v2034 = vsub.f32 %v1819, %v1952
        %v2035 = vsub.f32 %v1823, %v1955
        %v2036 = vsub.f32 %v1825, %v1955
        %v2037 = vsub.f32 %v1827, %v1958
        %v2038 = vsub.f32 %v1829, %v1958
        %v2039 = vsub.f32 %v1833, %v1961
        %v2040 = vsub.f32 %v1835, %v1961
        %v2041 = vsub.f32 %v1837, %v1964
        %v2042 = vsub.f32 %v1839, %v1964
        %v2043 = vsub.f32 %v1843, %v1967
        %v2044 = vsub.f32 %v1845, %v1967
        %v2045 = vsub.f32 %v1847, %v1970
        %v2046 = vsub.f32 %v1849, %v1970
        %v2047 = vsub.f32 %v1853, %v1973
        %v2048 = vsub.f32 %v1855, %v1973
        %v2049 = vsub.f32 %v1857, %v1976
        %v2050 = vsub.f32 %v1859, %v1976
        %v2051 = vsub.f32 %v1863, %v1979
        %v2052 = vsub.f32 %v1865, %v1979
        %v2053 = vsub.f32 %v1867, %v1982
        %v2054 = vsub.f32 %v1869, %v1982
        %v2055 = vsub.f32 %v1873, %v1985
        %v2056 = vsub.f32 %v1875, %v1985
        %v2057 = vsub.f32 %v1877, %v1988
        %v2058 = vsub.f32 %v1879, %v1988
        %v2059 = vsub.f32 %v1883, %v1991
        %v2060 = vsub.f32 %v1885, %v1991
        %v2061 = vsub.f32 %v1887, %v1994
        %v2062 = vsub.f32 %v1889, %v1994
        %v2063 = vsub.f32 %v1893, %v1997
        %v2064 = vsub.f32 %v1895, %v1997
        %v2065 = vsub.f32 %v1897, %v2000
        %v2066 = vsub.f32 %v1899, %v2000
        %v2067 = vsub.f32 %v1903, %v2003
        %v2068 = vsub.f32 %v1905, %v2003
        %v2069 = vsub.f32 %v1907, %v2006
        %v2070 = vsub.f32 %v1909, %v2006
        %v2071 = vmul.f32 %v2007, 1.442695
        %v2072 = vpow.pop %v2071
        %v2073 = vmul.f32 %v2008, 1.442695
        %v2074 = vpow.pop %v2073
        %v2075 = vmul.f32 %v2009, 1.442695
        %v2076 = vpow.pop %v2075
        %v2077 = vmul.f32 %v2010, 1.442695
        %v2078 = vpow.pop %v2077
        %v2079 = vmul.f32 %v2011, 1.442695
        %v2080 = vpow.pop %v2079
        %v2081 = vmul.f32 %v2012, 1.442695
        %v2082 = vpow.pop %v2081
        %v2083 = vmul.f32 %v2013, 1.442695
        %v2084 = vpow.pop %v2083
        %v2085 = vmul.f32 %v2014, 1.442695
        %v2086 = vpow.pop %v2085
        %v2087 = vmul.f32 %v2015, 1.442695
        %v2088 = vpow.pop %v2087
        %v2089 = vmul.f32 %v2016, 1.442695
        %v2090 = vpow.pop %v2089
        %v2091 = vmul.f32 %v2017, 1.442695
        %v2092 = vpow.pop %v2091
        %v2093 = vmul.f32 %v2018, 1.442695
        %v2094 = vpow.pop %v2093
        %v2095 = vmul.f32 %v2019, 1.442695
        %v2096 = vpow.pop %v2095
        %v2097 = vmul.f32 %v2020, 1.442695
        %v2098 = vpow.pop %v2097
        %v2099 = vmul.f32 %v2021, 1.442695
        %v2100 = vpow.pop %v2099
        %v2101 = vmul.f32 %v2022, 1.442695
        %v2102 = vpow.pop %v2101
        %v2103 = vmul.f32 %v2023, 1.442695
        %v2104 = vpow.pop %v2103
        %v2105 = vmul.f32 %v2024, 1.442695
        %v2106 = vpow.pop %v2105
        %v2107 = vmul.f32 %v2025, 1.442695
        %v2108 = vpow.pop %v2107
        %v2109 = vmul.f32 %v2026, 1.442695
        %v2110 = vpow.pop %v2109
        %v2111 = vmul.f32 %v2027, 1.442695
        %v2112 = vpow.pop %v2111
        %v2113 = vmul.f32 %v2028, 1.442695
        %v2114 = vpow.pop %v2113
        %v2115 = vmul.f32 %v2029, 1.442695
        %v2116 = vpow.pop %v2115
        %v2117 = vmul.f32 %v2030, 1.442695
        %v2118 = vpow.pop %v2117
        %v2119 = vmul.f32 %v2031, 1.442695
        %v2120 = vpow.pop %v2119
        %v2121 = vmul.f32 %v2032, 1.442695
        %v2122 = vpow.pop %v2121
        %v2123 = vmul.f32 %v2033, 1.442695
        %v2124 = vpow.pop %v2123
        %v2125 = vmul.f32 %v2034, 1.442695
        %v2126 = vpow.pop %v2125
        %v2127 = vmul.f32 %v2035, 1.442695
        %v2128 = vpow.pop %v2127
        %v2129 = vmul.f32 %v2036, 1.442695
        %v2130 = vpow.pop %v2129
        %v2131 = vmul.f32 %v2037, 1.442695
        %v2132 = vpow.pop %v2131
        %v2133 = vmul.f32 %v2038, 1.442695
        %v2134 = vpow.pop %v2133
        %v2135 = vmul.f32 %v2039, 1.442695
        %v2136 = vpow.pop %v2135
        %v2137 = vmul.f32 %v2040, 1.442695
        %v2138 = vpow.pop %v2137
        %v2139 = vmul.f32 %v2041, 1.442695
        %v2140 = vpow.pop %v2139
        %v2141 = vmul.f32 %v2042, 1.442695
        %v2142 = vpow.pop %v2141
        %v2143 = vmul.f32 %v2043, 1.442695
        %v2144 = vpow.pop %v2143
        %v2145 = vmul.f32 %v2044, 1.442695
        %v2146 = vpow.pop %v2145
        %v2147 = vmul.f32 %v2045, 1.442695
        %v2148 = vpow.pop %v2147
        %v2149 = vmul.f32 %v2046, 1.442695
        %v2150 = vpow.pop %v2149
        %v2151 = vmul.f32 %v2047, 1.442695
        %v2152 = vpow.pop %v2151
        %v2153 = vmul.f32 %v2048, 1.442695
        %v2154 = vpow.pop %v2153
        %v2155 = vmul.f32 %v2049, 1.442695
        %v2156 = vpow.pop %v2155
        %v2157 = vmul.f32 %v2050, 1.442695
        %v2158 = vpow.pop %v2157
        %v2159 = vmul.f32 %v2051, 1.442695
        %v2160 = vpow.pop %v2159
        %v2161 = vmul.f32 %v2052, 1.442695
        %v2162 = vpow.pop %v2161
        %v2163 = vmul.f32 %v2053, 1.442695
        %v2164 = vpow.pop %v2163
        %v2165 = vmul.f32 %v2054, 1.442695
        %v2166 = vpow.pop %v2165
        %v2167 = vmul.f32 %v2055, 1.442695
        %v2168 = vpow.pop %v2167
        %v2169 = vmul.f32 %v2056, 1.442695
        %v2170 = vpow.pop %v2169
        %v2171 = vmul.f32 %v2057, 1.442695
        %v2172 = vpow.pop %v2171
        %v2173 = vmul.f32 %v2058, 1.442695
        %v2174 = vpow.pop %v2173
        %v2175 = vmul.f32 %v2059, 1.442695
        %v2176 = vpow.pop %v2175
        %v2177 = vmul.f32 %v2060, 1.442695
        %v2178 = vpow.pop %v2177
        %v2179 = vmul.f32 %v2061, 1.442695
        %v2180 = vpow.pop %v2179
        %v2181 = vmul.f32 %v2062, 1.442695
        %v2182 = vpow.pop %v2181
        %v2183 = vmul.f32 %v2063, 1.442695
        %v2184 = vpow.pop %v2183
        %v2185 = vmul.f32 %v2064, 1.442695
        %v2186 = vpow.pop %v2185
        %v2187 = vmul.f32 %v2065, 1.442695
        %v2188 = vpow.pop %v2187
        %v2189 = vmul.f32 %v2066, 1.442695
        %v2190 = vpow.pop %v2189
        %v2191 = vmul.f32 %v2067, 1.442695
        %v2192 = vpow.pop %v2191
        %v2193 = vmul.f32 %v2068, 1.442695
        %v2194 = vpow.pop %v2193
        %v2195 = vmul.f32 %v2069, 1.442695
        %v2196 = vpow.pop %v2195
        %v2197 = vmul.f32 %v2070, 1.442695
        %v2198 = vpow.pop %v2197
        %v2199 = vadd.f32 %v2072, %v2074
        %2200 = vadd.xlane.f32.xlu0 %v2199
        %v2201 = vpop.xlane.xlu0 %2200
        %v2202 = vadd.f32 %v2076, %v2078
        %2203 = vadd.xlane.f32.xlu0 %v2202
        %v2204 = vpop.xlane.xlu0 %2203
        %v2205 = vadd.f32 %v2080, %v2082
        %2206 = vadd.xlane.f32.xlu0 %v2205
        %v2207 = vpop.xlane.xlu0 %2206
        %v2208 = vadd.f32 %v2084, %v2086
        %2209 = vadd.xlane.f32.xlu0 %v2208
        %v2210 = vpop.xlane.xlu0 %2209
        %v2211 = vadd.f32 %v2088, %v2090
        %2212 = vadd.xlane.f32.xlu0 %v2211
        %v2213 = vpop.xlane.xlu0 %2212
        %v2214 = vadd.f32 %v2092, %v2094
        %2215 = vadd.xlane.f32.xlu0 %v2214
        %v2216 = vpop.xlane.xlu0 %2215
        %v2217 = vadd.f32 %v2096, %v2098
        %2218 = vadd.xlane.f32.xlu0 %v2217
        %v2219 = vpop.xlane.xlu0 %2218
        %v2220 = vadd.f32 %v2100, %v2102
        %2221 = vadd.xlane.f32.xlu0 %v2220
        %v2222 = vpop.xlane.xlu0 %2221
        %v2223 = vadd.f32 %v2104, %v2106
        %2224 = vadd.xlane.f32.xlu0 %v2223
        %v2225 = vpop.xlane.xlu0 %2224
        %v2226 = vadd.f32 %v2108, %v2110
        %2227 = vadd.xlane.f32.xlu0 %v2226
        %v2228 = vpop.xlane.xlu0 %2227
        %v2229 = vadd.f32 %v2112, %v2114
        %2230 = vadd.xlane.f32.xlu0 %v2229
        %v2231 = vpop.xlane.xlu0 %2230
        %v2232 = vadd.f32 %v2116, %v2118
        %2233 = vadd.xlane.f32.xlu0 %v2232
        %v2234 = vpop.xlane.xlu0 %2233
        %v2235 = vadd.f32 %v2120, %v2122
        %2236 = vadd.xlane.f32.xlu0 %v2235
        %v2237 = vpop.xlane.xlu0 %2236
        %v2238 = vadd.f32 %v2124, %v2126
        %2239 = vadd.xlane.f32.xlu0 %v2238
        %v2240 = vpop.xlane.xlu0 %2239
        %v2241 = vadd.f32 %v2128, %v2130
        %2242 = vadd.xlane.f32.xlu0 %v2241
        %v2243 = vpop.xlane.xlu0 %2242
        %v2244 = vadd.f32 %v2132, %v2134
        %2245 = vadd.xlane.f32.xlu0 %v2244
        %v2246 = vpop.xlane.xlu0 %2245
        %v2247 = vadd.f32 %v2136, %v2138
        %2248 = vadd.xlane.f32.xlu0 %v2247
        %v2249 = vpop.xlane.xlu0 %2248
        %v2250 = vadd.f32 %v2140, %v2142
        %2251 = vadd.xlane.f32.xlu0 %v2250
        %v2252 = vpop.xlane.xlu0 %2251
        %v2253 = vadd.f32 %v2144, %v2146
        %2254 = vadd.xlane.f32.xlu0 %v2253
        %v2255 = vpop.xlane.xlu0 %2254
        %v2256 = vadd.f32 %v2148, %v2150
        %2257 = vadd.xlane.f32.xlu0 %v2256
        %v2258 = vpop.xlane.xlu0 %2257
        %v2259 = vadd.f32 %v2152, %v2154
        %2260 = vadd.xlane.f32.xlu0 %v2259
        %v2261 = vpop.xlane.xlu0 %2260
        %v2262 = vadd.f32 %v2156, %v2158
        %2263 = vadd.xlane.f32.xlu0 %v2262
        %v2264 = vpop.xlane.xlu0 %2263
        %v2265 = vadd.f32 %v2160, %v2162
        %2266 = vadd.xlane.f32.xlu0 %v2265
        %v2267 = vpop.xlane.xlu0 %2266
        %v2268 = vadd.f32 %v2164, %v2166
        %2269 = vadd.xlane.f32.xlu0 %v2268
        %v2270 = vpop.xlane.xlu0 %2269
        %v2271 = vadd.f32 %v2168, %v2170
        %2272 = vadd.xlane.f32.xlu0 %v2271
        %v2273 = vpop.xlane.xlu0 %2272
        %v2274 = vadd.f32 %v2172, %v2174
        %2275 = vadd.xlane.f32.xlu0 %v2274
        %v2276 = vpop.xlane.xlu0 %2275
        %v2277 = vadd.f32 %v2176, %v2178
        %2278 = vadd.xlane.f32.xlu0 %v2277
        %v2279 = vpop.xlane.xlu0 %2278
        %v2280 = vadd.f32 %v2180, %v2182
        %2281 = vadd.xlane.f32.xlu0 %v2280
        %v2282 = vpop.xlane.xlu0 %2281
        %v2283 = vadd.f32 %v2184, %v2186
        %2284 = vadd.xlane.f32.xlu0 %v2283
        %v2285 = vpop.xlane.xlu0 %2284
        %v2286 = vadd.f32 %v2188, %v2190
        %2287 = vadd.xlane.f32.xlu0 %v2286
        %v2288 = vpop.xlane.xlu0 %2287
        %v2289 = vadd.f32 %v2192, %v2194
        %2290 = vadd.xlane.f32.xlu0 %v2289
        %v2291 = vpop.xlane.xlu0 %2290
        %v2292 = vadd.f32 %v2196, %v2198
        %2293 = vadd.xlane.f32.xlu0 %v2292
        %v2294 = vpop.xlane.xlu0 %2293
        %v2295 = vrcp.pop %v2201
        %v2296 = vrcp.pop %v2204
        %v2297 = vrcp.pop %v2207
        %v2298 = vrcp.pop %v2210
        %v2299 = vrcp.pop %v2213
        %v2300 = vrcp.pop %v2216
        %v2301 = vrcp.pop %v2219
        %v2302 = vrcp.pop %v2222
        %v2303 = vrcp.pop %v2225
        %v2304 = vrcp.pop %v2228
        %v2305 = vrcp.pop %v2231
        %v2306 = vrcp.pop %v2234
        %v2307 = vrcp.pop %v2237
        %v2308 = vrcp.pop %v2240
        %v2309 = vrcp.pop %v2243
        %v2310 = vrcp.pop %v2246
        %v2311 = vrcp.pop %v2249
        %v2312 = vrcp.pop %v2252
        %v2313 = vrcp.pop %v2255
        %v2314 = vrcp.pop %v2258
        %v2315 = vrcp.pop %v2261
        %v2316 = vrcp.pop %v2264
        %v2317 = vrcp.pop %v2267
        %v2318 = vrcp.pop %v2270
        %v2319 = vrcp.pop %v2273
        %v2320 = vrcp.pop %v2276
        %v2321 = vrcp.pop %v2279
        %v2322 = vrcp.pop %v2282
        %v2323 = vrcp.pop %v2285
        %v2324 = vrcp.pop %v2288
        %v2325 = vrcp.pop %v2291
        %v2326 = vrcp.pop %v2294
        %v2327 = vmul.f32 %v2072, %v2295
        %v2328 = vmul.f32 %v2074, %v2295
        %v2329 = vmul.f32 %v2076, %v2296
        %v2330 = vmul.f32 %v2078, %v2296
        %v2331 = vmul.f32 %v2080, %v2297
        %v2332 = vmul.f32 %v2082, %v2297
        %v2333 = vmul.f32 %v2084, %v2298
        %v2334 = vmul.f32 %v2086, %v2298
        %v2335 = vmul.f32 %v2088, %v2299
        %v2336 = vmul.f32 %v2090, %v2299
        %v2337 = vmul.f32 %v2092, %v2300
        %v2338 = vmul.f32 %v2094, %v2300
        %v2339 = vmul.f32 %v2096, %v2301
        %v2340 = vmul.f32 %v2098, %v2301
        %v2341 = vmul.f32 %v2100, %v2302
        %v2342 = vmul.f32 %v2102, %v2302
        %v2343 = vmul.f32 %v2104, %v2303
        %v2344 = vmul.f32 %v2106, %v2303
        %v2345 = vmul.f32 %v2108, %v2304
        %v2346 = vmul.f32 %v2110, %v2304
        %v2347 = vmul.f32 %v2112, %v2305
        %v2348 = vmul.f32 %v2114, %v2305
        %v2349 = vmul.f32 %v2116, %v2306
        %v2350 = vmul.f32 %v2118, %v2306
        %v2351 = vmul.f32 %v2120, %v2307
        %v2352 = vmul.f32 %v2122, %v2307
        %v2353 = vmul.f32 %v2124, %v2308
        %v2354 = vmul.f32 %v2126, %v2308
        %v2355 = vmul.f32 %v2128, %v2309
        %v2356 = vmul.f32 %v2130, %v2309
        %v2357 = vmul.f32 %v2132, %v2310
        %v2358 = vmul.f32 %v2134, %v2310
        %v2359 = vmul.f32 %v2136, %v2311
        %v2360 = vmul.f32 %v2138, %v2311
        %v2361 = vmul.f32 %v2140, %v2312
        %v2362 = vmul.f32 %v2142, %v2312
        %v2363 = vmul.f32 %v2144, %v2313
        %v2364 = vmul.f32 %v2146, %v2313
        %v2365 = vmul.f32 %v2148, %v2314
        %v2366 = vmul.f32 %v2150, %v2314
        %v2367 = vmul.f32 %v2152, %v2315
        %v2368 = vmul.f32 %v2154, %v2315
        %v2369 = vmul.f32 %v2156, %v2316
        %v2370 = vmul.f32 %v2158, %v2316
        %v2371 = vmul.f32 %v2160, %v2317
        %v2372 = vmul.f32 %v2162, %v2317
        %v2373 = vmul.f32 %v2164, %v2318
        %v2374 = vmul.f32 %v2166, %v2318
        %v2375 = vmul.f32 %v2168, %v2319
        %v2376 = vmul.f32 %v2170, %v2319
        %v2377 = vmul.f32 %v2172, %v2320
        %v2378 = vmul.f32 %v2174, %v2320
        %v2379 = vmul.f32 %v2176, %v2321
        %v2380 = vmul.f32 %v2178, %v2321
        %v2381 = vmul.f32 %v2180, %v2322
        %v2382 = vmul.f32 %v2182, %v2322
        %v2383 = vmul.f32 %v2184, %v2323
        %v2384 = vmul.f32 %v2186, %v2323
        %v2385 = vmul.f32 %v2188, %v2324
        %v2386 = vmul.f32 %v2190, %v2324
        %v2387 = vmul.f32 %v2192, %v2325
        %v2388 = vmul.f32 %v2194, %v2325
        %v2389 = vmul.f32 %v2196, %v2326
        %v2390 = vmul.f32 %v2198, %v2326
        %v2391 = vpack.c.bf16 %v2329, %v2327
        %v2392 = vpack.c.bf16 %v2330, %v2328
        %v2393 = vpack.c.bf16 %v2333, %v2331
        %v2394 = vpack.c.bf16 %v2334, %v2332
        %v2395 = vpack.c.bf16 %v2337, %v2335
        %v2396 = vpack.c.bf16 %v2338, %v2336
        %v2397 = vpack.c.bf16 %v2341, %v2339
        %v2398 = vpack.c.bf16 %v2342, %v2340
        %v2399 = vpack.c.bf16 %v2345, %v2343
        %v2400 = vpack.c.bf16 %v2346, %v2344
        %v2401 = vpack.c.bf16 %v2349, %v2347
        %v2402 = vpack.c.bf16 %v2350, %v2348
        %v2403 = vpack.c.bf16 %v2353, %v2351
        %v2404 = vpack.c.bf16 %v2354, %v2352
        %v2405 = vpack.c.bf16 %v2357, %v2355
        %v2406 = vpack.c.bf16 %v2358, %v2356
        %v2407 = vpack.c.bf16 %v2361, %v2359
        %v2408 = vpack.c.bf16 %v2362, %v2360
        %v2409 = vpack.c.bf16 %v2365, %v2363
        %v2410 = vpack.c.bf16 %v2366, %v2364
        %v2411 = vpack.c.bf16 %v2369, %v2367
        %v2412 = vpack.c.bf16 %v2370, %v2368
        %v2413 = vpack.c.bf16 %v2373, %v2371
        %v2414 = vpack.c.bf16 %v2374, %v2372
        %v2415 = vpack.c.bf16 %v2377, %v2375
        %v2416 = vpack.c.bf16 %v2378, %v2376
        %v2417 = vpack.c.bf16 %v2381, %v2379
        %v2418 = vpack.c.bf16 %v2382, %v2380
        %v2419 = vpack.c.bf16 %v2385, %v2383
        %v2420 = vpack.c.bf16 %v2386, %v2384
        %v2421 = vpack.c.bf16 %v2389, %v2387
        %v2422 = vpack.c.bf16 %v2390, %v2388
        %2423 = vmatprep.subr.bf16.mxu0 %v2406
        %2424 = vmatpush1.bf16.xpose.msra.mxu0 %v2405
        %2425 = vmatprep.subr.bf16.mxu0 %v2404
        %2426 = vmatpush1.bf16.xpose.msra.mxu0 %v2403
        %2427 = vmatprep.subr.bf16.mxu0 %v2402
        %2428 = vmatpush1.bf16.xpose.msra.mxu0 %v2401
        %2429 = vmatprep.subr.bf16.mxu0 %v2400
        %2430 = vmatpush1.bf16.xpose.msra.mxu0 %v2399
        %2431 = vmatprep.subr.bf16.mxu0 %v2398
        %2432 = vmatpush1.bf16.xpose.msra.mxu0 %v2397
        %2433 = vmatprep.subr.bf16.mxu0 %v2396
        %2434 = vmatpush1.bf16.xpose.msra.mxu0 %v2395
        %2435 = vmatprep.subr.bf16.mxu0 %v2394
        %2436 = vmatpush1.bf16.xpose.msra.mxu0 %v2393
        %2437 = vmatprep.subr.bf16.mxu0 %v2392
        %2438 = vmatpush1.bf16.xpose.msra.mxu0 %v2391
        %2439 = vmatprep.subr.bf16.mxu0 %v2422
        %2440 = vmatpush2.bf16.xpose.msra.mxu0 %v2421
        %2441 = vmatprep.subr.bf16.mxu0 %v2420
        %2442 = vmatpush2.bf16.xpose.msra.mxu0 %v2419
        %2443 = vmatprep.subr.bf16.mxu0 %v2418
        %2444 = vmatpush2.bf16.xpose.msra.mxu0 %v2417
        %2445 = vmatprep.subr.bf16.mxu0 %v2416
        %2446 = vmatpush2.bf16.xpose.msra.mxu0 %v2415
        %2447 = vmatprep.subr.bf16.mxu0 %v2414
        %2448 = vmatpush2.bf16.xpose.msra.mxu0 %v2413
        %2449 = vmatprep.subr.bf16.mxu0 %v2412
        %2450 = vmatpush2.bf16.xpose.msra.mxu0 %v2411
        %2451 = vmatprep.subr.bf16.mxu0 %v2410
        %2452 = vmatpush2.bf16.xpose.msra.mxu0 %v2409
        %2453 = vmatprep.subr.bf16.mxu0 %v2408
        %2454 = vmatpush2.bf16.xpose.msra.mxu0 %v2407
        %2455 = vmatprep.mubr.bf16.mxu0 %v788
        %2456 = vmatmul.mubr.bf16.gmra.mxu0 %v787
        %v2457 = vpop.f32.mrf.mxu0
        %v2458 = vadd.f32 0.0, %v2457
        %v2459 = vpop.f32.mrf.mxu0
        %v2460 = vadd.f32 0.0, %v2459
        %v2461 = vpop.f32.mrf.mxu0
        %v2462 = vadd.f32 0.0, %v2461
        %v2463 = vpop.f32.mrf.mxu0
        %v2464 = vadd.f32 0.0, %v2463
        %2465 = vmatprep.mubr.bf16.mxu0 %v790
        %2466 = vmatmul.mubr.bf16.gmra.mxu0 %v789
        %v2467 = vpop.f32.mrf.mxu0
        %v2468 = vadd.f32 0.0, %v2467
        %v2469 = vpop.f32.mrf.mxu0
        %v2470 = vadd.f32 0.0, %v2469
        %v2471 = vpop.f32.mrf.mxu0
        %v2472 = vadd.f32 0.0, %v2471
        %v2473 = vpop.f32.mrf.mxu0
        %v2474 = vadd.f32 0.0, %v2473
        %2475 = vdwg.mxu0
        %2476 = vxpose.xlu0.c.b16.start [1/8] %v759, 128
        %2477 = vxpose.xlu0.c.b16.cont [2/8] %v761, 128
        %2478 = vxpose.xlu0.c.b16.cont [3/8] 0, 128
        %2479 = vxpose.xlu0.c.b16.cont [4/8] 0, 128
        %2480 = vxpose.xlu0.c.b16.cont [5/8] 0, 128
        %2481 = vxpose.xlu0.c.b16.cont [6/8] 0, 128
        %2482 = vxpose.xlu0.c.b16.cont [7/8] 0, 128
        %2483 = vxpose.xlu0.c.b16.end [8/8] 0, 128
        %v2484 = vpop.trf.xlu0
        %v2485 = vpop.trf.xlu0
        %v2486 = vpop.trf.xlu0
        %v2487 = vpop.trf.xlu0
        %v2488 = vpop.trf.xlu0
        %v2489 = vpop.trf.xlu0
        %v2490 = vpop.trf.xlu0
        %v2491 = vpop.trf.xlu0
        %2492 = vxpose.xlu0.c.b16.start [1/8] %v760, 128
        %2493 = vxpose.xlu0.c.b16.cont [2/8] %v762, 128
        %2494 = vxpose.xlu0.c.b16.cont [3/8] 0, 128
        %2495 = vxpose.xlu0.c.b16.cont [4/8] 0, 128
        %2496 = vxpose.xlu0.c.b16.cont [5/8] 0, 128
        %2497 = vxpose.xlu0.c.b16.cont [6/8] 0, 128
        %2498 = vxpose.xlu0.c.b16.cont [7/8] 0, 128
        %2499 = vxpose.xlu0.c.b16.end [8/8] 0, 128
        %v2500 = vpop.trf.xlu0
        %v2501 = vpop.trf.xlu0
        %v2502 = vpop.trf.xlu0
        %v2503 = vpop.trf.xlu0
        %v2504 = vpop.trf.xlu0
        %v2505 = vpop.trf.xlu0
        %v2506 = vpop.trf.xlu0
        %v2507 = vpop.trf.xlu0
        %v2509 = vsel %vm831, %v2484, 0
        %v2512 = vsel %vm831, %v2485, 0
        %v2515 = vsel %vm831, %v2486, 0
        %v2518 = vsel %vm831, %v2487, 0
        %v2521 = vsel %vm831, %v2488, 0
        %v2524 = vsel %vm831, %v2489, 0
        %v2527 = vsel %vm831, %v2490, 0
        %v2530 = vsel %vm831, %v2491, 0
        %v2533 = vsel %vm831, %v2500, 0
        %v2536 = vsel %vm831, %v2501, 0
        %v2539 = vsel %vm831, %v2502, 0
        %v2542 = vsel %vm831, %v2503, 0
        %v2545 = vsel %vm831, %v2504, 0
        %v2548 = vsel %vm831, %v2505, 0
        %v2551 = vsel %vm831, %v2506, 0
        %v2554 = vsel %vm831, %v2507, 0
        %2556 = vmatprep.subr.bf16.mxu0 0
        %2557 = vmatpush1.bf16.msra.mxu0 0
        %2558 = vmatprep.subr.bf16.mxu0 0
        %2559 = vmatpush1.bf16.msra.mxu0 0
        %2560 = vmatprep.subr.bf16.mxu0 0
        %2561 = vmatpush1.bf16.msra.mxu0 0
        %2562 = vmatprep.subr.bf16.mxu0 0
        %2563 = vmatpush1.bf16.msra.mxu0 0
        %2564 = vmatprep.subr.bf16.mxu0 0
        %2565 = vmatpush1.bf16.msra.mxu0 0
        %2566 = vmatprep.subr.bf16.mxu0 0
        %2567 = vmatpush1.bf16.msra.mxu0 0
        %2568 = vmatprep.subr.bf16.mxu0 %v778
        %2569 = vmatpush1.bf16.msra.mxu0 %v777
        %2570 = vmatprep.subr.bf16.mxu0 %v776
        %2571 = vmatpush1.bf16.msra.mxu0 %v775
        %2572 = vmatprep.subr.bf16.mxu0 0
        %2573 = vmatpush2.bf16.msra.mxu0 0
        %2574 = vmatprep.subr.bf16.mxu0 0
        %2575 = vmatpush2.bf16.msra.mxu0 0
        %2576 = vmatprep.subr.bf16.mxu0 0
        %2577 = vmatpush2.bf16.msra.mxu0 0
        %2578 = vmatprep.subr.bf16.mxu0 0
        %2579 = vmatpush2.bf16.msra.mxu0 0
        %2580 = vmatprep.subr.bf16.mxu0 0
        %2581 = vmatpush2.bf16.msra.mxu0 0
        %2582 = vmatprep.subr.bf16.mxu0 0
        %2583 = vmatpush2.bf16.msra.mxu0 0
        %2584 = vmatprep.subr.bf16.mxu0 0
        %2585 = vmatpush2.bf16.msra.mxu0 0
        %2586 = vmatprep.subr.bf16.mxu0 0
        %2587 = vmatpush2.bf16.msra.mxu0 0
        %2588 = vmatprep.mubr.bf16.mxu0 0
        %2589 = vmatmul.mubr.bf16.gmra.mxu0 %v2509
        %v2590 = vpop.f32.mrf.mxu0
        %v2591 = vadd.f32 0.0, %v2590
        %v2592 = vpop.f32.mrf.mxu0
        %v2593 = vadd.f32 0.0, %v2592
        %v2594 = vpop.f32.mrf.mxu0
        %v2595 = vadd.f32 0.0, %v2594
        %v2596 = vpop.f32.mrf.mxu0
        %v2597 = vadd.f32 0.0, %v2596
        %2598 = vmatprep.mubr.bf16.mxu0 0
        %2599 = vmatmul.mubr.bf16.gmra.mxu0 %v2512
        %v2600 = vpop.f32.mrf.mxu0
        %v2601 = vadd.f32 0.0, %v2600
        %v2602 = vpop.f32.mrf.mxu0
        %v2603 = vadd.f32 0.0, %v2602
        %v2604 = vpop.f32.mrf.mxu0
        %v2605 = vadd.f32 0.0, %v2604
        %v2606 = vpop.f32.mrf.mxu0
        %v2607 = vadd.f32 0.0, %v2606
        %2608 = vmatprep.mubr.bf16.mxu0 0
        %2609 = vmatmul.mubr.bf16.gmra.mxu0 %v2515
        %v2610 = vpop.f32.mrf.mxu0
        %v2611 = vadd.f32 0.0, %v2610
        %v2612 = vpop.f32.mrf.mxu0
        %v2613 = vadd.f32 0.0, %v2612
        %v2614 = vpop.f32.mrf.mxu0
        %v2615 = vadd.f32 0.0, %v2614
        %v2616 = vpop.f32.mrf.mxu0
        %v2617 = vadd.f32 0.0, %v2616
        %2618 = vmatprep.mubr.bf16.mxu0 0
        %2619 = vmatmul.mubr.bf16.gmra.mxu0 %v2518
        %v2620 = vpop.f32.mrf.mxu0
        %v2621 = vadd.f32 0.0, %v2620
        %v2622 = vpop.f32.mrf.mxu0
        %v2623 = vadd.f32 0.0, %v2622
        %v2624 = vpop.f32.mrf.mxu0
        %v2625 = vadd.f32 0.0, %v2624
        %v2626 = vpop.f32.mrf.mxu0
        %v2627 = vadd.f32 0.0, %v2626
        %2628 = vmatprep.mubr.bf16.mxu0 0
        %2629 = vmatmul.mubr.bf16.gmra.mxu0 %v2521
        %v2630 = vpop.f32.mrf.mxu0
        %v2631 = vadd.f32 0.0, %v2630
        %v2632 = vpop.f32.mrf.mxu0
        %v2633 = vadd.f32 0.0, %v2632
        %v2634 = vpop.f32.mrf.mxu0
        %v2635 = vadd.f32 0.0, %v2634
        %v2636 = vpop.f32.mrf.mxu0
        %v2637 = vadd.f32 0.0, %v2636
        %2638 = vmatprep.mubr.bf16.mxu0 0
        %2639 = vmatmul.mubr.bf16.gmra.mxu0 %v2524
        %v2640 = vpop.f32.mrf.mxu0
        %v2641 = vadd.f32 0.0, %v2640
        %v2642 = vpop.f32.mrf.mxu0
        %v2643 = vadd.f32 0.0, %v2642
        %v2644 = vpop.f32.mrf.mxu0
        %v2645 = vadd.f32 0.0, %v2644
        %v2646 = vpop.f32.mrf.mxu0
        %v2647 = vadd.f32 0.0, %v2646
        %2648 = vmatprep.mubr.bf16.mxu0 0
        %2649 = vmatmul.mubr.bf16.gmra.mxu0 %v2527
        %v2650 = vpop.f32.mrf.mxu0
        %v2651 = vadd.f32 0.0, %v2650
        %v2652 = vpop.f32.mrf.mxu0
        %v2653 = vadd.f32 0.0, %v2652
        %v2654 = vpop.f32.mrf.mxu0
        %v2655 = vadd.f32 0.0, %v2654
        %v2656 = vpop.f32.mrf.mxu0
        %v2657 = vadd.f32 0.0, %v2656
        %2658 = vmatprep.mubr.bf16.mxu0 0
        %2659 = vmatmul.mubr.bf16.gmra.mxu0 %v2530
        %v2660 = vpop.f32.mrf.mxu0
        %v2661 = vadd.f32 0.0, %v2660
        %v2662 = vpop.f32.mrf.mxu0
        %v2663 = vadd.f32 0.0, %v2662
        %v2664 = vpop.f32.mrf.mxu0
        %v2665 = vadd.f32 0.0, %v2664
        %v2666 = vpop.f32.mrf.mxu0
        %v2667 = vadd.f32 0.0, %v2666
        %2668 = vmatprep.mubr.bf16.mxu0 0
        %2669 = vmatmul.mubr.bf16.gmra.mxu0 %v2533
        %v2670 = vpop.f32.mrf.mxu0
        %v2671 = vadd.f32 0.0, %v2670
        %v2672 = vpop.f32.mrf.mxu0
        %v2673 = vadd.f32 0.0, %v2672
        %v2674 = vpop.f32.mrf.mxu0
        %v2675 = vadd.f32 0.0, %v2674
        %v2676 = vpop.f32.mrf.mxu0
        %v2677 = vadd.f32 0.0, %v2676
        %2678 = vmatprep.mubr.bf16.mxu0 0
        %2679 = vmatmul.mubr.bf16.gmra.mxu0 %v2536
        %v2680 = vpop.f32.mrf.mxu0
        %v2681 = vadd.f32 0.0, %v2680
        %v2682 = vpop.f32.mrf.mxu0
        %v2683 = vadd.f32 0.0, %v2682
        %v2684 = vpop.f32.mrf.mxu0
        %v2685 = vadd.f32 0.0, %v2684
        %v2686 = vpop.f32.mrf.mxu0
        %v2687 = vadd.f32 0.0, %v2686
        %2688 = vmatprep.mubr.bf16.mxu0 0
        %2689 = vmatmul.mubr.bf16.gmra.mxu0 %v2539
        %v2690 = vpop.f32.mrf.mxu0
        %v2691 = vadd.f32 0.0, %v2690
        %v2692 = vpop.f32.mrf.mxu0
        %v2693 = vadd.f32 0.0, %v2692
        %v2694 = vpop.f32.mrf.mxu0
        %v2695 = vadd.f32 0.0, %v2694
        %v2696 = vpop.f32.mrf.mxu0
        %v2697 = vadd.f32 0.0, %v2696
        %2698 = vmatprep.mubr.bf16.mxu0 0
        %2699 = vmatmul.mubr.bf16.gmra.mxu0 %v2542
        %v2700 = vpop.f32.mrf.mxu0
        %v2701 = vadd.f32 0.0, %v2700
        %v2702 = vpop.f32.mrf.mxu0
        %v2703 = vadd.f32 0.0, %v2702
        %v2704 = vpop.f32.mrf.mxu0
        %v2705 = vadd.f32 0.0, %v2704
        %v2706 = vpop.f32.mrf.mxu0
        %v2707 = vadd.f32 0.0, %v2706
        %2708 = vmatprep.mubr.bf16.mxu0 0
        %2709 = vmatmul.mubr.bf16.gmra.mxu0 %v2545
        %v2710 = vpop.f32.mrf.mxu0
        %v2711 = vadd.f32 0.0, %v2710
        %v2712 = vpop.f32.mrf.mxu0
        %v2713 = vadd.f32 0.0, %v2712
        %v2714 = vpop.f32.mrf.mxu0
        %v2715 = vadd.f32 0.0, %v2714
        %v2716 = vpop.f32.mrf.mxu0
        %v2717 = vadd.f32 0.0, %v2716
        %2718 = vmatprep.mubr.bf16.mxu0 0
        %2719 = vmatmul.mubr.bf16.gmra.mxu0 %v2548
        %v2720 = vpop.f32.mrf.mxu0
        %v2721 = vadd.f32 0.0, %v2720
        %v2722 = vpop.f32.mrf.mxu0
        %v2723 = vadd.f32 0.0, %v2722
        %v2724 = vpop.f32.mrf.mxu0
        %v2725 = vadd.f32 0.0, %v2724
        %v2726 = vpop.f32.mrf.mxu0
        %v2727 = vadd.f32 0.0, %v2726
        %2728 = vmatprep.mubr.bf16.mxu0 0
        %2729 = vmatmul.mubr.bf16.gmra.mxu0 %v2551
        %v2730 = vpop.f32.mrf.mxu0
        %v2731 = vadd.f32 0.0, %v2730
        %v2732 = vpop.f32.mrf.mxu0
        %v2733 = vadd.f32 0.0, %v2732
        %v2734 = vpop.f32.mrf.mxu0
        %v2735 = vadd.f32 0.0, %v2734
        %v2736 = vpop.f32.mrf.mxu0
        %v2737 = vadd.f32 0.0, %v2736
        %2738 = vmatprep.mubr.bf16.mxu0 0
        %2739 = vmatmul.mubr.bf16.gmra.mxu0 %v2554
        %v2740 = vpop.f32.mrf.mxu0
        %v2741 = vadd.f32 0.0, %v2740
        %v2742 = vpop.f32.mrf.mxu0
        %v2743 = vadd.f32 0.0, %v2742
        %v2744 = vpop.f32.mrf.mxu0
        %v2745 = vadd.f32 0.0, %v2744
        %v2746 = vpop.f32.mrf.mxu0
        %v2747 = vadd.f32 0.0, %v2746
        %2748 = vdwg.mxu0
        %v2749 = vmax.f32 %v2591, %v2593
        %2750 = vmax.xlane.f32.xlu0 %v2749
        %v2751 = vpop.xlane.xlu0 %2750
        %v2752 = vmax.f32 %v2595, %v2597
        %2753 = vmax.xlane.f32.xlu0 %v2752
        %v2754 = vpop.xlane.xlu0 %2753
        %v2755 = vmax.f32 %v2601, %v2603
        %2756 = vmax.xlane.f32.xlu0 %v2755
        %v2757 = vpop.xlane.xlu0 %2756
        %v2758 = vmax.f32 %v2605, %v2607
        %2759 = vmax.xlane.f32.xlu0 %v2758
        %v2760 = vpop.xlane.xlu0 %2759
        %v2761 = vmax.f32 %v2611, %v2613
        %2762 = vmax.xlane.f32.xlu0 %v2761
        %v2763 = vpop.xlane.xlu0 %2762
        %v2764 = vmax.f32 %v2615, %v2617
        %2765 = vmax.xlane.f32.xlu0 %v2764
        %v2766 = vpop.xlane.xlu0 %2765
        %v2767 = vmax.f32 %v2621, %v2623
        %2768 = vmax.xlane.f32.xlu0 %v2767
        %v2769 = vpop.xlane.xlu0 %2768
        %v2770 = vmax.f32 %v2625, %v2627
        %2771 = vmax.xlane.f32.xlu0 %v2770
        %v2772 = vpop.xlane.xlu0 %2771
        %v2773 = vmax.f32 %v2631, %v2633
        %2774 = vmax.xlane.f32.xlu0 %v2773
        %v2775 = vpop.xlane.xlu0 %2774
        %v2776 = vmax.f32 %v2635, %v2637
        %2777 = vmax.xlane.f32.xlu0 %v2776
        %v2778 = vpop.xlane.xlu0 %2777
        %v2779 = vmax.f32 %v2641, %v2643
        %2780 = vmax.xlane.f32.xlu0 %v2779
        %v2781 = vpop.xlane.xlu0 %2780
        %v2782 = vmax.f32 %v2645, %v2647
        %2783 = vmax.xlane.f32.xlu0 %v2782
        %v2784 = vpop.xlane.xlu0 %2783
        %v2785 = vmax.f32 %v2651, %v2653
        %2786 = vmax.xlane.f32.xlu0 %v2785
        %v2787 = vpop.xlane.xlu0 %2786
        %v2788 = vmax.f32 %v2655, %v2657
        %2789 = vmax.xlane.f32.xlu0 %v2788
        %v2790 = vpop.xlane.xlu0 %2789
        %v2791 = vmax.f32 %v2661, %v2663
        %2792 = vmax.xlane.f32.xlu0 %v2791
        %v2793 = vpop.xlane.xlu0 %2792
        %v2794 = vmax.f32 %v2665, %v2667
        %2795 = vmax.xlane.f32.xlu0 %v2794
        %v2796 = vpop.xlane.xlu0 %2795
        %v2797 = vmax.f32 %v2671, %v2673
        %2798 = vmax.xlane.f32.xlu0 %v2797
        %v2799 = vpop.xlane.xlu0 %2798
        %v2800 = vmax.f32 %v2675, %v2677
        %2801 = vmax.xlane.f32.xlu0 %v2800
        %v2802 = vpop.xlane.xlu0 %2801
        %v2803 = vmax.f32 %v2681, %v2683
        %2804 = vmax.xlane.f32.xlu0 %v2803
        %v2805 = vpop.xlane.xlu0 %2804
        %v2806 = vmax.f32 %v2685, %v2687
        %2807 = vmax.xlane.f32.xlu0 %v2806
        %v2808 = vpop.xlane.xlu0 %2807
        %v2809 = vmax.f32 %v2691, %v2693
        %2810 = vmax.xlane.f32.xlu0 %v2809
        %v2811 = vpop.xlane.xlu0 %2810
        %v2812 = vmax.f32 %v2695, %v2697
        %2813 = vmax.xlane.f32.xlu0 %v2812
        %v2814 = vpop.xlane.xlu0 %2813
        %v2815 = vmax.f32 %v2701, %v2703
        %2816 = vmax.xlane.f32.xlu0 %v2815
        %v2817 = vpop.xlane.xlu0 %2816
        %v2818 = vmax.f32 %v2705, %v2707
        %2819 = vmax.xlane.f32.xlu0 %v2818
        %v2820 = vpop.xlane.xlu0 %2819
        %v2821 = vmax.f32 %v2711, %v2713
        %2822 = vmax.xlane.f32.xlu0 %v2821
        %v2823 = vpop.xlane.xlu0 %2822
        %v2824 = vmax.f32 %v2715, %v2717
        %2825 = vmax.xlane.f32.xlu0 %v2824
        %v2826 = vpop.xlane.xlu0 %2825
        %v2827 = vmax.f32 %v2721, %v2723
        %2828 = vmax.xlane.f32.xlu0 %v2827
        %v2829 = vpop.xlane.xlu0 %2828
        %v2830 = vmax.f32 %v2725, %v2727
        %2831 = vmax.xlane.f32.xlu0 %v2830
        %v2832 = vpop.xlane.xlu0 %2831
        %v2833 = vmax.f32 %v2731, %v2733
        %2834 = vmax.xlane.f32.xlu0 %v2833
        %v2835 = vpop.xlane.xlu0 %2834
        %v2836 = vmax.f32 %v2735, %v2737
        %2837 = vmax.xlane.f32.xlu0 %v2836
        %v2838 = vpop.xlane.xlu0 %2837
        %v2839 = vmax.f32 %v2741, %v2743
        %2840 = vmax.xlane.f32.xlu0 %v2839
        %v2841 = vpop.xlane.xlu0 %2840
        %v2842 = vmax.f32 %v2745, %v2747
        %2843 = vmax.xlane.f32.xlu0 %v2842
        %v2844 = vpop.xlane.xlu0 %2843
        %v2845 = vsub.f32 %v2591, %v2751
        %v2846 = vsub.f32 %v2593, %v2751
        %v2847 = vsub.f32 %v2595, %v2754
        %v2848 = vsub.f32 %v2597, %v2754
        %v2849 = vsub.f32 %v2601, %v2757
        %v2850 = vsub.f32 %v2603, %v2757
        %v2851 = vsub.f32 %v2605, %v2760
        %v2852 = vsub.f32 %v2607, %v2760
        %v2853 = vsub.f32 %v2611, %v2763
        %v2854 = vsub.f32 %v2613, %v2763
        %v2855 = vsub.f32 %v2615, %v2766
        %v2856 = vsub.f32 %v2617, %v2766
        %v2857 = vsub.f32 %v2621, %v2769
        %v2858 = vsub.f32 %v2623, %v2769
        %v2859 = vsub.f32 %v2625, %v2772
        %v2860 = vsub.f32 %v2627, %v2772
        %v2861 = vsub.f32 %v2631, %v2775
        %v2862 = vsub.f32 %v2633, %v2775
        %v2863 = vsub.f32 %v2635, %v2778
        %v2864 = vsub.f32 %v2637, %v2778
        %v2865 = vsub.f32 %v2641, %v2781
        %v2866 = vsub.f32 %v2643, %v2781
        %v2867 = vsub.f32 %v2645, %v2784
        %v2868 = vsub.f32 %v2647, %v2784
        %v2869 = vsub.f32 %v2651, %v2787
        %v2870 = vsub.f32 %v2653, %v2787
        %v2871 = vsub.f32 %v2655, %v2790
        %v2872 = vsub.f32 %v2657, %v2790
        %v2873 = vsub.f32 %v2661, %v2793
        %v2874 = vsub.f32 %v2663, %v2793
        %v2875 = vsub.f32 %v2665, %v2796
        %v2876 = vsub.f32 %v2667, %v2796
        %v2877 = vsub.f32 %v2671, %v2799
        %v2878 = vsub.f32 %v2673, %v2799
        %v2879 = vsub.f32 %v2675, %v2802
        %v2880 = vsub.f32 %v2677, %v2802
        %v2881 = vsub.f32 %v2681, %v2805
        %v2882 = vsub.f32 %v2683, %v2805
        %v2883 = vsub.f32 %v2685, %v2808
        %v2884 = vsub.f32 %v2687, %v2808
        %v2885 = vsub.f32 %v2691, %v2811
        %v2886 = vsub.f32 %v2693, %v2811
        %v2887 = vsub.f32 %v2695, %v2814
        %v2888 = vsub.f32 %v2697, %v2814
        %v2889 = vsub.f32 %v2701, %v2817
        %v2890 = vsub.f32 %v2703, %v2817
        %v2891 = vsub.f32 %v2705, %v2820
        %v2892 = vsub.f32 %v2707, %v2820
        %v2893 = vsub.f32 %v2711, %v2823
        %v2894 = vsub.f32 %v2713, %v2823
        %v2895 = vsub.f32 %v2715, %v2826
        %v2896 = vsub.f32 %v2717, %v2826
        %v2897 = vsub.f32 %v2721, %v2829
        %v2898 = vsub.f32 %v2723, %v2829
        %v2899 = vsub.f32 %v2725, %v2832
        %v2900 = vsub.f32 %v2727, %v2832
        %v2901 = vsub.f32 %v2731, %v2835
        %v2902 = vsub.f32 %v2733, %v2835
        %v2903 = vsub.f32 %v2735, %v2838
        %v2904 = vsub.f32 %v2737, %v2838
        %v2905 = vsub.f32 %v2741, %v2841
        %v2906 = vsub.f32 %v2743, %v2841
        %v2907 = vsub.f32 %v2745, %v2844
        %v2908 = vsub.f32 %v2747, %v2844
        %v2909 = vmul.f32 %v2845, 1.442695
        %v2910 = vpow.pop %v2909
        %v2911 = vmul.f32 %v2846, 1.442695
        %v2912 = vpow.pop %v2911
        %v2913 = vmul.f32 %v2847, 1.442695
        %v2914 = vpow.pop %v2913
        %v2915 = vmul.f32 %v2848, 1.442695
        %v2916 = vpow.pop %v2915
        %v2917 = vmul.f32 %v2849, 1.442695
        %v2918 = vpow.pop %v2917
        %v2919 = vmul.f32 %v2850, 1.442695
        %v2920 = vpow.pop %v2919
        %v2921 = vmul.f32 %v2851, 1.442695
        %v2922 = vpow.pop %v2921
        %v2923 = vmul.f32 %v2852, 1.442695
        %v2924 = vpow.pop %v2923
        %v2925 = vmul.f32 %v2853, 1.442695
        %v2926 = vpow.pop %v2925
        %v2927 = vmul.f32 %v2854, 1.442695
        %v2928 = vpow.pop %v2927
        %v2929 = vmul.f32 %v2855, 1.442695
        %v2930 = vpow.pop %v2929
        %v2931 = vmul.f32 %v2856, 1.442695
        %v2932 = vpow.pop %v2931
        %v2933 = vmul.f32 %v2857, 1.442695
        %v2934 = vpow.pop %v2933
        %v2935 = vmul.f32 %v2858, 1.442695
        %v2936 = vpow.pop %v2935
        %v2937 = vmul.f32 %v2859, 1.442695
        %v2938 = vpow.pop %v2937
        %v2939 = vmul.f32 %v2860, 1.442695
        %v2940 = vpow.pop %v2939
        %v2941 = vmul.f32 %v2861, 1.442695
        %v2942 = vpow.pop %v2941
        %v2943 = vmul.f32 %v2862, 1.442695
        %v2944 = vpow.pop %v2943
        %v2945 = vmul.f32 %v2863, 1.442695
        %v2946 = vpow.pop %v2945
        %v2947 = vmul.f32 %v2864, 1.442695
        %v2948 = vpow.pop %v2947
        %v2949 = vmul.f32 %v2865, 1.442695
        %v2950 = vpow.pop %v2949
        %v2951 = vmul.f32 %v2866, 1.442695
        %v2952 = vpow.pop %v2951
        %v2953 = vmul.f32 %v2867, 1.442695
        %v2954 = vpow.pop %v2953
        %v2955 = vmul.f32 %v2868, 1.442695
        %v2956 = vpow.pop %v2955
        %v2957 = vmul.f32 %v2869, 1.442695
        %v2958 = vpow.pop %v2957
        %v2959 = vmul.f32 %v2870, 1.442695
        %v2960 = vpow.pop %v2959
        %v2961 = vmul.f32 %v2871, 1.442695
        %v2962 = vpow.pop %v2961
        %v2963 = vmul.f32 %v2872, 1.442695
        %v2964 = vpow.pop %v2963
        %v2965 = vmul.f32 %v2873, 1.442695
        %v2966 = vpow.pop %v2965
        %v2967 = vmul.f32 %v2874, 1.442695
        %v2968 = vpow.pop %v2967
        %v2969 = vmul.f32 %v2875, 1.442695
        %v2970 = vpow.pop %v2969
        %v2971 = vmul.f32 %v2876, 1.442695
        %v2972 = vpow.pop %v2971
        %v2973 = vmul.f32 %v2877, 1.442695
        %v2974 = vpow.pop %v2973
        %v2975 = vmul.f32 %v2878, 1.442695
        %v2976 = vpow.pop %v2975
        %v2977 = vmul.f32 %v2879, 1.442695
        %v2978 = vpow.pop %v2977
        %v2979 = vmul.f32 %v2880, 1.442695
        %v2980 = vpow.pop %v2979
        %v2981 = vmul.f32 %v2881, 1.442695
        %v2982 = vpow.pop %v2981
        %v2983 = vmul.f32 %v2882, 1.442695
        %v2984 = vpow.pop %v2983
        %v2985 = vmul.f32 %v2883, 1.442695
        %v2986 = vpow.pop %v2985
        %v2987 = vmul.f32 %v2884, 1.442695
        %v2988 = vpow.pop %v2987
        %v2989 = vmul.f32 %v2885, 1.442695
        %v2990 = vpow.pop %v2989
        %v2991 = vmul.f32 %v2886, 1.442695
        %v2992 = vpow.pop %v2991
        %v2993 = vmul.f32 %v2887, 1.442695
        %v2994 = vpow.pop %v2993
        %v2995 = vmul.f32 %v2888, 1.442695
        %v2996 = vpow.pop %v2995
        %v2997 = vmul.f32 %v2889, 1.442695
        %v2998 = vpow.pop %v2997
        %v2999 = vmul.f32 %v2890, 1.442695
        %v3000 = vpow.pop %v2999
        %v3001 = vmul.f32 %v2891, 1.442695
        %v3002 = vpow.pop %v3001
        %v3003 = vmul.f32 %v2892, 1.442695
        %v3004 = vpow.pop %v3003
        %v3005 = vmul.f32 %v2893, 1.442695
        %v3006 = vpow.pop %v3005
        %v3007 = vmul.f32 %v2894, 1.442695
        %v3008 = vpow.pop %v3007
        %v3009 = vmul.f32 %v2895, 1.442695
        %v3010 = vpow.pop %v3009
        %v3011 = vmul.f32 %v2896, 1.442695
        %v3012 = vpow.pop %v3011
        %v3013 = vmul.f32 %v2897, 1.442695
        %v3014 = vpow.pop %v3013
        %v3015 = vmul.f32 %v2898, 1.442695
        %v3016 = vpow.pop %v3015
        %v3017 = vmul.f32 %v2899, 1.442695
        %v3018 = vpow.pop %v3017
        %v3019 = vmul.f32 %v2900, 1.442695
        %v3020 = vpow.pop %v3019
        %v3021 = vmul.f32 %v2901, 1.442695
        %v3022 = vpow.pop %v3021
        %v3023 = vmul.f32 %v2902, 1.442695
        %v3024 = vpow.pop %v3023
        %v3025 = vmul.f32 %v2903, 1.442695
        %v3026 = vpow.pop %v3025
        %v3027 = vmul.f32 %v2904, 1.442695
        %v3028 = vpow.pop %v3027
        %v3029 = vmul.f32 %v2905, 1.442695
        %v3030 = vpow.pop %v3029
        %v3031 = vmul.f32 %v2906, 1.442695
        %v3032 = vpow.pop %v3031
        %v3033 = vmul.f32 %v2907, 1.442695
        %v3034 = vpow.pop %v3033
        %v3035 = vmul.f32 %v2908, 1.442695
        %v3036 = vpow.pop %v3035
        %v3037 = vadd.f32 %v2910, %v2912
        %3038 = vadd.xlane.f32.xlu0 %v3037
        %v3039 = vpop.xlane.xlu0 %3038
        %v3040 = vadd.f32 %v2914, %v2916
        %3041 = vadd.xlane.f32.xlu0 %v3040
        %v3042 = vpop.xlane.xlu0 %3041
        %v3043 = vadd.f32 %v2918, %v2920
        %3044 = vadd.xlane.f32.xlu0 %v3043
        %v3045 = vpop.xlane.xlu0 %3044
        %v3046 = vadd.f32 %v2922, %v2924
        %3047 = vadd.xlane.f32.xlu0 %v3046
        %v3048 = vpop.xlane.xlu0 %3047
        %v3049 = vadd.f32 %v2926, %v2928
        %3050 = vadd.xlane.f32.xlu0 %v3049
        %v3051 = vpop.xlane.xlu0 %3050
        %v3052 = vadd.f32 %v2930, %v2932
        %3053 = vadd.xlane.f32.xlu0 %v3052
        %v3054 = vpop.xlane.xlu0 %3053
        %v3055 = vadd.f32 %v2934, %v2936
        %3056 = vadd.xlane.f32.xlu0 %v3055
        %v3057 = vpop.xlane.xlu0 %3056
        %v3058 = vadd.f32 %v2938, %v2940
        %3059 = vadd.xlane.f32.xlu0 %v3058
        %v3060 = vpop.xlane.xlu0 %3059
        %v3061 = vadd.f32 %v2942, %v2944
        %3062 = vadd.xlane.f32.xlu0 %v3061
        %v3063 = vpop.xlane.xlu0 %3062
        %v3064 = vadd.f32 %v2946, %v2948
        %3065 = vadd.xlane.f32.xlu0 %v3064
        %v3066 = vpop.xlane.xlu0 %3065
        %v3067 = vadd.f32 %v2950, %v2952
        %3068 = vadd.xlane.f32.xlu0 %v3067
        %v3069 = vpop.xlane.xlu0 %3068
        %v3070 = vadd.f32 %v2954, %v2956
        %3071 = vadd.xlane.f32.xlu0 %v3070
        %v3072 = vpop.xlane.xlu0 %3071
        %v3073 = vadd.f32 %v2958, %v2960
        %3074 = vadd.xlane.f32.xlu0 %v3073
        %v3075 = vpop.xlane.xlu0 %3074
        %v3076 = vadd.f32 %v2962, %v2964
        %3077 = vadd.xlane.f32.xlu0 %v3076
        %v3078 = vpop.xlane.xlu0 %3077
        %v3079 = vadd.f32 %v2966, %v2968
        %3080 = vadd.xlane.f32.xlu0 %v3079
        %v3081 = vpop.xlane.xlu0 %3080
        %v3082 = vadd.f32 %v2970, %v2972
        %3083 = vadd.xlane.f32.xlu0 %v3082
        %v3084 = vpop.xlane.xlu0 %3083
        %v3085 = vadd.f32 %v2974, %v2976
        %3086 = vadd.xlane.f32.xlu0 %v3085
        %v3087 = vpop.xlane.xlu0 %3086
        %v3088 = vadd.f32 %v2978, %v2980
        %3089 = vadd.xlane.f32.xlu0 %v3088
        %v3090 = vpop.xlane.xlu0 %3089
        %v3091 = vadd.f32 %v2982, %v2984
        %3092 = vadd.xlane.f32.xlu0 %v3091
        %v3093 = vpop.xlane.xlu0 %3092
        %v3094 = vadd.f32 %v2986, %v2988
        %3095 = vadd.xlane.f32.xlu0 %v3094
        %v3096 = vpop.xlane.xlu0 %3095
        %v3097 = vadd.f32 %v2990, %v2992
        %3098 = vadd.xlane.f32.xlu0 %v3097
        %v3099 = vpop.xlane.xlu0 %3098
        %v3100 = vadd.f32 %v2994, %v2996
        %3101 = vadd.xlane.f32.xlu0 %v3100
        %v3102 = vpop.xlane.xlu0 %3101
        %v3103 = vadd.f32 %v2998, %v3000
        %3104 = vadd.xlane.f32.xlu0 %v3103
        %v3105 = vpop.xlane.xlu0 %3104
        %v3106 = vadd.f32 %v3002, %v3004
        %3107 = vadd.xlane.f32.xlu0 %v3106
        %v3108 = vpop.xlane.xlu0 %3107
        %v3109 = vadd.f32 %v3006, %v3008
        %3110 = vadd.xlane.f32.xlu0 %v3109
        %v3111 = vpop.xlane.xlu0 %3110
        %v3112 = vadd.f32 %v3010, %v3012
        %3113 = vadd.xlane.f32.xlu0 %v3112
        %v3114 = vpop.xlane.xlu0 %3113
        %v3115 = vadd.f32 %v3014, %v3016
        %3116 = vadd.xlane.f32.xlu0 %v3115
        %v3117 = vpop.xlane.xlu0 %3116
        %v3118 = vadd.f32 %v3018, %v3020
        %3119 = vadd.xlane.f32.xlu0 %v3118
        %v3120 = vpop.xlane.xlu0 %3119
        %v3121 = vadd.f32 %v3022, %v3024
        %3122 = vadd.xlane.f32.xlu0 %v3121
        %v3123 = vpop.xlane.xlu0 %3122
        %v3124 = vadd.f32 %v3026, %v3028
        %3125 = vadd.xlane.f32.xlu0 %v3124
        %v3126 = vpop.xlane.xlu0 %3125
        %v3127 = vadd.f32 %v3030, %v3032
        %3128 = vadd.xlane.f32.xlu0 %v3127
        %v3129 = vpop.xlane.xlu0 %3128
        %v3130 = vadd.f32 %v3034, %v3036
        %3131 = vadd.xlane.f32.xlu0 %v3130
        %v3132 = vpop.xlane.xlu0 %3131
        %v3133 = vrcp.pop %v3039
        %v3134 = vrcp.pop %v3042
        %v3135 = vrcp.pop %v3045
        %v3136 = vrcp.pop %v3048
        %v3137 = vrcp.pop %v3051
        %v3138 = vrcp.pop %v3054
        %v3139 = vrcp.pop %v3057
        %v3140 = vrcp.pop %v3060
        %v3141 = vrcp.pop %v3063
        %v3142 = vrcp.pop %v3066
        %v3143 = vrcp.pop %v3069
        %v3144 = vrcp.pop %v3072
        %v3145 = vrcp.pop %v3075
        %v3146 = vrcp.pop %v3078
        %v3147 = vrcp.pop %v3081
        %v3148 = vrcp.pop %v3084
        %v3149 = vrcp.pop %v3087
        %v3150 = vrcp.pop %v3090
        %v3151 = vrcp.pop %v3093
        %v3152 = vrcp.pop %v3096
        %v3153 = vrcp.pop %v3099
        %v3154 = vrcp.pop %v3102
        %v3155 = vrcp.pop %v3105
        %v3156 = vrcp.pop %v3108
        %v3157 = vrcp.pop %v3111
        %v3158 = vrcp.pop %v3114
        %v3159 = vrcp.pop %v3117
        %v3160 = vrcp.pop %v3120
        %v3161 = vrcp.pop %v3123
        %v3162 = vrcp.pop %v3126
        %v3163 = vrcp.pop %v3129
        %v3164 = vrcp.pop %v3132
        %v3165 = vmul.f32 %v2910, %v3133
        %v3166 = vmul.f32 %v2912, %v3133
        %v3167 = vmul.f32 %v2914, %v3134
        %v3168 = vmul.f32 %v2916, %v3134
        %v3169 = vmul.f32 %v2918, %v3135
        %v3170 = vmul.f32 %v2920, %v3135
        %v3171 = vmul.f32 %v2922, %v3136
        %v3172 = vmul.f32 %v2924, %v3136
        %v3173 = vmul.f32 %v2926, %v3137
        %v3174 = vmul.f32 %v2928, %v3137
        %v3175 = vmul.f32 %v2930, %v3138
        %v3176 = vmul.f32 %v2932, %v3138
        %v3177 = vmul.f32 %v2934, %v3139
        %v3178 = vmul.f32 %v2936, %v3139
        %v3179 = vmul.f32 %v2938, %v3140
        %v3180 = vmul.f32 %v2940, %v3140
        %v3181 = vmul.f32 %v2942, %v3141
        %v3182 = vmul.f32 %v2944, %v3141
        %v3183 = vmul.f32 %v2946, %v3142
        %v3184 = vmul.f32 %v2948, %v3142
        %v3185 = vmul.f32 %v2950, %v3143
        %v3186 = vmul.f32 %v2952, %v3143
        %v3187 = vmul.f32 %v2954, %v3144
        %v3188 = vmul.f32 %v2956, %v3144
        %v3189 = vmul.f32 %v2958, %v3145
        %v3190 = vmul.f32 %v2960, %v3145
        %v3191 = vmul.f32 %v2962, %v3146
        %v3192 = vmul.f32 %v2964, %v3146
        %v3193 = vmul.f32 %v2966, %v3147
        %v3194 = vmul.f32 %v2968, %v3147
        %v3195 = vmul.f32 %v2970, %v3148
        %v3196 = vmul.f32 %v2972, %v3148
        %v3197 = vmul.f32 %v2974, %v3149
        %v3198 = vmul.f32 %v2976, %v3149
        %v3199 = vmul.f32 %v2978, %v3150
        %v3200 = vmul.f32 %v2980, %v3150
        %v3201 = vmul.f32 %v2982, %v3151
        %v3202 = vmul.f32 %v2984, %v3151
        %v3203 = vmul.f32 %v2986, %v3152
        %v3204 = vmul.f32 %v2988, %v3152
        %v3205 = vmul.f32 %v2990, %v3153
        %v3206 = vmul.f32 %v2992, %v3153
        %v3207 = vmul.f32 %v2994, %v3154
        %v3208 = vmul.f32 %v2996, %v3154
        %v3209 = vmul.f32 %v2998, %v3155
        %v3210 = vmul.f32 %v3000, %v3155
        %v3211 = vmul.f32 %v3002, %v3156
        %v3212 = vmul.f32 %v3004, %v3156
        %v3213 = vmul.f32 %v3006, %v3157
        %v3214 = vmul.f32 %v3008, %v3157
        %v3215 = vmul.f32 %v3010, %v3158
        %v3216 = vmul.f32 %v3012, %v3158
        %v3217 = vmul.f32 %v3014, %v3159
        %v3218 = vmul.f32 %v3016, %v3159
        %v3219 = vmul.f32 %v3018, %v3160
        %v3220 = vmul.f32 %v3020, %v3160
        %v3221 = vmul.f32 %v3022, %v3161
        %v3222 = vmul.f32 %v3024, %v3161
        %v3223 = vmul.f32 %v3026, %v3162
        %v3224 = vmul.f32 %v3028, %v3162
        %v3225 = vmul.f32 %v3030, %v3163
        %v3226 = vmul.f32 %v3032, %v3163
        %v3227 = vmul.f32 %v3034, %v3164
        %v3228 = vmul.f32 %v3036, %v3164
        %v3229 = vpack.c.bf16 %v3167, %v3165
        %v3230 = vpack.c.bf16 %v3168, %v3166
        %v3231 = vpack.c.bf16 %v3171, %v3169
        %v3232 = vpack.c.bf16 %v3172, %v3170
        %v3233 = vpack.c.bf16 %v3175, %v3173
        %v3234 = vpack.c.bf16 %v3176, %v3174
        %v3235 = vpack.c.bf16 %v3179, %v3177
        %v3236 = vpack.c.bf16 %v3180, %v3178
        %v3237 = vpack.c.bf16 %v3183, %v3181
        %v3238 = vpack.c.bf16 %v3184, %v3182
        %v3239 = vpack.c.bf16 %v3187, %v3185
        %v3240 = vpack.c.bf16 %v3188, %v3186
        %v3241 = vpack.c.bf16 %v3191, %v3189
        %v3242 = vpack.c.bf16 %v3192, %v3190
        %v3243 = vpack.c.bf16 %v3195, %v3193
        %v3244 = vpack.c.bf16 %v3196, %v3194
        %v3245 = vpack.c.bf16 %v3199, %v3197
        %v3246 = vpack.c.bf16 %v3200, %v3198
        %v3247 = vpack.c.bf16 %v3203, %v3201
        %v3248 = vpack.c.bf16 %v3204, %v3202
        %v3249 = vpack.c.bf16 %v3207, %v3205
        %v3250 = vpack.c.bf16 %v3208, %v3206
        %v3251 = vpack.c.bf16 %v3211, %v3209
        %v3252 = vpack.c.bf16 %v3212, %v3210
        %v3253 = vpack.c.bf16 %v3215, %v3213
        %v3254 = vpack.c.bf16 %v3216, %v3214
        %v3255 = vpack.c.bf16 %v3219, %v3217
        %v3256 = vpack.c.bf16 %v3220, %v3218
        %v3257 = vpack.c.bf16 %v3223, %v3221
        %v3258 = vpack.c.bf16 %v3224, %v3222
        %v3259 = vpack.c.bf16 %v3227, %v3225
        %v3260 = vpack.c.bf16 %v3228, %v3226
        %3261 = vmatprep.subr.bf16.mxu0 %v3244
        %3262 = vmatpush1.bf16.xpose.msra.mxu0 %v3243
        %3263 = vmatprep.subr.bf16.mxu0 %v3242
        %3264 = vmatpush1.bf16.xpose.msra.mxu0 %v3241
        %3265 = vmatprep.subr.bf16.mxu0 %v3240
        %3266 = vmatpush1.bf16.xpose.msra.mxu0 %v3239
        %3267 = vmatprep.subr.bf16.mxu0 %v3238
        %3268 = vmatpush1.bf16.xpose.msra.mxu0 %v3237
        %3269 = vmatprep.subr.bf16.mxu0 %v3236
        %3270 = vmatpush1.bf16.xpose.msra.mxu0 %v3235
        %3271 = vmatprep.subr.bf16.mxu0 %v3234
        %3272 = vmatpush1.bf16.xpose.msra.mxu0 %v3233
        %3273 = vmatprep.subr.bf16.mxu0 %v3232
        %3274 = vmatpush1.bf16.xpose.msra.mxu0 %v3231
        %3275 = vmatprep.subr.bf16.mxu0 %v3230
        %3276 = vmatpush1.bf16.xpose.msra.mxu0 %v3229
        %3277 = vmatprep.subr.bf16.mxu0 %v3260
        %3278 = vmatpush2.bf16.xpose.msra.mxu0 %v3259
        %3279 = vmatprep.subr.bf16.mxu0 %v3258
        %3280 = vmatpush2.bf16.xpose.msra.mxu0 %v3257
        %3281 = vmatprep.subr.bf16.mxu0 %v3256
        %3282 = vmatpush2.bf16.xpose.msra.mxu0 %v3255
        %3283 = vmatprep.subr.bf16.mxu0 %v3254
        %3284 = vmatpush2.bf16.xpose.msra.mxu0 %v3253
        %3285 = vmatprep.subr.bf16.mxu0 %v3252
        %3286 = vmatpush2.bf16.xpose.msra.mxu0 %v3251
        %3287 = vmatprep.subr.bf16.mxu0 %v3250
        %3288 = vmatpush2.bf16.xpose.msra.mxu0 %v3249
        %3289 = vmatprep.subr.bf16.mxu0 %v3248
        %3290 = vmatpush2.bf16.xpose.msra.mxu0 %v3247
        %3291 = vmatprep.subr.bf16.mxu0 %v3246
        %3292 = vmatpush2.bf16.xpose.msra.mxu0 %v3245
        %3293 = vmatprep.mubr.bf16.mxu0 %v792
        %3294 = vmatmul.mubr.bf16.gmra.mxu0 %v791
        %v3295 = vpop.f32.mrf.mxu0
        %v3296 = vadd.f32 0.0, %v3295
        %v3297 = vpop.f32.mrf.mxu0
        %v3298 = vadd.f32 0.0, %v3297
        %v3299 = vpop.f32.mrf.mxu0
        %v3300 = vadd.f32 0.0, %v3299
        %v3301 = vpop.f32.mrf.mxu0
        %v3302 = vadd.f32 0.0, %v3301
        %3303 = vmatprep.mubr.bf16.mxu0 %v794
        %3304 = vmatmul.mubr.bf16.gmra.mxu0 %v793
        %v3305 = vpop.f32.mrf.mxu0
        %v3306 = vadd.f32 0.0, %v3305
        %v3307 = vpop.f32.mrf.mxu0
        %v3308 = vadd.f32 0.0, %v3307
        %v3309 = vpop.f32.mrf.mxu0
        %v3310 = vadd.f32 0.0, %v3309
        %v3311 = vpop.f32.mrf.mxu0
        %v3312 = vadd.f32 0.0, %v3311
        %3313 = vdwg.mxu0
        %3314 = vxpose.xlu0.c.b16.start [1/8] %v763, 128
        %3315 = vxpose.xlu0.c.b16.cont [2/8] %v765, 128
        %3316 = vxpose.xlu0.c.b16.cont [3/8] 0, 128
        %3317 = vxpose.xlu0.c.b16.cont [4/8] 0, 128
        %3318 = vxpose.xlu0.c.b16.cont [5/8] 0, 128
        %3319 = vxpose.xlu0.c.b16.cont [6/8] 0, 128
        %3320 = vxpose.xlu0.c.b16.cont [7/8] 0, 128
        %3321 = vxpose.xlu0.c.b16.end [8/8] 0, 128
        %v3322 = vpop.trf.xlu0
        %v3323 = vpop.trf.xlu0
        %v3324 = vpop.trf.xlu0
        %v3325 = vpop.trf.xlu0
        %v3326 = vpop.trf.xlu0
        %v3327 = vpop.trf.xlu0
        %v3328 = vpop.trf.xlu0
        %v3329 = vpop.trf.xlu0
        %3330 = vxpose.xlu0.c.b16.start [1/8] %v764, 128
        %3331 = vxpose.xlu0.c.b16.cont [2/8] %v766, 128
        %3332 = vxpose.xlu0.c.b16.cont [3/8] 0, 128
        %3333 = vxpose.xlu0.c.b16.cont [4/8] 0, 128
        %3334 = vxpose.xlu0.c.b16.cont [5/8] 0, 128
        %3335 = vxpose.xlu0.c.b16.cont [6/8] 0, 128
        %3336 = vxpose.xlu0.c.b16.cont [7/8] 0, 128
        %3337 = vxpose.xlu0.c.b16.end [8/8] 0, 128
        %v3338 = vpop.trf.xlu0
        %v3339 = vpop.trf.xlu0
        %v3340 = vpop.trf.xlu0
        %v3341 = vpop.trf.xlu0
        %v3342 = vpop.trf.xlu0
        %v3343 = vpop.trf.xlu0
        %v3344 = vpop.trf.xlu0
        %v3345 = vpop.trf.xlu0
        %v3347 = vsel %vm831, %v3322, 0
        %v3350 = vsel %vm831, %v3323, 0
        %v3353 = vsel %vm831, %v3324, 0
        %v3356 = vsel %vm831, %v3325, 0
        %v3359 = vsel %vm831, %v3326, 0
        %v3362 = vsel %vm831, %v3327, 0
        %v3365 = vsel %vm831, %v3328, 0
        %v3368 = vsel %vm831, %v3329, 0
        %v3371 = vsel %vm831, %v3338, 0
        %v3374 = vsel %vm831, %v3339, 0
        %v3377 = vsel %vm831, %v3340, 0
        %v3380 = vsel %vm831, %v3341, 0
        %v3383 = vsel %vm831, %v3342, 0
        %v3386 = vsel %vm831, %v3343, 0
        %v3389 = vsel %vm831, %v3344, 0
        %v3392 = vsel %vm831, %v3345, 0
        %3394 = vmatprep.subr.bf16.mxu0 0
        %3395 = vmatpush1.bf16.msra.mxu0 0
        %3396 = vmatprep.subr.bf16.mxu0 0
        %3397 = vmatpush1.bf16.msra.mxu0 0
        %3398 = vmatprep.subr.bf16.mxu0 0
        %3399 = vmatpush1.bf16.msra.mxu0 0
        %3400 = vmatprep.subr.bf16.mxu0 0
        %3401 = vmatpush1.bf16.msra.mxu0 0
        %3402 = vmatprep.subr.bf16.mxu0 0
        %3403 = vmatpush1.bf16.msra.mxu0 0
        %3404 = vmatprep.subr.bf16.mxu0 0
        %3405 = vmatpush1.bf16.msra.mxu0 0
        %3406 = vmatprep.subr.bf16.mxu0 %v782
        %3407 = vmatpush1.bf16.msra.mxu0 %v781
        %3408 = vmatprep.subr.bf16.mxu0 %v780
        %3409 = vmatpush1.bf16.msra.mxu0 %v779
        %3410 = vmatprep.subr.bf16.mxu0 0
        %3411 = vmatpush2.bf16.msra.mxu0 0
        %3412 = vmatprep.subr.bf16.mxu0 0
        %3413 = vmatpush2.bf16.msra.mxu0 0
        %3414 = vmatprep.subr.bf16.mxu0 0
        %3415 = vmatpush2.bf16.msra.mxu0 0
        %3416 = vmatprep.subr.bf16.mxu0 0
        %3417 = vmatpush2.bf16.msra.mxu0 0
        %3418 = vmatprep.subr.bf16.mxu0 0
        %3419 = vmatpush2.bf16.msra.mxu0 0
        %3420 = vmatprep.subr.bf16.mxu0 0
        %3421 = vmatpush2.bf16.msra.mxu0 0
        %3422 = vmatprep.subr.bf16.mxu0 0
        %3423 = vmatpush2.bf16.msra.mxu0 0
        %3424 = vmatprep.subr.bf16.mxu0 0
        %3425 = vmatpush2.bf16.msra.mxu0 0
        %3426 = vmatprep.mubr.bf16.mxu0 0
        %3427 = vmatmul.mubr.bf16.gmra.mxu0 %v3347
        %v3428 = vpop.f32.mrf.mxu0
        %v3429 = vadd.f32 0.0, %v3428
        %v3430 = vpop.f32.mrf.mxu0
        %v3431 = vadd.f32 0.0, %v3430
        %v3432 = vpop.f32.mrf.mxu0
        %v3433 = vadd.f32 0.0, %v3432
        %v3434 = vpop.f32.mrf.mxu0
        %v3435 = vadd.f32 0.0, %v3434
        %3436 = vmatprep.mubr.bf16.mxu0 0
        %3437 = vmatmul.mubr.bf16.gmra.mxu0 %v3350
        %v3438 = vpop.f32.mrf.mxu0
        %v3439 = vadd.f32 0.0, %v3438
        %v3440 = vpop.f32.mrf.mxu0
        %v3441 = vadd.f32 0.0, %v3440
        %v3442 = vpop.f32.mrf.mxu0
        %v3443 = vadd.f32 0.0, %v3442
        %v3444 = vpop.f32.mrf.mxu0
        %v3445 = vadd.f32 0.0, %v3444
        %3446 = vmatprep.mubr.bf16.mxu0 0
        %3447 = vmatmul.mubr.bf16.gmra.mxu0 %v3353
        %v3448 = vpop.f32.mrf.mxu0
        %v3449 = vadd.f32 0.0, %v3448
        %v3450 = vpop.f32.mrf.mxu0
        %v3451 = vadd.f32 0.0, %v3450
        %v3452 = vpop.f32.mrf.mxu0
        %v3453 = vadd.f32 0.0, %v3452
        %v3454 = vpop.f32.mrf.mxu0
        %v3455 = vadd.f32 0.0, %v3454
        %3456 = vmatprep.mubr.bf16.mxu0 0
        %3457 = vmatmul.mubr.bf16.gmra.mxu0 %v3356
        %v3458 = vpop.f32.mrf.mxu0
        %v3459 = vadd.f32 0.0, %v3458
        %v3460 = vpop.f32.mrf.mxu0
        %v3461 = vadd.f32 0.0, %v3460
        %v3462 = vpop.f32.mrf.mxu0
        %v3463 = vadd.f32 0.0, %v3462
        %v3464 = vpop.f32.mrf.mxu0
        %v3465 = vadd.f32 0.0, %v3464
        %3466 = vmatprep.mubr.bf16.mxu0 0
        %3467 = vmatmul.mubr.bf16.gmra.mxu0 %v3359
        %v3468 = vpop.f32.mrf.mxu0
        %v3469 = vadd.f32 0.0, %v3468
        %v3470 = vpop.f32.mrf.mxu0
        %v3471 = vadd.f32 0.0, %v3470
        %v3472 = vpop.f32.mrf.mxu0
        %v3473 = vadd.f32 0.0, %v3472
        %v3474 = vpop.f32.mrf.mxu0
        %v3475 = vadd.f32 0.0, %v3474
        %3476 = vmatprep.mubr.bf16.mxu0 0
        %3477 = vmatmul.mubr.bf16.gmra.mxu0 %v3362
        %v3478 = vpop.f32.mrf.mxu0
        %v3479 = vadd.f32 0.0, %v3478
        %v3480 = vpop.f32.mrf.mxu0
        %v3481 = vadd.f32 0.0, %v3480
        %v3482 = vpop.f32.mrf.mxu0
        %v3483 = vadd.f32 0.0, %v3482
        %v3484 = vpop.f32.mrf.mxu0
        %v3485 = vadd.f32 0.0, %v3484
        %3486 = vmatprep.mubr.bf16.mxu0 0
        %3487 = vmatmul.mubr.bf16.gmra.mxu0 %v3365
        %v3488 = vpop.f32.mrf.mxu0
        %v3489 = vadd.f32 0.0, %v3488
        %v3490 = vpop.f32.mrf.mxu0
        %v3491 = vadd.f32 0.0, %v3490
        %v3492 = vpop.f32.mrf.mxu0
        %v3493 = vadd.f32 0.0, %v3492
        %v3494 = vpop.f32.mrf.mxu0
        %v3495 = vadd.f32 0.0, %v3494
        %3496 = vmatprep.mubr.bf16.mxu0 0
        %3497 = vmatmul.mubr.bf16.gmra.mxu0 %v3368
        %v3498 = vpop.f32.mrf.mxu0
        %v3499 = vadd.f32 0.0, %v3498
        %v3500 = vpop.f32.mrf.mxu0
        %v3501 = vadd.f32 0.0, %v3500
        %v3502 = vpop.f32.mrf.mxu0
        %v3503 = vadd.f32 0.0, %v3502
        %v3504 = vpop.f32.mrf.mxu0
        %v3505 = vadd.f32 0.0, %v3504
        %3506 = vmatprep.mubr.bf16.mxu0 0
        %3507 = vmatmul.mubr.bf16.gmra.mxu0 %v3371
        %v3508 = vpop.f32.mrf.mxu0
        %v3509 = vadd.f32 0.0, %v3508
        %v3510 = vpop.f32.mrf.mxu0
        %v3511 = vadd.f32 0.0, %v3510
        %v3512 = vpop.f32.mrf.mxu0
        %v3513 = vadd.f32 0.0, %v3512
        %v3514 = vpop.f32.mrf.mxu0
        %v3515 = vadd.f32 0.0, %v3514
        %3516 = vmatprep.mubr.bf16.mxu0 0
        %3517 = vmatmul.mubr.bf16.gmra.mxu0 %v3374
        %v3518 = vpop.f32.mrf.mxu0
        %v3519 = vadd.f32 0.0, %v3518
        %v3520 = vpop.f32.mrf.mxu0
        %v3521 = vadd.f32 0.0, %v3520
        %v3522 = vpop.f32.mrf.mxu0
        %v3523 = vadd.f32 0.0, %v3522
        %v3524 = vpop.f32.mrf.mxu0
        %v3525 = vadd.f32 0.0, %v3524
        %3526 = vmatprep.mubr.bf16.mxu0 0
        %3527 = vmatmul.mubr.bf16.gmra.mxu0 %v3377
        %v3528 = vpop.f32.mrf.mxu0
        %v3529 = vadd.f32 0.0, %v3528
        %v3530 = vpop.f32.mrf.mxu0
        %v3531 = vadd.f32 0.0, %v3530
        %v3532 = vpop.f32.mrf.mxu0
        %v3533 = vadd.f32 0.0, %v3532
        %v3534 = vpop.f32.mrf.mxu0
        %v3535 = vadd.f32 0.0, %v3534
        %3536 = vmatprep.mubr.bf16.mxu0 0
        %3537 = vmatmul.mubr.bf16.gmra.mxu0 %v3380
        %v3538 = vpop.f32.mrf.mxu0
        %v3539 = vadd.f32 0.0, %v3538
        %v3540 = vpop.f32.mrf.mxu0
        %v3541 = vadd.f32 0.0, %v3540
        %v3542 = vpop.f32.mrf.mxu0
        %v3543 = vadd.f32 0.0, %v3542
        %v3544 = vpop.f32.mrf.mxu0
        %v3545 = vadd.f32 0.0, %v3544
        %3546 = vmatprep.mubr.bf16.mxu0 0
        %3547 = vmatmul.mubr.bf16.gmra.mxu0 %v3383
        %v3548 = vpop.f32.mrf.mxu0
        %v3549 = vadd.f32 0.0, %v3548
        %v3550 = vpop.f32.mrf.mxu0
        %v3551 = vadd.f32 0.0, %v3550
        %v3552 = vpop.f32.mrf.mxu0
        %v3553 = vadd.f32 0.0, %v3552
        %v3554 = vpop.f32.mrf.mxu0
        %v3555 = vadd.f32 0.0, %v3554
        %3556 = vmatprep.mubr.bf16.mxu0 0
        %3557 = vmatmul.mubr.bf16.gmra.mxu0 %v3386
        %v3558 = vpop.f32.mrf.mxu0
        %v3559 = vadd.f32 0.0, %v3558
        %v3560 = vpop.f32.mrf.mxu0
        %v3561 = vadd.f32 0.0, %v3560
        %v3562 = vpop.f32.mrf.mxu0
        %v3563 = vadd.f32 0.0, %v3562
        %v3564 = vpop.f32.mrf.mxu0
        %v3565 = vadd.f32 0.0, %v3564
        %3566 = vmatprep.mubr.bf16.mxu0 0
        %3567 = vmatmul.mubr.bf16.gmra.mxu0 %v3389
        %v3568 = vpop.f32.mrf.mxu0
        %v3569 = vadd.f32 0.0, %v3568
        %v3570 = vpop.f32.mrf.mxu0
        %v3571 = vadd.f32 0.0, %v3570
        %v3572 = vpop.f32.mrf.mxu0
        %v3573 = vadd.f32 0.0, %v3572
        %v3574 = vpop.f32.mrf.mxu0
        %v3575 = vadd.f32 0.0, %v3574
        %3576 = vmatprep.mubr.bf16.mxu0 0
        %3577 = vmatmul.mubr.bf16.gmra.mxu0 %v3392
        %v3578 = vpop.f32.mrf.mxu0
        %v3579 = vadd.f32 0.0, %v3578
        %v3580 = vpop.f32.mrf.mxu0
        %v3581 = vadd.f32 0.0, %v3580
        %v3582 = vpop.f32.mrf.mxu0
        %v3583 = vadd.f32 0.0, %v3582
        %v3584 = vpop.f32.mrf.mxu0
        %v3585 = vadd.f32 0.0, %v3584
        %3586 = vdwg.mxu0
        %v3587 = vmax.f32 %v3429, %v3431
        %3588 = vmax.xlane.f32.xlu0 %v3587
        %v3589 = vpop.xlane.xlu0 %3588
        %v3590 = vmax.f32 %v3433, %v3435
        %3591 = vmax.xlane.f32.xlu0 %v3590
        %v3592 = vpop.xlane.xlu0 %3591
        %v3593 = vmax.f32 %v3439, %v3441
        %3594 = vmax.xlane.f32.xlu0 %v3593
        %v3595 = vpop.xlane.xlu0 %3594
        %v3596 = vmax.f32 %v3443, %v3445
        %3597 = vmax.xlane.f32.xlu0 %v3596
        %v3598 = vpop.xlane.xlu0 %3597
        %v3599 = vmax.f32 %v3449, %v3451
        %3600 = vmax.xlane.f32.xlu0 %v3599
        %v3601 = vpop.xlane.xlu0 %3600
        %v3602 = vmax.f32 %v3453, %v3455
        %3603 = vmax.xlane.f32.xlu0 %v3602
        %v3604 = vpop.xlane.xlu0 %3603
        %v3605 = vmax.f32 %v3459, %v3461
        %3606 = vmax.xlane.f32.xlu0 %v3605
        %v3607 = vpop.xlane.xlu0 %3606
        %v3608 = vmax.f32 %v3463, %v3465
        %3609 = vmax.xlane.f32.xlu0 %v3608
        %v3610 = vpop.xlane.xlu0 %3609
        %v3611 = vmax.f32 %v3469, %v3471
        %3612 = vmax.xlane.f32.xlu0 %v3611
        %v3613 = vpop.xlane.xlu0 %3612
        %v3614 = vmax.f32 %v3473, %v3475
        %3615 = vmax.xlane.f32.xlu0 %v3614
        %v3616 = vpop.xlane.xlu0 %3615
        %v3617 = vmax.f32 %v3479, %v3481
        %3618 = vmax.xlane.f32.xlu0 %v3617
        %v3619 = vpop.xlane.xlu0 %3618
        %v3620 = vmax.f32 %v3483, %v3485
        %3621 = vmax.xlane.f32.xlu0 %v3620
        %v3622 = vpop.xlane.xlu0 %3621
        %v3623 = vmax.f32 %v3489, %v3491
        %3624 = vmax.xlane.f32.xlu0 %v3623
        %v3625 = vpop.xlane.xlu0 %3624
        %v3626 = vmax.f32 %v3493, %v3495
        %3627 = vmax.xlane.f32.xlu0 %v3626
        %v3628 = vpop.xlane.xlu0 %3627
        %v3629 = vmax.f32 %v3499, %v3501
        %3630 = vmax.xlane.f32.xlu0 %v3629
        %v3631 = vpop.xlane.xlu0 %3630
        %v3632 = vmax.f32 %v3503, %v3505
        %3633 = vmax.xlane.f32.xlu0 %v3632
        %v3634 = vpop.xlane.xlu0 %3633
        %v3635 = vmax.f32 %v3509, %v3511
        %3636 = vmax.xlane.f32.xlu0 %v3635
        %v3637 = vpop.xlane.xlu0 %3636
        %v3638 = vmax.f32 %v3513, %v3515
        %3639 = vmax.xlane.f32.xlu0 %v3638
        %v3640 = vpop.xlane.xlu0 %3639
        %v3641 = vmax.f32 %v3519, %v3521
        %3642 = vmax.xlane.f32.xlu0 %v3641
        %v3643 = vpop.xlane.xlu0 %3642
        %v3644 = vmax.f32 %v3523, %v3525
        %3645 = vmax.xlane.f32.xlu0 %v3644
        %v3646 = vpop.xlane.xlu0 %3645
        %v3647 = vmax.f32 %v3529, %v3531
        %3648 = vmax.xlane.f32.xlu0 %v3647
        %v3649 = vpop.xlane.xlu0 %3648
        %v3650 = vmax.f32 %v3533, %v3535
        %3651 = vmax.xlane.f32.xlu0 %v3650
        %v3652 = vpop.xlane.xlu0 %3651
        %v3653 = vmax.f32 %v3539, %v3541
        %3654 = vmax.xlane.f32.xlu0 %v3653
        %v3655 = vpop.xlane.xlu0 %3654
        %v3656 = vmax.f32 %v3543, %v3545
        %3657 = vmax.xlane.f32.xlu0 %v3656
        %v3658 = vpop.xlane.xlu0 %3657
        %v3659 = vmax.f32 %v3549, %v3551
        %3660 = vmax.xlane.f32.xlu0 %v3659
        %v3661 = vpop.xlane.xlu0 %3660
        %v3662 = vmax.f32 %v3553, %v3555
        %3663 = vmax.xlane.f32.xlu0 %v3662
        %v3664 = vpop.xlane.xlu0 %3663
        %v3665 = vmax.f32 %v3559, %v3561
        %3666 = vmax.xlane.f32.xlu0 %v3665
        %v3667 = vpop.xlane.xlu0 %3666
        %v3668 = vmax.f32 %v3563, %v3565
        %3669 = vmax.xlane.f32.xlu0 %v3668
        %v3670 = vpop.xlane.xlu0 %3669
        %v3671 = vmax.f32 %v3569, %v3571
        %3672 = vmax.xlane.f32.xlu0 %v3671
        %v3673 = vpop.xlane.xlu0 %3672
        %v3674 = vmax.f32 %v3573, %v3575
        %3675 = vmax.xlane.f32.xlu0 %v3674
        %v3676 = vpop.xlane.xlu0 %3675
        %v3677 = vmax.f32 %v3579, %v3581
        %3678 = vmax.xlane.f32.xlu0 %v3677
        %v3679 = vpop.xlane.xlu0 %3678
        %v3680 = vmax.f32 %v3583, %v3585
        %3681 = vmax.xlane.f32.xlu0 %v3680
        %v3682 = vpop.xlane.xlu0 %3681
        %v3683 = vsub.f32 %v3429, %v3589
        %v3684 = vsub.f32 %v3431, %v3589
        %v3685 = vsub.f32 %v3433, %v3592
        %v3686 = vsub.f32 %v3435, %v3592
        %v3687 = vsub.f32 %v3439, %v3595
        %v3688 = vsub.f32 %v3441, %v3595
        %v3689 = vsub.f32 %v3443, %v3598
        %v3690 = vsub.f32 %v3445, %v3598
        %v3691 = vsub.f32 %v3449, %v3601
        %v3692 = vsub.f32 %v3451, %v3601
        %v3693 = vsub.f32 %v3453, %v3604
        %v3694 = vsub.f32 %v3455, %v3604
        %v3695 = vsub.f32 %v3459, %v3607
        %v3696 = vsub.f32 %v3461, %v3607
        %v3697 = vsub.f32 %v3463, %v3610
        %v3698 = vsub.f32 %v3465, %v3610
        %v3699 = vsub.f32 %v3469, %v3613
        %v3700 = vsub.f32 %v3471, %v3613
        %v3701 = vsub.f32 %v3473, %v3616
        %v3702 = vsub.f32 %v3475, %v3616
        %v3703 = vsub.f32 %v3479, %v3619
        %v3704 = vsub.f32 %v3481, %v3619
        %v3705 = vsub.f32 %v3483, %v3622
        %v3706 = vsub.f32 %v3485, %v3622
        %v3707 = vsub.f32 %v3489, %v3625
        %v3708 = vsub.f32 %v3491, %v3625
        %v3709 = vsub.f32 %v3493, %v3628
        %v3710 = vsub.f32 %v3495, %v3628
        %v3711 = vsub.f32 %v3499, %v3631
        %v3712 = vsub.f32 %v3501, %v3631
        %v3713 = vsub.f32 %v3503, %v3634
        %v3714 = vsub.f32 %v3505, %v3634
        %v3715 = vsub.f32 %v3509, %v3637
        %v3716 = vsub.f32 %v3511, %v3637
        %v3717 = vsub.f32 %v3513, %v3640
        %v3718 = vsub.f32 %v3515, %v3640
        %v3719 = vsub.f32 %v3519, %v3643
        %v3720 = vsub.f32 %v3521, %v3643
        %v3721 = vsub.f32 %v3523, %v3646
        %v3722 = vsub.f32 %v3525, %v3646
        %v3723 = vsub.f32 %v3529, %v3649
        %v3724 = vsub.f32 %v3531, %v3649
        %v3725 = vsub.f32 %v3533, %v3652
        %v3726 = vsub.f32 %v3535, %v3652
        %v3727 = vsub.f32 %v3539, %v3655
        %v3728 = vsub.f32 %v3541, %v3655
        %v3729 = vsub.f32 %v3543, %v3658
        %v3730 = vsub.f32 %v3545, %v3658
        %v3731 = vsub.f32 %v3549, %v3661
        %v3732 = vsub.f32 %v3551, %v3661
        %v3733 = vsub.f32 %v3553, %v3664
        %v3734 = vsub.f32 %v3555, %v3664
        %v3735 = vsub.f32 %v3559, %v3667
        %v3736 = vsub.f32 %v3561, %v3667
        %v3737 = vsub.f32 %v3563, %v3670
        %v3738 = vsub.f32 %v3565, %v3670
        %v3739 = vsub.f32 %v3569, %v3673
        %v3740 = vsub.f32 %v3571, %v3673
        %v3741 = vsub.f32 %v3573, %v3676
        %v3742 = vsub.f32 %v3575, %v3676
        %v3743 = vsub.f32 %v3579, %v3679
        %v3744 = vsub.f32 %v3581, %v3679
        %v3745 = vsub.f32 %v3583, %v3682
        %v3746 = vsub.f32 %v3585, %v3682
        %v3747 = vmul.f32 %v3683, 1.442695
        %v3748 = vpow.pop %v3747
        %v3749 = vmul.f32 %v3684, 1.442695
        %v3750 = vpow.pop %v3749
        %v3751 = vmul.f32 %v3685, 1.442695
        %v3752 = vpow.pop %v3751
        %v3753 = vmul.f32 %v3686, 1.442695
        %v3754 = vpow.pop %v3753
        %v3755 = vmul.f32 %v3687, 1.442695
        %v3756 = vpow.pop %v3755
        %v3757 = vmul.f32 %v3688, 1.442695
        %v3758 = vpow.pop %v3757
        %v3759 = vmul.f32 %v3689, 1.442695
        %v3760 = vpow.pop %v3759
        %v3761 = vmul.f32 %v3690, 1.442695
        %v3762 = vpow.pop %v3761
        %v3763 = vmul.f32 %v3691, 1.442695
        %v3764 = vpow.pop %v3763
        %v3765 = vmul.f32 %v3692, 1.442695
        %v3766 = vpow.pop %v3765
        %v3767 = vmul.f32 %v3693, 1.442695
        %v3768 = vpow.pop %v3767
        %v3769 = vmul.f32 %v3694, 1.442695
        %v3770 = vpow.pop %v3769
        %v3771 = vmul.f32 %v3695, 1.442695
        %v3772 = vpow.pop %v3771
        %v3773 = vmul.f32 %v3696, 1.442695
        %v3774 = vpow.pop %v3773
        %v3775 = vmul.f32 %v3697, 1.442695
        %v3776 = vpow.pop %v3775
        %v3777 = vmul.f32 %v3698, 1.442695
        %v3778 = vpow.pop %v3777
        %v3779 = vmul.f32 %v3699, 1.442695
        %v3780 = vpow.pop %v3779
        %v3781 = vmul.f32 %v3700, 1.442695
        %v3782 = vpow.pop %v3781
        %v3783 = vmul.f32 %v3701, 1.442695
        %v3784 = vpow.pop %v3783
        %v3785 = vmul.f32 %v3702, 1.442695
        %v3786 = vpow.pop %v3785
        %v3787 = vmul.f32 %v3703, 1.442695
        %v3788 = vpow.pop %v3787
        %v3789 = vmul.f32 %v3704, 1.442695
        %v3790 = vpow.pop %v3789
        %v3791 = vmul.f32 %v3705, 1.442695
        %v3792 = vpow.pop %v3791
        %v3793 = vmul.f32 %v3706, 1.442695
        %v3794 = vpow.pop %v3793
        %v3795 = vmul.f32 %v3707, 1.442695
        %v3796 = vpow.pop %v3795
        %v3797 = vmul.f32 %v3708, 1.442695
        %v3798 = vpow.pop %v3797
        %v3799 = vmul.f32 %v3709, 1.442695
        %v3800 = vpow.pop %v3799
        %v3801 = vmul.f32 %v3710, 1.442695
        %v3802 = vpow.pop %v3801
        %v3803 = vmul.f32 %v3711, 1.442695
        %v3804 = vpow.pop %v3803
        %v3805 = vmul.f32 %v3712, 1.442695
        %v3806 = vpow.pop %v3805
        %v3807 = vmul.f32 %v3713, 1.442695
        %v3808 = vpow.pop %v3807
        %v3809 = vmul.f32 %v3714, 1.442695
        %v3810 = vpow.pop %v3809
        %v3811 = vmul.f32 %v3715, 1.442695
        %v3812 = vpow.pop %v3811
        %v3813 = vmul.f32 %v3716, 1.442695
        %v3814 = vpow.pop %v3813
        %v3815 = vmul.f32 %v3717, 1.442695
        %v3816 = vpow.pop %v3815
        %v3817 = vmul.f32 %v3718, 1.442695
        %v3818 = vpow.pop %v3817
        %v3819 = vmul.f32 %v3719, 1.442695
        %v3820 = vpow.pop %v3819
        %v3821 = vmul.f32 %v3720, 1.442695
        %v3822 = vpow.pop %v3821
        %v3823 = vmul.f32 %v3721, 1.442695
        %v3824 = vpow.pop %v3823
        %v3825 = vmul.f32 %v3722, 1.442695
        %v3826 = vpow.pop %v3825
        %v3827 = vmul.f32 %v3723, 1.442695
        %v3828 = vpow.pop %v3827
        %v3829 = vmul.f32 %v3724, 1.442695
        %v3830 = vpow.pop %v3829
        %v3831 = vmul.f32 %v3725, 1.442695
        %v3832 = vpow.pop %v3831
        %v3833 = vmul.f32 %v3726, 1.442695
        %v3834 = vpow.pop %v3833
        %v3835 = vmul.f32 %v3727, 1.442695
        %v3836 = vpow.pop %v3835
        %v3837 = vmul.f32 %v3728, 1.442695
        %v3838 = vpow.pop %v3837
        %v3839 = vmul.f32 %v3729, 1.442695
        %v3840 = vpow.pop %v3839
        %v3841 = vmul.f32 %v3730, 1.442695
        %v3842 = vpow.pop %v3841
        %v3843 = vmul.f32 %v3731, 1.442695
        %v3844 = vpow.pop %v3843
        %v3845 = vmul.f32 %v3732, 1.442695
        %v3846 = vpow.pop %v3845
        %v3847 = vmul.f32 %v3733, 1.442695
        %v3848 = vpow.pop %v3847
        %v3849 = vmul.f32 %v3734, 1.442695
        %v3850 = vpow.pop %v3849
        %v3851 = vmul.f32 %v3735, 1.442695
        %v3852 = vpow.pop %v3851
        %v3853 = vmul.f32 %v3736, 1.442695
        %v3854 = vpow.pop %v3853
        %v3855 = vmul.f32 %v3737, 1.442695
        %v3856 = vpow.pop %v3855
        %v3857 = vmul.f32 %v3738, 1.442695
        %v3858 = vpow.pop %v3857
        %v3859 = vmul.f32 %v3739, 1.442695
        %v3860 = vpow.pop %v3859
        %v3861 = vmul.f32 %v3740, 1.442695
        %v3862 = vpow.pop %v3861
        %v3863 = vmul.f32 %v3741, 1.442695
        %v3864 = vpow.pop %v3863
        %v3865 = vmul.f32 %v3742, 1.442695
        %v3866 = vpow.pop %v3865
        %v3867 = vmul.f32 %v3743, 1.442695
        %v3868 = vpow.pop %v3867
        %v3869 = vmul.f32 %v3744, 1.442695
        %v3870 = vpow.pop %v3869
        %v3871 = vmul.f32 %v3745, 1.442695
        %v3872 = vpow.pop %v3871
        %v3873 = vmul.f32 %v3746, 1.442695
        %v3874 = vpow.pop %v3873
        %v3875 = vadd.f32 %v3748, %v3750
        %3876 = vadd.xlane.f32.xlu0 %v3875
        %v3877 = vpop.xlane.xlu0 %3876
        %v3878 = vadd.f32 %v3752, %v3754
        %3879 = vadd.xlane.f32.xlu0 %v3878
        %v3880 = vpop.xlane.xlu0 %3879
        %v3881 = vadd.f32 %v3756, %v3758
        %3882 = vadd.xlane.f32.xlu0 %v3881
        %v3883 = vpop.xlane.xlu0 %3882
        %v3884 = vadd.f32 %v3760, %v3762
        %3885 = vadd.xlane.f32.xlu0 %v3884
        %v3886 = vpop.xlane.xlu0 %3885
        %v3887 = vadd.f32 %v3764, %v3766
        %3888 = vadd.xlane.f32.xlu0 %v3887
        %v3889 = vpop.xlane.xlu0 %3888
        %v3890 = vadd.f32 %v3768, %v3770
        %3891 = vadd.xlane.f32.xlu0 %v3890
        %v3892 = vpop.xlane.xlu0 %3891
        %v3893 = vadd.f32 %v3772, %v3774
        %3894 = vadd.xlane.f32.xlu0 %v3893
        %v3895 = vpop.xlane.xlu0 %3894
        %v3896 = vadd.f32 %v3776, %v3778
        %3897 = vadd.xlane.f32.xlu0 %v3896
        %v3898 = vpop.xlane.xlu0 %3897
        %v3899 = vadd.f32 %v3780, %v3782
        %3900 = vadd.xlane.f32.xlu0 %v3899
        %v3901 = vpop.xlane.xlu0 %3900
        %v3902 = vadd.f32 %v3784, %v3786
        %3903 = vadd.xlane.f32.xlu0 %v3902
        %v3904 = vpop.xlane.xlu0 %3903
        %v3905 = vadd.f32 %v3788, %v3790
        %3906 = vadd.xlane.f32.xlu0 %v3905
        %v3907 = vpop.xlane.xlu0 %3906
        %v3908 = vadd.f32 %v3792, %v3794
        %3909 = vadd.xlane.f32.xlu0 %v3908
        %v3910 = vpop.xlane.xlu0 %3909
        %v3911 = vadd.f32 %v3796, %v3798
        %3912 = vadd.xlane.f32.xlu0 %v3911
        %v3913 = vpop.xlane.xlu0 %3912
        %v3914 = vadd.f32 %v3800, %v3802
        %3915 = vadd.xlane.f32.xlu0 %v3914
        %v3916 = vpop.xlane.xlu0 %3915
        %v3917 = vadd.f32 %v3804, %v3806
        %3918 = vadd.xlane.f32.xlu0 %v3917
        %v3919 = vpop.xlane.xlu0 %3918
        %v3920 = vadd.f32 %v3808, %v3810
        %3921 = vadd.xlane.f32.xlu0 %v3920
        %v3922 = vpop.xlane.xlu0 %3921
        %v3923 = vadd.f32 %v3812, %v3814
        %3924 = vadd.xlane.f32.xlu0 %v3923
        %v3925 = vpop.xlane.xlu0 %3924
        %v3926 = vadd.f32 %v3816, %v3818
        %3927 = vadd.xlane.f32.xlu0 %v3926
        %v3928 = vpop.xlane.xlu0 %3927
        %v3929 = vadd.f32 %v3820, %v3822
        %3930 = vadd.xlane.f32.xlu0 %v3929
        %v3931 = vpop.xlane.xlu0 %3930
        %v3932 = vadd.f32 %v3824, %v3826
        %3933 = vadd.xlane.f32.xlu0 %v3932
        %v3934 = vpop.xlane.xlu0 %3933
        %v3935 = vadd.f32 %v3828, %v3830
        %3936 = vadd.xlane.f32.xlu0 %v3935
        %v3937 = vpop.xlane.xlu0 %3936
        %v3938 = vadd.f32 %v3832, %v3834
        %3939 = vadd.xlane.f32.xlu0 %v3938
        %v3940 = vpop.xlane.xlu0 %3939
        %v3941 = vadd.f32 %v3836, %v3838
        %3942 = vadd.xlane.f32.xlu0 %v3941
        %v3943 = vpop.xlane.xlu0 %3942
        %v3944 = vadd.f32 %v3840, %v3842
        %3945 = vadd.xlane.f32.xlu0 %v3944
        %v3946 = vpop.xlane.xlu0 %3945
        %v3947 = vadd.f32 %v3844, %v3846
        %3948 = vadd.xlane.f32.xlu0 %v3947
        %v3949 = vpop.xlane.xlu0 %3948
        %v3950 = vadd.f32 %v3848, %v3850
        %3951 = vadd.xlane.f32.xlu0 %v3950
        %v3952 = vpop.xlane.xlu0 %3951
        %v3953 = vadd.f32 %v3852, %v3854
        %3954 = vadd.xlane.f32.xlu0 %v3953
        %v3955 = vpop.xlane.xlu0 %3954
        %v3956 = vadd.f32 %v3856, %v3858
        %3957 = vadd.xlane.f32.xlu0 %v3956
        %v3958 = vpop.xlane.xlu0 %3957
        %v3959 = vadd.f32 %v3860, %v3862
        %3960 = vadd.xlane.f32.xlu0 %v3959
        %v3961 = vpop.xlane.xlu0 %3960
        %v3962 = vadd.f32 %v3864, %v3866
        %3963 = vadd.xlane.f32.xlu0 %v3962
        %v3964 = vpop.xlane.xlu0 %3963
        %v3965 = vadd.f32 %v3868, %v3870
        %3966 = vadd.xlane.f32.xlu0 %v3965
        %v3967 = vpop.xlane.xlu0 %3966
        %v3968 = vadd.f32 %v3872, %v3874
        %3969 = vadd.xlane.f32.xlu0 %v3968
        %v3970 = vpop.xlane.xlu0 %3969
        %v3971 = vrcp.pop %v3877
        %v3972 = vrcp.pop %v3880
        %v3973 = vrcp.pop %v3883
        %v3974 = vrcp.pop %v3886
        %v3975 = vrcp.pop %v3889
        %v3976 = vrcp.pop %v3892
        %v3977 = vrcp.pop %v3895
        %v3978 = vrcp.pop %v3898
        %v3979 = vrcp.pop %v3901
        %v3980 = vrcp.pop %v3904
        %v3981 = vrcp.pop %v3907
        %v3982 = vrcp.pop %v3910
        %v3983 = vrcp.pop %v3913
        %v3984 = vrcp.pop %v3916
        %v3985 = vrcp.pop %v3919
        %v3986 = vrcp.pop %v3922
        %v3987 = vrcp.pop %v3925
        %v3988 = vrcp.pop %v3928
        %v3989 = vrcp.pop %v3931
        %v3990 = vrcp.pop %v3934
        %v3991 = vrcp.pop %v3937
        %v3992 = vrcp.pop %v3940
        %v3993 = vrcp.pop %v3943
        %v3994 = vrcp.pop %v3946
        %v3995 = vrcp.pop %v3949
        %v3996 = vrcp.pop %v3952
        %v3997 = vrcp.pop %v3955
        %v3998 = vrcp.pop %v3958
        %v3999 = vrcp.pop %v3961
        %v4000 = vrcp.pop %v3964
        %v4001 = vrcp.pop %v3967
        %v4002 = vrcp.pop %v3970
        %v4003 = vmul.f32 %v3748, %v3971
        %v4004 = vmul.f32 %v3750, %v3971
        %v4005 = vmul.f32 %v3752, %v3972
        %v4006 = vmul.f32 %v3754, %v3972
        %v4007 = vmul.f32 %v3756, %v3973
        %v4008 = vmul.f32 %v3758, %v3973
        %v4009 = vmul.f32 %v3760, %v3974
        %v4010 = vmul.f32 %v3762, %v3974
        %v4011 = vmul.f32 %v3764, %v3975
        %v4012 = vmul.f32 %v3766, %v3975
        %v4013 = vmul.f32 %v3768, %v3976
        %v4014 = vmul.f32 %v3770, %v3976
        %v4015 = vmul.f32 %v3772, %v3977
        %v4016 = vmul.f32 %v3774, %v3977
        %v4017 = vmul.f32 %v3776, %v3978
        %v4018 = vmul.f32 %v3778, %v3978
        %v4019 = vmul.f32 %v3780, %v3979
        %v4020 = vmul.f32 %v3782, %v3979
        %v4021 = vmul.f32 %v3784, %v3980
        %v4022 = vmul.f32 %v3786, %v3980
        %v4023 = vmul.f32 %v3788, %v3981
        %v4024 = vmul.f32 %v3790, %v3981
        %v4025 = vmul.f32 %v3792, %v3982
        %v4026 = vmul.f32 %v3794, %v3982
        %v4027 = vmul.f32 %v3796, %v3983
        %v4028 = vmul.f32 %v3798, %v3983
        %v4029 = vmul.f32 %v3800, %v3984
        %v4030 = vmul.f32 %v3802, %v3984
        %v4031 = vmul.f32 %v3804, %v3985
        %v4032 = vmul.f32 %v3806, %v3985
        %v4033 = vmul.f32 %v3808, %v3986
        %v4034 = vmul.f32 %v3810, %v3986
        %v4035 = vmul.f32 %v3812, %v3987
        %v4036 = vmul.f32 %v3814, %v3987
        %v4037 = vmul.f32 %v3816, %v3988
        %v4038 = vmul.f32 %v3818, %v3988
        %v4039 = vmul.f32 %v3820, %v3989
        %v4040 = vmul.f32 %v3822, %v3989
        %v4041 = vmul.f32 %v3824, %v3990
        %v4042 = vmul.f32 %v3826, %v3990
        %v4043 = vmul.f32 %v3828, %v3991
        %v4044 = vmul.f32 %v3830, %v3991
        %v4045 = vmul.f32 %v3832, %v3992
        %v4046 = vmul.f32 %v3834, %v3992
        %v4047 = vmul.f32 %v3836, %v3993
        %v4048 = vmul.f32 %v3838, %v3993
        %v4049 = vmul.f32 %v3840, %v3994
        %v4050 = vmul.f32 %v3842, %v3994
        %v4051 = vmul.f32 %v3844, %v3995
        %v4052 = vmul.f32 %v3846, %v3995
        %v4053 = vmul.f32 %v3848, %v3996
        %v4054 = vmul.f32 %v3850, %v3996
        %v4055 = vmul.f32 %v3852, %v3997
        %v4056 = vmul.f32 %v3854, %v3997
        %v4057 = vmul.f32 %v3856, %v3998
        %v4058 = vmul.f32 %v3858, %v3998
        %v4059 = vmul.f32 %v3860, %v3999
        %v4060 = vmul.f32 %v3862, %v3999
        %v4061 = vmul.f32 %v3864, %v4000
        %v4062 = vmul.f32 %v3866, %v4000
        %v4063 = vmul.f32 %v3868, %v4001
        %v4064 = vmul.f32 %v3870, %v4001
        %v4065 = vmul.f32 %v3872, %v4002
        %v4066 = vmul.f32 %v3874, %v4002
        %v4067 = vpack.c.bf16 %v4005, %v4003
        %v4068 = vpack.c.bf16 %v4006, %v4004
        %v4069 = vpack.c.bf16 %v4009, %v4007
        %v4070 = vpack.c.bf16 %v4010, %v4008
        %v4071 = vpack.c.bf16 %v4013, %v4011
        %v4072 = vpack.c.bf16 %v4014, %v4012
        %v4073 = vpack.c.bf16 %v4017, %v4015
        %v4074 = vpack.c.bf16 %v4018, %v4016
        %v4075 = vpack.c.bf16 %v4021, %v4019
        %v4076 = vpack.c.bf16 %v4022, %v4020
        %v4077 = vpack.c.bf16 %v4025, %v4023
        %v4078 = vpack.c.bf16 %v4026, %v4024
        %v4079 = vpack.c.bf16 %v4029, %v4027
        %v4080 = vpack.c.bf16 %v4030, %v4028
        %v4081 = vpack.c.bf16 %v4033, %v4031
        %v4082 = vpack.c.bf16 %v4034, %v4032
        %v4083 = vpack.c.bf16 %v4037, %v4035
        %v4084 = vpack.c.bf16 %v4038, %v4036
        %v4085 = vpack.c.bf16 %v4041, %v4039
        %v4086 = vpack.c.bf16 %v4042, %v4040
        %v4087 = vpack.c.bf16 %v4045, %v4043
        %v4088 = vpack.c.bf16 %v4046, %v4044
        %v4089 = vpack.c.bf16 %v4049, %v4047
        %v4090 = vpack.c.bf16 %v4050, %v4048
        %v4091 = vpack.c.bf16 %v4053, %v4051
        %v4092 = vpack.c.bf16 %v4054, %v4052
        %v4093 = vpack.c.bf16 %v4057, %v4055
        %v4094 = vpack.c.bf16 %v4058, %v4056
        %v4095 = vpack.c.bf16 %v4061, %v4059
        %v4096 = vpack.c.bf16 %v4062, %v4060
        %v4097 = vpack.c.bf16 %v4065, %v4063
        %v4098 = vpack.c.bf16 %v4066, %v4064
        %4099 = vmatprep.subr.bf16.mxu0 %v4082
        %4100 = vmatpush1.bf16.xpose.msra.mxu0 %v4081
        %4101 = vmatprep.subr.bf16.mxu0 %v4080
        %4102 = vmatpush1.bf16.xpose.msra.mxu0 %v4079
        %4103 = vmatprep.subr.bf16.mxu0 %v4078
        %4104 = vmatpush1.bf16.xpose.msra.mxu0 %v4077
        %4105 = vmatprep.subr.bf16.mxu0 %v4076
        %4106 = vmatpush1.bf16.xpose.msra.mxu0 %v4075
        %4107 = vmatprep.subr.bf16.mxu0 %v4074
        %4108 = vmatpush1.bf16.xpose.msra.mxu0 %v4073
        %4109 = vmatprep.subr.bf16.mxu0 %v4072
        %4110 = vmatpush1.bf16.xpose.msra.mxu0 %v4071
        %4111 = vmatprep.subr.bf16.mxu0 %v4070
        %4112 = vmatpush1.bf16.xpose.msra.mxu0 %v4069
        %4113 = vmatprep.subr.bf16.mxu0 %v4068
        %4114 = vmatpush1.bf16.xpose.msra.mxu0 %v4067
        %4115 = vmatprep.subr.bf16.mxu0 %v4098
        %4116 = vmatpush2.bf16.xpose.msra.mxu0 %v4097
        %4117 = vmatprep.subr.bf16.mxu0 %v4096
        %4118 = vmatpush2.bf16.xpose.msra.mxu0 %v4095
        %4119 = vmatprep.subr.bf16.mxu0 %v4094
        %4120 = vmatpush2.bf16.xpose.msra.mxu0 %v4093
        %4121 = vmatprep.subr.bf16.mxu0 %v4092
        %4122 = vmatpush2.bf16.xpose.msra.mxu0 %v4091
        %4123 = vmatprep.subr.bf16.mxu0 %v4090
        %4124 = vmatpush2.bf16.xpose.msra.mxu0 %v4089
        %4125 = vmatprep.subr.bf16.mxu0 %v4088
        %4126 = vmatpush2.bf16.xpose.msra.mxu0 %v4087
        %4127 = vmatprep.subr.bf16.mxu0 %v4086
        %4128 = vmatpush2.bf16.xpose.msra.mxu0 %v4085
        %4129 = vmatprep.subr.bf16.mxu0 %v4084
        %4130 = vmatpush2.bf16.xpose.msra.mxu0 %v4083
        %4131 = vmatprep.mubr.bf16.mxu0 %v796
        %4132 = vmatmul.mubr.bf16.gmra.mxu0 %v795
        %v4133 = vpop.f32.mrf.mxu0
        %v4134 = vadd.f32 0.0, %v4133
        %v4135 = vpop.f32.mrf.mxu0
        %v4136 = vadd.f32 0.0, %v4135
        %v4137 = vpop.f32.mrf.mxu0
        %v4138 = vadd.f32 0.0, %v4137
        %v4139 = vpop.f32.mrf.mxu0
        %v4140 = vadd.f32 0.0, %v4139
        %4141 = vmatprep.mubr.bf16.mxu0 %v798
        %4142 = vmatmul.mubr.bf16.gmra.mxu0 %v797
        %v4143 = vpop.f32.mrf.mxu0
        %v4144 = vadd.f32 0.0, %v4143
        %v4145 = vpop.f32.mrf.mxu0
        %v4146 = vadd.f32 0.0, %v4145
        %v4147 = vpop.f32.mrf.mxu0
        %v4148 = vadd.f32 0.0, %v4147
        %v4149 = vpop.f32.mrf.mxu0
        %v4150 = vadd.f32 0.0, %v4149
        %4151 = vdwg.mxu0
        %v4152 = vld [vmem:[%s2] sm:$0xf]
        %v4153 = vld [vmem:[%s3] sm:$0xf]
        %4155 = vset.pattern.permute.xlu0 0
        %4156 = vperm.xlu0 %4155, %v4153
        %v4157 = vpop.permute.xlu0 %4156
        %4159 = vmatprep.subr.mxu0 %v4150
        %4160 = vmatpush1.msra.mxu0 %v4148
        %4161 = vmatprep.subr.mxu0 %v4146
        %4162 = vmatpush1.msra.mxu0 %v4144
        %4163 = vmatprep.subr.mxu0 %v4140
        %4164 = vmatpush1.msra.mxu0 %v4138
        %4165 = vmatprep.subr.mxu0 %v4136
        %4166 = vmatpush1.msra.mxu0 %v4134
        %4167 = vmatprep.subr.mxu0 %v3312
        %4168 = vmatpush1.msra.mxu0 %v3310
        %4169 = vmatprep.subr.mxu0 %v3308
        %4170 = vmatpush1.msra.mxu0 %v3306
        %4171 = vmatprep.subr.mxu0 %v3302
        %4172 = vmatpush1.msra.mxu0 %v3300
        %4173 = vmatprep.subr.mxu0 %v3298
        %4174 = vmatpush1.msra.mxu0 %v3296
        %4175 = vmatprep.subr.mxu0 %v2474
        %4176 = vmatpush1.msra.mxu0 %v2472
        %4177 = vmatprep.subr.mxu0 %v2470
        %4178 = vmatpush1.msra.mxu0 %v2468
        %4179 = vmatprep.subr.mxu0 %v2464
        %4180 = vmatpush1.msra.mxu0 %v2462
        %4181 = vmatprep.subr.mxu0 %v2460
        %4182 = vmatpush1.msra.mxu0 %v2458
        %4183 = vmatprep.subr.mxu0 %v1636
        %4184 = vmatpush1.msra.mxu0 %v1634
        %4185 = vmatprep.subr.mxu0 %v1632
        %4186 = vmatpush1.msra.mxu0 %v1630
        %4187 = vmatprep.subr.mxu0 %v1626
        %4188 = vmatpush1.msra.mxu0 %v1624
        %4189 = vmatprep.subr.mxu0 %v1622
        %4190 = vmatpush1.msra.mxu0 %v1620
        %4191 = vmatprep.subr.mxu0 0.0
        %4192 = vmatpush2.msra.mxu0 0.0
        %4193 = vmatprep.subr.mxu0 0.0
        %4194 = vmatpush2.msra.mxu0 0.0
        %4195 = vmatprep.subr.mxu0 0.0
        %4196 = vmatpush2.msra.mxu0 0.0
        %4197 = vmatprep.subr.mxu0 0.0
        %4198 = vmatpush2.msra.mxu0 0.0
        %4199 = vmatprep.subr.mxu0 0.0
        %4200 = vmatpush2.msra.mxu0 0.0
        %4201 = vmatprep.subr.mxu0 0.0
        %4202 = vmatpush2.msra.mxu0 0.0
        %4203 = vmatprep.subr.mxu0 0.0
        %4204 = vmatpush2.msra.mxu0 0.0
        %4205 = vmatprep.subr.mxu0 0.0
        %4206 = vmatpush2.msra.mxu0 0.0
        %4207 = vmatprep.subr.mxu0 0.0
        %4208 = vmatpush2.msra.mxu0 0.0
        %4209 = vmatprep.subr.mxu0 0.0
        %4210 = vmatpush2.msra.mxu0 0.0
        %4211 = vmatprep.subr.mxu0 0.0
        %4212 = vmatpush2.msra.mxu0 0.0
        %4213 = vmatprep.subr.mxu0 0.0
        %4214 = vmatpush2.msra.mxu0 0.0
        %4215 = vmatprep.subr.mxu0 0.0
        %4216 = vmatpush2.msra.mxu0 0.0
        %4217 = vmatprep.subr.mxu0 0.0
        %4218 = vmatpush2.msra.mxu0 0.0
        %4219 = vmatprep.subr.mxu0 0.0
        %4220 = vmatpush2.msra.mxu0 0.0
        %4221 = vmatprep.subr.mxu0 0.0
        %4222 = vmatpush2.msra.mxu0 0.0
        %4223 = vmatprep.mubr.f32.mxu0 0.0
        %4224 = vmatmul.mubr.f32.gmra.mxu0 %v4152
        %v4225 = vpop.f32.mrf.mxu0
        %v4226 = vadd.f32 %v4157, %v4225
        %v4227 = vpop.f32.mrf.mxu0
        %v4228 = vadd.f32 %v4157, %v4227
        %4229 = vdwg.mxu0
        %v4232 = vcombine.low %v4226, %v4228
        %4234 = vst [vmem:[%s190] sm:$0xff] %v4232
        %s4235 = sand.u32 %s115, 1
        %s4236 = scalar_lea.sflag [#allocation3], %s4235
        %s4237 = sand.u32 %s115, 1
        %s4238 = smul.addr %s4237, 8
        %s4239 = scalar_lea.vmem [#allocation2], %s4238
        // Predicated region
        $region37: #{tpu_custom_call.1} parent=35 // pred_check
          %p4240 = pneg %p125
        $region38: #{tpu_custom_call.1} parent=35 // pred_check_branch
          %4242 = sbr.rel (%p4240) target = $region40
        $region39: #{tpu_custom_call.1} parent=35 // pred_region
          %s4244 = ssub.s32 128, 128
          %4245 = vsyncadd %s4236, %s4244
          %s4246 = smul.addr %s18, 2
          %s4247 = smul.addr %s4246, 64
          %s4248 = scalar_lea.hbm %s4, %s4247
          %s4250 = sshll.u32 %s4239, 4
          %s4251 = int_to_ptr.vmem [resolvable:$true] %s4250
          %4253 = dma.vmem_to_hbm [thread:$0]  %s4251, 128, %s4248, %s4236
        $region40: #{tpu_custom_call.1} parent=35 // pred_fallthru
          _
      $region36: #{tpu_custom_call.1} parent=5 // pred_fallthru
        _
      %p4254 = scmp.le.s32.totalorder 2, %s13
      // Predicated region
      $region41: #{tpu_custom_call.1} parent=5 // pred_check
        %p4255 = pneg %p4254
      $region42: #{tpu_custom_call.1} parent=5 // pred_check_branch
        %4257 = sbr.rel (%p4255) target = $region44
      $region43: #{tpu_custom_call.1} parent=5 // pred_region
        %s4258 = ssub.s32 %s13, 2
        // Predicated region
        $region45: #{tpu_custom_call.1} parent=43 // pred_check
          %p4259 = pneg %p131
        $region46: #{tpu_custom_call.1} parent=43 // pred_check_branch
          %4261 = sbr.rel (%p4259) target = $region48
        $region47: #{tpu_custom_call.1} parent=43 // pred_region
          %s4262 = sand.u32 %s116, 1
          %s4263 = scalar_lea.sflag [#allocation3], %s4262
          %s4264 = sand.u32 %s116, 1
          %s4265 = smul.addr %s4264, 8
          %s4266 = scalar_lea.vmem [#allocation2], %s4265
          %4267 = dma.done %s4263, 128
        $region48: #{tpu_custom_call.1} parent=43 // pred_fallthru
          _
      $region44: #{tpu_custom_call.1} parent=5 // pred_fallthru
        _
    $region6: #{tpu_custom_call.1} parent=1 // loop_footer
      %s17 = sadd.s32 1, %s13
    $region7: #{tpu_custom_call.1} parent=1 // loop_footer_branch
      %12 = sbr.rel target = $region3
    $region8: #{tpu_custom_call.1} parent=1 // loop_exit
      _
    %4268 = vsyncpa [#allocation3], 1
    %s4269 = scalar_lea.sflag [#allocation3], 1
    %4270 = vsyncpa %s4269, 1

</llo_original>
